<compile_context>
chip_gen: v7x
topology: tpu7x:2x2x1
jax: 0.10.0
libtpu: 0.0.40
codegen_flags: <defaults>
</compile_context>

<pallas_src>
import functools

import jax
import jax.numpy as jnp
from jax.experimental import pallas as pl
from jax.experimental.pallas import tpu as pltpu

K = 7      # conv kernel size
PAD = 3    # reflect padding on each side


def _spatial_attention_kernel(x_ref, wa_ref, wm_ref, b_ref, out_ref,
                              apad_ref, mpad_ref, *, Bt, C, H, W):
    """Processes Bt batch elements per grid step.

    x_ref            : (Bt, C, H, W)   input block (VMEM)
    wa_ref           : (49,) f32       taps for mean plane, pre-scaled by 1/C (SMEM)
    wm_ref           : (49,) f32       taps for max plane (SMEM)
    b_ref            : (1,)  f32       conv bias (SMEM)
    out_ref          : (Bt, H, W)      output block (VMEM, channel dim squeezed)
    apad_ref/mpad_ref: (H+6, W+6) f32  reflect-padded scratch slabs (VMEM)
    """
    # Hoist all scalar tap / bias reads (SMEM -> sreg) out of the tap loops.
    wa = [wa_ref[i] for i in range(K * K)]
    wm = [wm_ref[i] for i in range(K * K)]
    bias = b_ref[0]

    def reflect_pad(pad_ref):
        # PyTorch 'reflect' (no edge repeat).  Rows first, then columns over the
        # full (already row-padded) slab, so corners reflect correctly.
        for r in range(PAD):
            pad_ref[r:r + 1, PAD:PAD + W] = \
                pad_ref[2 * PAD - r:2 * PAD - r + 1, PAD:PAD + W]
            pad_ref[PAD + H + r:PAD + H + r + 1, PAD:PAD + W] = \
                pad_ref[PAD + H - 2 - r:PAD + H - 1 - r, PAD:PAD + W]
        for c in range(PAD):
            pad_ref[:, c:c + 1] = pad_ref[:, 2 * PAD - c:2 * PAD - c + 1]
            pad_ref[:, PAD + W + c:PAD + W + c + 1] = \
                pad_ref[:, PAD + W - 2 - c:PAD + W - 1 - c]

    for bt in range(Bt):
        # ---- channel sum & max fully in vreg accumulators (no slab RMW) -----
        s = x_ref[bt, 0].astype(jnp.float32)                   # (H, W)
        m = s
        if C <= 64:
            # Static unroll: lets the per-channel loads pipeline against the math.
            for c in range(1, C):
                xc = x_ref[bt, c].astype(jnp.float32)
                s = s + xc
                m = jnp.maximum(m, xc)
        else:
            def body(c, carry):
                s_, m_ = carry
                xc = x_ref[bt, c].astype(jnp.float32)
                return s_ + xc, jnp.maximum(m_, xc)
            s, m = jax.lax.fori_loop(1, C, body, (s, m), unroll=8)

        # Write the padded-slab interiors exactly once per plane.  The 1/C mean
        # scale is folded into wa on the host, so the raw channel sum is stored.
        apad_ref[PAD:PAD + H, PAD:PAD + W] = s
        mpad_ref[PAD:PAD + H, PAD:PAD + W] = m

        # ---- in-kernel reflect padding (few 1-row / 1-col copies) -----------
        reflect_pad(apad_ref)
        reflect_pad(mpad_ref)

        # ---- 7x7 correlation: per-kh partial chains, 2 accumulator chains ---
        acc0 = None
        acc1 = None
        for kh in range(K):
            arow = apad_ref[kh:kh + H, :]          # (H, W+6)
            mrow = mpad_ref[kh:kh + H, :]
            part = None
            for kw in range(K):
                idx = kh * K + kw
                t = (arow[:, kw:kw + W] * wa[idx]
                     + mrow[:, kw:kw + W] * wm[idx])
                part = t if part is None else part + t
            if kh % 2 == 0:
                acc0 = part if acc0 is None else acc0 + part
            else:
                acc1 = part if acc1 is None else acc1 + part
        acc = acc0 + acc1

        out_ref[bt] = (acc + bias).astype(out_ref.dtype)


def _round_up(v, m):
    return (v + m - 1) // m * m


def _pick_bt(B, C, H, W, itemsize):
    """Largest divisor of B (<= 8) whose input+output block fits a VMEM budget."""
    per_b = (C + 1) * _round_up(H, 8) * _round_up(W, 128) * itemsize
    budget = 8 * 1024 * 1024        # per pipeline buffer
    bt = 1
    for cand in range(1, min(B, 8) + 1):
        if B % cand == 0 and cand * per_b <= budget:
            bt = cand
    return bt


def spatial_attention(x, weight, bias):
    """x: (B, C, H, W); weight: (1, 2, 7, 7) Conv2d(2->1, k=7) weight; bias: (1,)."""
    B, C, H, W = x.shape
    assert H >= PAD + 1 and W >= PAD + 1, "reflect padding needs H, W >= 4"
    Hp, Wp = H + 2 * PAD, W + 2 * PAD
    itemsize = jnp.dtype(x.dtype).itemsize

    # Flat SMEM tap arrays; the 1/C mean scale is folded into the mean taps.
    wa = (weight[0, 0].astype(jnp.float32) / jnp.float32(C)).reshape(K * K)
    wm = weight[0, 1].astype(jnp.float32).reshape(K * K)
    b1 = bias.reshape(1).astype(jnp.float32)

    Bt = _pick_bt(B, C, H, W, itemsize)
    grid = (B // Bt,)

    kernel = functools.partial(_spatial_attention_kernel, Bt=Bt, C=C, H=H, W=W)

    # VMEM budget: double-buffered in/out blocks + padded slabs + temporaries.
    blk = _round_up(H, 8) * _round_up(W, 128)
    pad_blk = _round_up(Hp, 8) * _round_up(Wp, 128)
    est = (2 * Bt * C * blk * itemsize          # input blocks (double-buffered)
           + 2 * Bt * blk * itemsize            # output blocks (double-buffered)
           + 2 * pad_blk * 4                    # padded scratch slabs
           + 10 * _round_up(H, 8) * _round_up(Wp, 128) * 4   # live temporaries
           + (2 << 20))                         # margin
    try:
        phys = pltpu.get_tpu_info().vmem_capacity_bytes
    except Exception:
        phys = 64 * 1024 * 1024
    cap = int(phys * 0.8)                       # headroom for compiler scratch
    vmem_limit = int(min(cap, max(2 * est, 32 * 1024 * 1024)))

    cost = pl.CostEstimate(
        flops=int(B * (2 * C * H * W + 4 * K * K * H * W)),
        transcendentals=0,
        bytes_accessed=int(B * C * H * W * itemsize + B * H * W * itemsize
                           + (2 * K * K + 1) * 4),
    )

    out = pl.pallas_call(
        kernel,
        out_shape=jax.ShapeDtypeStruct((B, 1, H, W), x.dtype),
        grid=grid,
        in_specs=[
            pl.BlockSpec((Bt, C, H, W), lambda g: (g, 0, 0, 0)),
            pl.BlockSpec(memory_space=pltpu.MemorySpace.SMEM),
            pl.BlockSpec(memory_space=pltpu.MemorySpace.SMEM),
            pl.BlockSpec(memory_space=pltpu.MemorySpace.SMEM),
        ],
        out_specs=pl.BlockSpec((Bt, None, H, W), lambda g: (g, 0, 0, 0)),
        scratch_shapes=[
            pltpu.VMEM((Hp, Wp), jnp.float32),
            pltpu.VMEM((Hp, Wp), jnp.float32),
        ],
        compiler_params=pltpu.CompilerParams(
            dimension_semantics=("parallel",),
            vmem_limit_bytes=vmem_limit,
        ),
        cost_estimate=cost,
    )(x, wa, wm, b1)
    return out


def spatial_attention_reference(x, weight, bias):
    """Plain-JAX reference mirroring the PyTorch module exactly."""
    x_avg = jnp.mean(x, axis=1, keepdims=True)
    x_max = jnp.max(x, axis=1, keepdims=True)
    x2 = jnp.concatenate([x_avg, x_max], axis=1)
    x2p = jnp.pad(x2, ((0, 0), (0, 0), (PAD, PAD), (PAD, PAD)), mode="reflect")
    conv = jax.lax.conv_general_dilated(
        x2p, weight, window_strides=(1, 1), padding="VALID",
        dimension_numbers=("NCHW", "OIHW", "NCHW"))
    return conv + bias[None, :, None, None]


if __name__ == "__main__":
    B, C, H, W = 2, 4, 16, 16

    key = jax.random.PRNGKey(0)
    kx, kwt, kb = jax.random.split(key, 3)

    x = jax.random.normal(kx, (B, C, H, W), dtype=jnp.float32)

    # Conv2d(2, 1, 7, bias=True): weight (1, 2, 7, 7), bias (1,).
    # PyTorch default init: Uniform(-k, k), k = 1/sqrt(fan_in), fan_in = 2*7*7.
    fan_in = 2 * K * K
    limit = 1.0 / (fan_in ** 0.5)
    weight = jax.random.uniform(kwt, (1, 2, K, K), dtype=jnp.float32,
                                minval=-limit, maxval=limit)
    bias = jax.random.uniform(kb, (1,), dtype=jnp.float32,
                              minval=-limit, maxval=limit)

    out = spatial_attention(x, weight, bias)
    out = jax.block_until_ready(out)

    ref = spatial_attention_reference(x, weight, bias)
    assert out.shape == (B, 1, H, W)
    assert jnp.allclose(out, ref, atol=1e-5, rtol=1e-5), "mismatch vs reference"

    print("KERNEL_OK")
</pallas_src>

<mosaic_0001>
module attributes {stable_mosaic.version = 11 : i64} {
  func.func @_spatial_attention_kernel(%arg0: i32, %arg1: memref<2x4x16x16xf32, #tpu.memory_space<vmem>>, %arg2: memref<49xf32, #tpu.memory_space<smem>>, %arg3: memref<49xf32, #tpu.memory_space<smem>>, %arg4: memref<1xf32, #tpu.memory_space<smem>>, %arg5: memref<2x1x16x16xf32, #tpu.memory_space<vmem>>, %arg6: memref<22x22xf32, #tpu.memory_space<vmem>>, %arg7: memref<22x22xf32, #tpu.memory_space<vmem>>) attributes {dimension_semantics = [#tpu.dimension_semantics<parallel>], iteration_bounds = array<i64: 1>, scalar_prefetch = 0 : i64, scratch_operands = 2 : i64, tpu.core_type = #tpu.core_type<tc>, window_params = [{transform_indices = @transform_0, window_bounds = array<i64: 2, 4, 16, 16>}, {transform_indices = @transform_1, window_bounds = array<i64: 49>}, {transform_indices = @transform_2, window_bounds = array<i64: 49>}, {transform_indices = @transform_3, window_bounds = array<i64: 1>}, {transform_indices = @transform_4, window_bounds = array<i64: 2, 1, 16, 16>}]} {
    %c0 = arith.constant 0 : index
    %0 = memref.load %arg2[%c0] : memref<49xf32, #tpu.memory_space<smem>>
    %c1 = arith.constant 1 : index
    %1 = memref.load %arg2[%c1] : memref<49xf32, #tpu.memory_space<smem>>
    %c2 = arith.constant 2 : index
    %2 = memref.load %arg2[%c2] : memref<49xf32, #tpu.memory_space<smem>>
    %c3 = arith.constant 3 : index
    %3 = memref.load %arg2[%c3] : memref<49xf32, #tpu.memory_space<smem>>
    %c4 = arith.constant 4 : index
    %4 = memref.load %arg2[%c4] : memref<49xf32, #tpu.memory_space<smem>>
    %c5 = arith.constant 5 : index
    %5 = memref.load %arg2[%c5] : memref<49xf32, #tpu.memory_space<smem>>
    %c6 = arith.constant 6 : index
    %6 = memref.load %arg2[%c6] : memref<49xf32, #tpu.memory_space<smem>>
    %c7 = arith.constant 7 : index
    %7 = memref.load %arg2[%c7] : memref<49xf32, #tpu.memory_space<smem>>
    %c8 = arith.constant 8 : index
    %8 = memref.load %arg2[%c8] : memref<49xf32, #tpu.memory_space<smem>>
    %c9 = arith.constant 9 : index
    %9 = memref.load %arg2[%c9] : memref<49xf32, #tpu.memory_space<smem>>
    %c10 = arith.constant 10 : index
    %10 = memref.load %arg2[%c10] : memref<49xf32, #tpu.memory_space<smem>>
    %c11 = arith.constant 11 : index
    %11 = memref.load %arg2[%c11] : memref<49xf32, #tpu.memory_space<smem>>
    %c12 = arith.constant 12 : index
    %12 = memref.load %arg2[%c12] : memref<49xf32, #tpu.memory_space<smem>>
    %c13 = arith.constant 13 : index
    %13 = memref.load %arg2[%c13] : memref<49xf32, #tpu.memory_space<smem>>
    %c14 = arith.constant 14 : index
    %14 = memref.load %arg2[%c14] : memref<49xf32, #tpu.memory_space<smem>>
    %c15 = arith.constant 15 : index
    %15 = memref.load %arg2[%c15] : memref<49xf32, #tpu.memory_space<smem>>
    %c16 = arith.constant 16 : index
    %16 = memref.load %arg2[%c16] : memref<49xf32, #tpu.memory_space<smem>>
    %c17 = arith.constant 17 : index
    %17 = memref.load %arg2[%c17] : memref<49xf32, #tpu.memory_space<smem>>
    %c18 = arith.constant 18 : index
    %18 = memref.load %arg2[%c18] : memref<49xf32, #tpu.memory_space<smem>>
    %c19 = arith.constant 19 : index
    %19 = memref.load %arg2[%c19] : memref<49xf32, #tpu.memory_space<smem>>
    %c20 = arith.constant 20 : index
    %20 = memref.load %arg2[%c20] : memref<49xf32, #tpu.memory_space<smem>>
    %c21 = arith.constant 21 : index
    %21 = memref.load %arg2[%c21] : memref<49xf32, #tpu.memory_space<smem>>
    %c22 = arith.constant 22 : index
    %22 = memref.load %arg2[%c22] : memref<49xf32, #tpu.memory_space<smem>>
    %c23 = arith.constant 23 : index
    %23 = memref.load %arg2[%c23] : memref<49xf32, #tpu.memory_space<smem>>
    %c24 = arith.constant 24 : index
    %24 = memref.load %arg2[%c24] : memref<49xf32, #tpu.memory_space<smem>>
    %c25 = arith.constant 25 : index
    %25 = memref.load %arg2[%c25] : memref<49xf32, #tpu.memory_space<smem>>
    %c26 = arith.constant 26 : index
    %26 = memref.load %arg2[%c26] : memref<49xf32, #tpu.memory_space<smem>>
    %c27 = arith.constant 27 : index
    %27 = memref.load %arg2[%c27] : memref<49xf32, #tpu.memory_space<smem>>
    %c28 = arith.constant 28 : index
    %28 = memref.load %arg2[%c28] : memref<49xf32, #tpu.memory_space<smem>>
    %c29 = arith.constant 29 : index
    %29 = memref.load %arg2[%c29] : memref<49xf32, #tpu.memory_space<smem>>
    %c30 = arith.constant 30 : index
    %30 = memref.load %arg2[%c30] : memref<49xf32, #tpu.memory_space<smem>>
    %c31 = arith.constant 31 : index
    %31 = memref.load %arg2[%c31] : memref<49xf32, #tpu.memory_space<smem>>
    %c32 = arith.constant 32 : index
    %32 = memref.load %arg2[%c32] : memref<49xf32, #tpu.memory_space<smem>>
    %c33 = arith.constant 33 : index
    %33 = memref.load %arg2[%c33] : memref<49xf32, #tpu.memory_space<smem>>
    %c34 = arith.constant 34 : index
    %34 = memref.load %arg2[%c34] : memref<49xf32, #tpu.memory_space<smem>>
    %c35 = arith.constant 35 : index
    %35 = memref.load %arg2[%c35] : memref<49xf32, #tpu.memory_space<smem>>
    %c36 = arith.constant 36 : index
    %36 = memref.load %arg2[%c36] : memref<49xf32, #tpu.memory_space<smem>>
    %c37 = arith.constant 37 : index
    %37 = memref.load %arg2[%c37] : memref<49xf32, #tpu.memory_space<smem>>
    %c38 = arith.constant 38 : index
    %38 = memref.load %arg2[%c38] : memref<49xf32, #tpu.memory_space<smem>>
    %c39 = arith.constant 39 : index
    %39 = memref.load %arg2[%c39] : memref<49xf32, #tpu.memory_space<smem>>
    %c40 = arith.constant 40 : index
    %40 = memref.load %arg2[%c40] : memref<49xf32, #tpu.memory_space<smem>>
    %c41 = arith.constant 41 : index
    %41 = memref.load %arg2[%c41] : memref<49xf32, #tpu.memory_space<smem>>
    %c42 = arith.constant 42 : index
    %42 = memref.load %arg2[%c42] : memref<49xf32, #tpu.memory_space<smem>>
    %c43 = arith.constant 43 : index
    %43 = memref.load %arg2[%c43] : memref<49xf32, #tpu.memory_space<smem>>
    %c44 = arith.constant 44 : index
    %44 = memref.load %arg2[%c44] : memref<49xf32, #tpu.memory_space<smem>>
    %c45 = arith.constant 45 : index
    %45 = memref.load %arg2[%c45] : memref<49xf32, #tpu.memory_space<smem>>
    %c46 = arith.constant 46 : index
    %46 = memref.load %arg2[%c46] : memref<49xf32, #tpu.memory_space<smem>>
    %c47 = arith.constant 47 : index
    %47 = memref.load %arg2[%c47] : memref<49xf32, #tpu.memory_space<smem>>
    %c48 = arith.constant 48 : index
    %48 = memref.load %arg2[%c48] : memref<49xf32, #tpu.memory_space<smem>>
    %c0_0 = arith.constant 0 : index
    %49 = memref.load %arg3[%c0_0] : memref<49xf32, #tpu.memory_space<smem>>
    %c1_1 = arith.constant 1 : index
    %50 = memref.load %arg3[%c1_1] : memref<49xf32, #tpu.memory_space<smem>>
    %c2_2 = arith.constant 2 : index
    %51 = memref.load %arg3[%c2_2] : memref<49xf32, #tpu.memory_space<smem>>
    %c3_3 = arith.constant 3 : index
    %52 = memref.load %arg3[%c3_3] : memref<49xf32, #tpu.memory_space<smem>>
    %c4_4 = arith.constant 4 : index
    %53 = memref.load %arg3[%c4_4] : memref<49xf32, #tpu.memory_space<smem>>
    %c5_5 = arith.constant 5 : index
    %54 = memref.load %arg3[%c5_5] : memref<49xf32, #tpu.memory_space<smem>>
    %c6_6 = arith.constant 6 : index
    %55 = memref.load %arg3[%c6_6] : memref<49xf32, #tpu.memory_space<smem>>
    %c7_7 = arith.constant 7 : index
    %56 = memref.load %arg3[%c7_7] : memref<49xf32, #tpu.memory_space<smem>>
    %c8_8 = arith.constant 8 : index
    %57 = memref.load %arg3[%c8_8] : memref<49xf32, #tpu.memory_space<smem>>
    %c9_9 = arith.constant 9 : index
    %58 = memref.load %arg3[%c9_9] : memref<49xf32, #tpu.memory_space<smem>>
    %c10_10 = arith.constant 10 : index
    %59 = memref.load %arg3[%c10_10] : memref<49xf32, #tpu.memory_space<smem>>
    %c11_11 = arith.constant 11 : index
    %60 = memref.load %arg3[%c11_11] : memref<49xf32, #tpu.memory_space<smem>>
    %c12_12 = arith.constant 12 : index
    %61 = memref.load %arg3[%c12_12] : memref<49xf32, #tpu.memory_space<smem>>
    %c13_13 = arith.constant 13 : index
    %62 = memref.load %arg3[%c13_13] : memref<49xf32, #tpu.memory_space<smem>>
    %c14_14 = arith.constant 14 : index
    %63 = memref.load %arg3[%c14_14] : memref<49xf32, #tpu.memory_space<smem>>
    %c15_15 = arith.constant 15 : index
    %64 = memref.load %arg3[%c15_15] : memref<49xf32, #tpu.memory_space<smem>>
    %c16_16 = arith.constant 16 : index
    %65 = memref.load %arg3[%c16_16] : memref<49xf32, #tpu.memory_space<smem>>
    %c17_17 = arith.constant 17 : index
    %66 = memref.load %arg3[%c17_17] : memref<49xf32, #tpu.memory_space<smem>>
    %c18_18 = arith.constant 18 : index
    %67 = memref.load %arg3[%c18_18] : memref<49xf32, #tpu.memory_space<smem>>
    %c19_19 = arith.constant 19 : index
    %68 = memref.load %arg3[%c19_19] : memref<49xf32, #tpu.memory_space<smem>>
    %c20_20 = arith.constant 20 : index
    %69 = memref.load %arg3[%c20_20] : memref<49xf32, #tpu.memory_space<smem>>
    %c21_21 = arith.constant 21 : index
    %70 = memref.load %arg3[%c21_21] : memref<49xf32, #tpu.memory_space<smem>>
    %c22_22 = arith.constant 22 : index
    %71 = memref.load %arg3[%c22_22] : memref<49xf32, #tpu.memory_space<smem>>
    %c23_23 = arith.constant 23 : index
    %72 = memref.load %arg3[%c23_23] : memref<49xf32, #tpu.memory_space<smem>>
    %c24_24 = arith.constant 24 : index
    %73 = memref.load %arg3[%c24_24] : memref<49xf32, #tpu.memory_space<smem>>
    %c25_25 = arith.constant 25 : index
    %74 = memref.load %arg3[%c25_25] : memref<49xf32, #tpu.memory_space<smem>>
    %c26_26 = arith.constant 26 : index
    %75 = memref.load %arg3[%c26_26] : memref<49xf32, #tpu.memory_space<smem>>
    %c27_27 = arith.constant 27 : index
    %76 = memref.load %arg3[%c27_27] : memref<49xf32, #tpu.memory_space<smem>>
    %c28_28 = arith.constant 28 : index
    %77 = memref.load %arg3[%c28_28] : memref<49xf32, #tpu.memory_space<smem>>
    %c29_29 = arith.constant 29 : index
    %78 = memref.load %arg3[%c29_29] : memref<49xf32, #tpu.memory_space<smem>>
    %c30_30 = arith.constant 30 : index
    %79 = memref.load %arg3[%c30_30] : memref<49xf32, #tpu.memory_space<smem>>
    %c31_31 = arith.constant 31 : index
    %80 = memref.load %arg3[%c31_31] : memref<49xf32, #tpu.memory_space<smem>>
    %c32_32 = arith.constant 32 : index
    %81 = memref.load %arg3[%c32_32] : memref<49xf32, #tpu.memory_space<smem>>
    %c33_33 = arith.constant 33 : index
    %82 = memref.load %arg3[%c33_33] : memref<49xf32, #tpu.memory_space<smem>>
    %c34_34 = arith.constant 34 : index
    %83 = memref.load %arg3[%c34_34] : memref<49xf32, #tpu.memory_space<smem>>
    %c35_35 = arith.constant 35 : index
    %84 = memref.load %arg3[%c35_35] : memref<49xf32, #tpu.memory_space<smem>>
    %c36_36 = arith.constant 36 : index
    %85 = memref.load %arg3[%c36_36] : memref<49xf32, #tpu.memory_space<smem>>
    %c37_37 = arith.constant 37 : index
    %86 = memref.load %arg3[%c37_37] : memref<49xf32, #tpu.memory_space<smem>>
    %c38_38 = arith.constant 38 : index
    %87 = memref.load %arg3[%c38_38] : memref<49xf32, #tpu.memory_space<smem>>
    %c39_39 = arith.constant 39 : index
    %88 = memref.load %arg3[%c39_39] : memref<49xf32, #tpu.memory_space<smem>>
    %c40_40 = arith.constant 40 : index
    %89 = memref.load %arg3[%c40_40] : memref<49xf32, #tpu.memory_space<smem>>
    %c41_41 = arith.constant 41 : index
    %90 = memref.load %arg3[%c41_41] : memref<49xf32, #tpu.memory_space<smem>>
    %c42_42 = arith.constant 42 : index
    %91 = memref.load %arg3[%c42_42] : memref<49xf32, #tpu.memory_space<smem>>
    %c43_43 = arith.constant 43 : index
    %92 = memref.load %arg3[%c43_43] : memref<49xf32, #tpu.memory_space<smem>>
    %c44_44 = arith.constant 44 : index
    %93 = memref.load %arg3[%c44_44] : memref<49xf32, #tpu.memory_space<smem>>
    %c45_45 = arith.constant 45 : index
    %94 = memref.load %arg3[%c45_45] : memref<49xf32, #tpu.memory_space<smem>>
    %c46_46 = arith.constant 46 : index
    %95 = memref.load %arg3[%c46_46] : memref<49xf32, #tpu.memory_space<smem>>
    %c47_47 = arith.constant 47 : index
    %96 = memref.load %arg3[%c47_47] : memref<49xf32, #tpu.memory_space<smem>>
    %c48_48 = arith.constant 48 : index
    %97 = memref.load %arg3[%c48_48] : memref<49xf32, #tpu.memory_space<smem>>
    %c0_49 = arith.constant 0 : index
    %98 = memref.load %arg4[%c0_49] : memref<1xf32, #tpu.memory_space<smem>>
    %c0_50 = arith.constant 0 : index
    %c0_51 = arith.constant 0 : index
    %c0_52 = arith.constant 0 : index
    %c0_53 = arith.constant 0 : index
    %99 = vector.load %arg1[%c0_50, %c0_51, %c0_52, %c0_53] : memref<2x4x16x16xf32, #tpu.memory_space<vmem>>, vector<1x1x16x16xf32>
    %100 = vector.shape_cast %99 : vector<1x1x16x16xf32> to vector<16x16xf32>
    %c0_54 = arith.constant 0 : index
    %c1_55 = arith.constant 1 : index
    %c0_56 = arith.constant 0 : index
    %c0_57 = arith.constant 0 : index
    %101 = vector.load %arg1[%c0_54, %c1_55, %c0_56, %c0_57] : memref<2x4x16x16xf32, #tpu.memory_space<vmem>>, vector<1x1x16x16xf32>
    %102 = vector.shape_cast %101 : vector<1x1x16x16xf32> to vector<16x16xf32>
    %103 = arith.addf %100, %102 : vector<16x16xf32>
    %104 = arith.maximumf %100, %102 : vector<16x16xf32>
    %c0_58 = arith.constant 0 : index
    %c2_59 = arith.constant 2 : index
    %c0_60 = arith.constant 0 : index
    %c0_61 = arith.constant 0 : index
    %105 = vector.load %arg1[%c0_58, %c2_59, %c0_60, %c0_61] : memref<2x4x16x16xf32, #tpu.memory_space<vmem>>, vector<1x1x16x16xf32>
    %106 = vector.shape_cast %105 : vector<1x1x16x16xf32> to vector<16x16xf32>
    %107 = arith.addf %103, %106 : vector<16x16xf32>
    %108 = arith.maximumf %104, %106 : vector<16x16xf32>
    %c0_62 = arith.constant 0 : index
    %c3_63 = arith.constant 3 : index
    %c0_64 = arith.constant 0 : index
    %c0_65 = arith.constant 0 : index
    %109 = vector.load %arg1[%c0_62, %c3_63, %c0_64, %c0_65] : memref<2x4x16x16xf32, #tpu.memory_space<vmem>>, vector<1x1x16x16xf32>
    %110 = vector.shape_cast %109 : vector<1x1x16x16xf32> to vector<16x16xf32>
    %111 = arith.addf %107, %110 : vector<16x16xf32>
    %112 = arith.maximumf %108, %110 : vector<16x16xf32>
    %c3_66 = arith.constant 3 : index
    %c3_67 = arith.constant 3 : index
    %113 = vector.load %arg6[%c3_66, %c3_67] : memref<22x22xf32, #tpu.memory_space<vmem>>, vector<16x16xf32>
    tpu.vector_store %arg6[%c3_66, %c3_67], %111 {strides = array<i32>} : memref<22x22xf32, #tpu.memory_space<vmem>>, vector<16x16xf32>,
    %c3_68 = arith.constant 3 : index
    %c3_69 = arith.constant 3 : index
    %114 = vector.load %arg7[%c3_68, %c3_69] : memref<22x22xf32, #tpu.memory_space<vmem>>, vector<16x16xf32>
    tpu.vector_store %arg7[%c3_68, %c3_69], %112 {strides = array<i32>} : memref<22x22xf32, #tpu.memory_space<vmem>>, vector<16x16xf32>,
    %c6_70 = arith.constant 6 : index
    %c3_71 = arith.constant 3 : index
    %115 = vector.load %arg6[%c6_70, %c3_71] : memref<22x22xf32, #tpu.memory_space<vmem>>, vector<1x16xf32>
    %c0_72 = arith.constant 0 : index
    %c3_73 = arith.constant 3 : index
    %116 = vector.load %arg6[%c0_72, %c3_73] : memref<22x22xf32, #tpu.memory_space<vmem>>, vector<1x16xf32>
    tpu.vector_store %arg6[%c0_72, %c3_73], %115 {strides = array<i32>} : memref<22x22xf32, #tpu.memory_space<vmem>>, vector<1x16xf32>,
    %c17_74 = arith.constant 17 : index
    %c3_75 = arith.constant 3 : index
    %117 = vector.load %arg6[%c17_74, %c3_75] : memref<22x22xf32, #tpu.memory_space<vmem>>, vector<1x16xf32>
    %c19_76 = arith.constant 19 : index
    %c3_77 = arith.constant 3 : index
    %118 = vector.load %arg6[%c19_76, %c3_77] : memref<22x22xf32, #tpu.memory_space<vmem>>, vector<1x16xf32>
    tpu.vector_store %arg6[%c19_76, %c3_77], %117 {strides = array<i32>} : memref<22x22xf32, #tpu.memory_space<vmem>>, vector<1x16xf32>,
    %c5_78 = arith.constant 5 : index
    %c3_79 = arith.constant 3 : index
    %119 = vector.load %arg6[%c5_78, %c3_79] : memref<22x22xf32, #tpu.memory_space<vmem>>, vector<1x16xf32>
    %c1_80 = arith.constant 1 : index
    %c3_81 = arith.constant 3 : index
    %120 = vector.load %arg6[%c1_80, %c3_81] : memref<22x22xf32, #tpu.memory_space<vmem>>, vector<1x16xf32>
    tpu.vector_store %arg6[%c1_80, %c3_81], %119 {strides = array<i32>} : memref<22x22xf32, #tpu.memory_space<vmem>>, vector<1x16xf32>,
    %c16_82 = arith.constant 16 : index
    %c3_83 = arith.constant 3 : index
    %121 = vector.load %arg6[%c16_82, %c3_83] : memref<22x22xf32, #tpu.memory_space<vmem>>, vector<1x16xf32>
    %c20_84 = arith.constant 20 : index
    %c3_85 = arith.constant 3 : index
    %122 = vector.load %arg6[%c20_84, %c3_85] : memref<22x22xf32, #tpu.memory_space<vmem>>, vector<1x16xf32>
    tpu.vector_store %arg6[%c20_84, %c3_85], %121 {strides = array<i32>} : memref<22x22xf32, #tpu.memory_space<vmem>>, vector<1x16xf32>,
    %c4_86 = arith.constant 4 : index
    %c3_87 = arith.constant 3 : index
    %123 = vector.load %arg6[%c4_86, %c3_87] : memref<22x22xf32, #tpu.memory_space<vmem>>, vector<1x16xf32>
    %c2_88 = arith.constant 2 : index
    %c3_89 = arith.constant 3 : index
    %124 = vector.load %arg6[%c2_88, %c3_89] : memref<22x22xf32, #tpu.memory_space<vmem>>, vector<1x16xf32>
    tpu.vector_store %arg6[%c2_88, %c3_89], %123 {strides = array<i32>} : memref<22x22xf32, #tpu.memory_space<vmem>>, vector<1x16xf32>,
    %c15_90 = arith.constant 15 : index
    %c3_91 = arith.constant 3 : index
    %125 = vector.load %arg6[%c15_90, %c3_91] : memref<22x22xf32, #tpu.memory_space<vmem>>, vector<1x16xf32>
    %c21_92 = arith.constant 21 : index
    %c3_93 = arith.constant 3 : index
    %126 = vector.load %arg6[%c21_92, %c3_93] : memref<22x22xf32, #tpu.memory_space<vmem>>, vector<1x16xf32>
    tpu.vector_store %arg6[%c21_92, %c3_93], %125 {strides = array<i32>} : memref<22x22xf32, #tpu.memory_space<vmem>>, vector<1x16xf32>,
    %c0_94 = arith.constant 0 : index
    %c6_95 = arith.constant 6 : index
    %127 = vector.load %arg6[%c0_94, %c6_95] : memref<22x22xf32, #tpu.memory_space<vmem>>, vector<22x1xf32>
    %c0_96 = arith.constant 0 : index
    %c0_97 = arith.constant 0 : index
    %128 = vector.load %arg6[%c0_96, %c0_97] : memref<22x22xf32, #tpu.memory_space<vmem>>, vector<22x1xf32>
    tpu.vector_store %arg6[%c0_96, %c0_97], %127 {strides = array<i32>} : memref<22x22xf32, #tpu.memory_space<vmem>>, vector<22x1xf32>,
    %c0_98 = arith.constant 0 : index
    %c17_99 = arith.constant 17 : index
    %129 = vector.load %arg6[%c0_98, %c17_99] : memref<22x22xf32, #tpu.memory_space<vmem>>, vector<22x1xf32>
    %c0_100 = arith.constant 0 : index
    %c19_101 = arith.constant 19 : index
    %130 = vector.load %arg6[%c0_100, %c19_101] : memref<22x22xf32, #tpu.memory_space<vmem>>, vector<22x1xf32>
    tpu.vector_store %arg6[%c0_100, %c19_101], %129 {strides = array<i32>} : memref<22x22xf32, #tpu.memory_space<vmem>>, vector<22x1xf32>,
    %c0_102 = arith.constant 0 : index
    %c5_103 = arith.constant 5 : index
    %131 = vector.load %arg6[%c0_102, %c5_103] : memref<22x22xf32, #tpu.memory_space<vmem>>, vector<22x1xf32>
    %c0_104 = arith.constant 0 : index
    %c1_105 = arith.constant 1 : index
    %132 = vector.load %arg6[%c0_104, %c1_105] : memref<22x22xf32, #tpu.memory_space<vmem>>, vector<22x1xf32>
    tpu.vector_store %arg6[%c0_104, %c1_105], %131 {strides = array<i32>} : memref<22x22xf32, #tpu.memory_space<vmem>>, vector<22x1xf32>,
    %c0_106 = arith.constant 0 : index
    %c16_107 = arith.constant 16 : index
    %133 = vector.load %arg6[%c0_106, %c16_107] : memref<22x22xf32, #tpu.memory_space<vmem>>, vector<22x1xf32>
    %c0_108 = arith.constant 0 : index
    %c20_109 = arith.constant 20 : index
    %134 = vector.load %arg6[%c0_108, %c20_109] : memref<22x22xf32, #tpu.memory_space<vmem>>, vector<22x1xf32>
    tpu.vector_store %arg6[%c0_108, %c20_109], %133 {strides = array<i32>} : memref<22x22xf32, #tpu.memory_space<vmem>>, vector<22x1xf32>,
    %c0_110 = arith.constant 0 : index
    %c4_111 = arith.constant 4 : index
    %135 = vector.load %arg6[%c0_110, %c4_111] : memref<22x22xf32, #tpu.memory_space<vmem>>, vector<22x1xf32>
    %c0_112 = arith.constant 0 : index
    %c2_113 = arith.constant 2 : index
    %136 = vector.load %arg6[%c0_112, %c2_113] : memref<22x22xf32, #tpu.memory_space<vmem>>, vector<22x1xf32>
    tpu.vector_store %arg6[%c0_112, %c2_113], %135 {strides = array<i32>} : memref<22x22xf32, #tpu.memory_space<vmem>>, vector<22x1xf32>,
    %c0_114 = arith.constant 0 : index
    %c15_115 = arith.constant 15 : index
    %137 = vector.load %arg6[%c0_114, %c15_115] : memref<22x22xf32, #tpu.memory_space<vmem>>, vector<22x1xf32>
    %c0_116 = arith.constant 0 : index
    %c21_117 = arith.constant 21 : index
    %138 = vector.load %arg6[%c0_116, %c21_117] : memref<22x22xf32, #tpu.memory_space<vmem>>, vector<22x1xf32>
    tpu.vector_store %arg6[%c0_116, %c21_117], %137 {strides = array<i32>} : memref<22x22xf32, #tpu.memory_space<vmem>>, vector<22x1xf32>,
    %c6_118 = arith.constant 6 : index
    %c3_119 = arith.constant 3 : index
    %139 = vector.load %arg7[%c6_118, %c3_119] : memref<22x22xf32, #tpu.memory_space<vmem>>, vector<1x16xf32>
    %c0_120 = arith.constant 0 : index
    %c3_121 = arith.constant 3 : index
    %140 = vector.load %arg7[%c0_120, %c3_121] : memref<22x22xf32, #tpu.memory_space<vmem>>, vector<1x16xf32>
    tpu.vector_store %arg7[%c0_120, %c3_121], %139 {strides = array<i32>} : memref<22x22xf32, #tpu.memory_space<vmem>>, vector<1x16xf32>,
    %c17_122 = arith.constant 17 : index
    %c3_123 = arith.constant 3 : index
    %141 = vector.load %arg7[%c17_122, %c3_123] : memref<22x22xf32, #tpu.memory_space<vmem>>, vector<1x16xf32>
    %c19_124 = arith.constant 19 : index
    %c3_125 = arith.constant 3 : index
    %142 = vector.load %arg7[%c19_124, %c3_125] : memref<22x22xf32, #tpu.memory_space<vmem>>, vector<1x16xf32>
    tpu.vector_store %arg7[%c19_124, %c3_125], %141 {strides = array<i32>} : memref<22x22xf32, #tpu.memory_space<vmem>>, vector<1x16xf32>,
    %c5_126 = arith.constant 5 : index
    %c3_127 = arith.constant 3 : index
    %143 = vector.load %arg7[%c5_126, %c3_127] : memref<22x22xf32, #tpu.memory_space<vmem>>, vector<1x16xf32>
    %c1_128 = arith.constant 1 : index
    %c3_129 = arith.constant 3 : index
    %144 = vector.load %arg7[%c1_128, %c3_129] : memref<22x22xf32, #tpu.memory_space<vmem>>, vector<1x16xf32>
    tpu.vector_store %arg7[%c1_128, %c3_129], %143 {strides = array<i32>} : memref<22x22xf32, #tpu.memory_space<vmem>>, vector<1x16xf32>,
    %c16_130 = arith.constant 16 : index
    %c3_131 = arith.constant 3 : index
    %145 = vector.load %arg7[%c16_130, %c3_131] : memref<22x22xf32, #tpu.memory_space<vmem>>, vector<1x16xf32>
    %c20_132 = arith.constant 20 : index
    %c3_133 = arith.constant 3 : index
    %146 = vector.load %arg7[%c20_132, %c3_133] : memref<22x22xf32, #tpu.memory_space<vmem>>, vector<1x16xf32>
    tpu.vector_store %arg7[%c20_132, %c3_133], %145 {strides = array<i32>} : memref<22x22xf32, #tpu.memory_space<vmem>>, vector<1x16xf32>,
    %c4_134 = arith.constant 4 : index
    %c3_135 = arith.constant 3 : index
    %147 = vector.load %arg7[%c4_134, %c3_135] : memref<22x22xf32, #tpu.memory_space<vmem>>, vector<1x16xf32>
    %c2_136 = arith.constant 2 : index
    %c3_137 = arith.constant 3 : index
    %148 = vector.load %arg7[%c2_136, %c3_137] : memref<22x22xf32, #tpu.memory_space<vmem>>, vector<1x16xf32>
    tpu.vector_store %arg7[%c2_136, %c3_137], %147 {strides = array<i32>} : memref<22x22xf32, #tpu.memory_space<vmem>>, vector<1x16xf32>,
    %c15_138 = arith.constant 15 : index
    %c3_139 = arith.constant 3 : index
    %149 = vector.load %arg7[%c15_138, %c3_139] : memref<22x22xf32, #tpu.memory_space<vmem>>, vector<1x16xf32>
    %c21_140 = arith.constant 21 : index
    %c3_141 = arith.constant 3 : index
    %150 = vector.load %arg7[%c21_140, %c3_141] : memref<22x22xf32, #tpu.memory_space<vmem>>, vector<1x16xf32>
    tpu.vector_store %arg7[%c21_140, %c3_141], %149 {strides = array<i32>} : memref<22x22xf32, #tpu.memory_space<vmem>>, vector<1x16xf32>,
    %c0_142 = arith.constant 0 : index
    %c6_143 = arith.constant 6 : index
    %151 = vector.load %arg7[%c0_142, %c6_143] : memref<22x22xf32, #tpu.memory_space<vmem>>, vector<22x1xf32>
    %c0_144 = arith.constant 0 : index
    %c0_145 = arith.constant 0 : index
    %152 = vector.load %arg7[%c0_144, %c0_145] : memref<22x22xf32, #tpu.memory_space<vmem>>, vector<22x1xf32>
    tpu.vector_store %arg7[%c0_144, %c0_145], %151 {strides = array<i32>} : memref<22x22xf32, #tpu.memory_space<vmem>>, vector<22x1xf32>,
    %c0_146 = arith.constant 0 : index
    %c17_147 = arith.constant 17 : index
    %153 = vector.load %arg7[%c0_146, %c17_147] : memref<22x22xf32, #tpu.memory_space<vmem>>, vector<22x1xf32>
    %c0_148 = arith.constant 0 : index
    %c19_149 = arith.constant 19 : index
    %154 = vector.load %arg7[%c0_148, %c19_149] : memref<22x22xf32, #tpu.memory_space<vmem>>, vector<22x1xf32>
    tpu.vector_store %arg7[%c0_148, %c19_149], %153 {strides = array<i32>} : memref<22x22xf32, #tpu.memory_space<vmem>>, vector<22x1xf32>,
    %c0_150 = arith.constant 0 : index
    %c5_151 = arith.constant 5 : index
    %155 = vector.load %arg7[%c0_150, %c5_151] : memref<22x22xf32, #tpu.memory_space<vmem>>, vector<22x1xf32>
    %c0_152 = arith.constant 0 : index
    %c1_153 = arith.constant 1 : index
    %156 = vector.load %arg7[%c0_152, %c1_153] : memref<22x22xf32, #tpu.memory_space<vmem>>, vector<22x1xf32>
    tpu.vector_store %arg7[%c0_152, %c1_153], %155 {strides = array<i32>} : memref<22x22xf32, #tpu.memory_space<vmem>>, vector<22x1xf32>,
    %c0_154 = arith.constant 0 : index
    %c16_155 = arith.constant 16 : index
    %157 = vector.load %arg7[%c0_154, %c16_155] : memref<22x22xf32, #tpu.memory_space<vmem>>, vector<22x1xf32>
    %c0_156 = arith.constant 0 : index
    %c20_157 = arith.constant 20 : index
    %158 = vector.load %arg7[%c0_156, %c20_157] : memref<22x22xf32, #tpu.memory_space<vmem>>, vector<22x1xf32>
    tpu.vector_store %arg7[%c0_156, %c20_157], %157 {strides = array<i32>} : memref<22x22xf32, #tpu.memory_space<vmem>>, vector<22x1xf32>,
    %c0_158 = arith.constant 0 : index
    %c4_159 = arith.constant 4 : index
    %159 = vector.load %arg7[%c0_158, %c4_159] : memref<22x22xf32, #tpu.memory_space<vmem>>, vector<22x1xf32>
    %c0_160 = arith.constant 0 : index
    %c2_161 = arith.constant 2 : index
    %160 = vector.load %arg7[%c0_160, %c2_161] : memref<22x22xf32, #tpu.memory_space<vmem>>, vector<22x1xf32>
    tpu.vector_store %arg7[%c0_160, %c2_161], %159 {strides = array<i32>} : memref<22x22xf32, #tpu.memory_space<vmem>>, vector<22x1xf32>,
    %c0_162 = arith.constant 0 : index
    %c15_163 = arith.constant 15 : index
    %161 = vector.load %arg7[%c0_162, %c15_163] : memref<22x22xf32, #tpu.memory_space<vmem>>, vector<22x1xf32>
    %c0_164 = arith.constant 0 : index
    %c21_165 = arith.constant 21 : index
    %162 = vector.load %arg7[%c0_164, %c21_165] : memref<22x22xf32, #tpu.memory_space<vmem>>, vector<22x1xf32>
    tpu.vector_store %arg7[%c0_164, %c21_165], %161 {strides = array<i32>} : memref<22x22xf32, #tpu.memory_space<vmem>>, vector<22x1xf32>,
    %c0_166 = arith.constant 0 : index
    %c0_167 = arith.constant 0 : index
    %163 = vector.load %arg6[%c0_166, %c0_167] : memref<22x22xf32, #tpu.memory_space<vmem>>, vector<16x22xf32>
    %c0_168 = arith.constant 0 : index
    %c0_169 = arith.constant 0 : index
    %164 = vector.load %arg7[%c0_168, %c0_169] : memref<22x22xf32, #tpu.memory_space<vmem>>, vector<16x22xf32>
    %165 = vector.extract_strided_slice %163 {offsets = [0, 0], sizes = [16, 16], strides = [1, 1]} : vector<16x22xf32> to vector<16x16xf32>
    %166 = vector.broadcast %0 : f32 to vector<16x16xf32>
    %167 = arith.mulf %165, %166 : vector<16x16xf32>
    %168 = vector.extract_strided_slice %164 {offsets = [0, 0], sizes = [16, 16], strides = [1, 1]} : vector<16x22xf32> to vector<16x16xf32>
    %169 = vector.broadcast %49 : f32 to vector<16x16xf32>
    %170 = arith.mulf %168, %169 : vector<16x16xf32>
    %171 = arith.addf %167, %170 : vector<16x16xf32>
    %172 = vector.extract_strided_slice %163 {offsets = [0, 1], sizes = [16, 16], strides = [1, 1]} : vector<16x22xf32> to vector<16x16xf32>
    %173 = vector.broadcast %1 : f32 to vector<16x16xf32>
    %174 = arith.mulf %172, %173 : vector<16x16xf32>
    %175 = vector.extract_strided_slice %164 {offsets = [0, 1], sizes = [16, 16], strides = [1, 1]} : vector<16x22xf32> to vector<16x16xf32>
    %176 = vector.broadcast %50 : f32 to vector<16x16xf32>
    %177 = arith.mulf %175, %176 : vector<16x16xf32>
    %178 = arith.addf %174, %177 : vector<16x16xf32>
    %179 = arith.addf %171, %178 : vector<16x16xf32>
    %180 = vector.extract_strided_slice %163 {offsets = [0, 2], sizes = [16, 16], strides = [1, 1]} : vector<16x22xf32> to vector<16x16xf32>
    %181 = vector.broadcast %2 : f32 to vector<16x16xf32>
    %182 = arith.mulf %180, %181 : vector<16x16xf32>
    %183 = vector.extract_strided_slice %164 {offsets = [0, 2], sizes = [16, 16], strides = [1, 1]} : vector<16x22xf32> to vector<16x16xf32>
    %184 = vector.broadcast %51 : f32 to vector<16x16xf32>
    %185 = arith.mulf %183, %184 : vector<16x16xf32>
    %186 = arith.addf %182, %185 : vector<16x16xf32>
    %187 = arith.addf %179, %186 : vector<16x16xf32>
    %188 = vector.extract_strided_slice %163 {offsets = [0, 3], sizes = [16, 16], strides = [1, 1]} : vector<16x22xf32> to vector<16x16xf32>
    %189 = vector.broadcast %3 : f32 to vector<16x16xf32>
    %190 = arith.mulf %188, %189 : vector<16x16xf32>
    %191 = vector.extract_strided_slice %164 {offsets = [0, 3], sizes = [16, 16], strides = [1, 1]} : vector<16x22xf32> to vector<16x16xf32>
    %192 = vector.broadcast %52 : f32 to vector<16x16xf32>
    %193 = arith.mulf %191, %192 : vector<16x16xf32>
    %194 = arith.addf %190, %193 : vector<16x16xf32>
    %195 = arith.addf %187, %194 : vector<16x16xf32>
    %196 = vector.extract_strided_slice %163 {offsets = [0, 4], sizes = [16, 16], strides = [1, 1]} : vector<16x22xf32> to vector<16x16xf32>
    %197 = vector.broadcast %4 : f32 to vector<16x16xf32>
    %198 = arith.mulf %196, %197 : vector<16x16xf32>
    %199 = vector.extract_strided_slice %164 {offsets = [0, 4], sizes = [16, 16], strides = [1, 1]} : vector<16x22xf32> to vector<16x16xf32>
    %200 = vector.broadcast %53 : f32 to vector<16x16xf32>
    %201 = arith.mulf %199, %200 : vector<16x16xf32>
    %202 = arith.addf %198, %201 : vector<16x16xf32>
    %203 = arith.addf %195, %202 : vector<16x16xf32>
    %204 = vector.extract_strided_slice %163 {offsets = [0, 5], sizes = [16, 16], strides = [1, 1]} : vector<16x22xf32> to vector<16x16xf32>
    %205 = vector.broadcast %5 : f32 to vector<16x16xf32>
    %206 = arith.mulf %204, %205 : vector<16x16xf32>
    %207 = vector.extract_strided_slice %164 {offsets = [0, 5], sizes = [16, 16], strides = [1, 1]} : vector<16x22xf32> to vector<16x16xf32>
    %208 = vector.broadcast %54 : f32 to vector<16x16xf32>
    %209 = arith.mulf %207, %208 : vector<16x16xf32>
    %210 = arith.addf %206, %209 : vector<16x16xf32>
    %211 = arith.addf %203, %210 : vector<16x16xf32>
    %212 = vector.extract_strided_slice %163 {offsets = [0, 6], sizes = [16, 16], strides = [1, 1]} : vector<16x22xf32> to vector<16x16xf32>
    %213 = vector.broadcast %6 : f32 to vector<16x16xf32>
    %214 = arith.mulf %212, %213 : vector<16x16xf32>
    %215 = vector.extract_strided_slice %164 {offsets = [0, 6], sizes = [16, 16], strides = [1, 1]} : vector<16x22xf32> to vector<16x16xf32>
    %216 = vector.broadcast %55 : f32 to vector<16x16xf32>
    %217 = arith.mulf %215, %216 : vector<16x16xf32>
    %218 = arith.addf %214, %217 : vector<16x16xf32>
    %219 = arith.addf %211, %218 : vector<16x16xf32>
    %c1_170 = arith.constant 1 : index
    %c0_171 = arith.constant 0 : index
    %220 = vector.load %arg6[%c1_170, %c0_171] : memref<22x22xf32, #tpu.memory_space<vmem>>, vector<16x22xf32>
    %c1_172 = arith.constant 1 : index
    %c0_173 = arith.constant 0 : index
    %221 = vector.load %arg7[%c1_172, %c0_173] : memref<22x22xf32, #tpu.memory_space<vmem>>, vector<16x22xf32>
    %222 = vector.extract_strided_slice %220 {offsets = [0, 0], sizes = [16, 16], strides = [1, 1]} : vector<16x22xf32> to vector<16x16xf32>
    %223 = vector.broadcast %7 : f32 to vector<16x16xf32>
    %224 = arith.mulf %222, %223 : vector<16x16xf32>
    %225 = vector.extract_strided_slice %221 {offsets = [0, 0], sizes = [16, 16], strides = [1, 1]} : vector<16x22xf32> to vector<16x16xf32>
    %226 = vector.broadcast %56 : f32 to vector<16x16xf32>
    %227 = arith.mulf %225, %226 : vector<16x16xf32>
    %228 = arith.addf %224, %227 : vector<16x16xf32>
    %229 = vector.extract_strided_slice %220 {offsets = [0, 1], sizes = [16, 16], strides = [1, 1]} : vector<16x22xf32> to vector<16x16xf32>
    %230 = vector.broadcast %8 : f32 to vector<16x16xf32>
    %231 = arith.mulf %229, %230 : vector<16x16xf32>
    %232 = vector.extract_strided_slice %221 {offsets = [0, 1], sizes = [16, 16], strides = [1, 1]} : vector<16x22xf32> to vector<16x16xf32>
    %233 = vector.broadcast %57 : f32 to vector<16x16xf32>
    %234 = arith.mulf %232, %233 : vector<16x16xf32>
    %235 = arith.addf %231, %234 : vector<16x16xf32>
    %236 = arith.addf %228, %235 : vector<16x16xf32>
    %237 = vector.extract_strided_slice %220 {offsets = [0, 2], sizes = [16, 16], strides = [1, 1]} : vector<16x22xf32> to vector<16x16xf32>
    %238 = vector.broadcast %9 : f32 to vector<16x16xf32>
    %239 = arith.mulf %237, %238 : vector<16x16xf32>
    %240 = vector.extract_strided_slice %221 {offsets = [0, 2], sizes = [16, 16], strides = [1, 1]} : vector<16x22xf32> to vector<16x16xf32>
    %241 = vector.broadcast %58 : f32 to vector<16x16xf32>
    %242 = arith.mulf %240, %241 : vector<16x16xf32>
    %243 = arith.addf %239, %242 : vector<16x16xf32>
    %244 = arith.addf %236, %243 : vector<16x16xf32>
    %245 = vector.extract_strided_slice %220 {offsets = [0, 3], sizes = [16, 16], strides = [1, 1]} : vector<16x22xf32> to vector<16x16xf32>
    %246 = vector.broadcast %10 : f32 to vector<16x16xf32>
    %247 = arith.mulf %245, %246 : vector<16x16xf32>
    %248 = vector.extract_strided_slice %221 {offsets = [0, 3], sizes = [16, 16], strides = [1, 1]} : vector<16x22xf32> to vector<16x16xf32>
    %249 = vector.broadcast %59 : f32 to vector<16x16xf32>
    %250 = arith.mulf %248, %249 : vector<16x16xf32>
    %251 = arith.addf %247, %250 : vector<16x16xf32>
    %252 = arith.addf %244, %251 : vector<16x16xf32>
    %253 = vector.extract_strided_slice %220 {offsets = [0, 4], sizes = [16, 16], strides = [1, 1]} : vector<16x22xf32> to vector<16x16xf32>
    %254 = vector.broadcast %11 : f32 to vector<16x16xf32>
    %255 = arith.mulf %253, %254 : vector<16x16xf32>
    %256 = vector.extract_strided_slice %221 {offsets = [0, 4], sizes = [16, 16], strides = [1, 1]} : vector<16x22xf32> to vector<16x16xf32>
    %257 = vector.broadcast %60 : f32 to vector<16x16xf32>
    %258 = arith.mulf %256, %257 : vector<16x16xf32>
    %259 = arith.addf %255, %258 : vector<16x16xf32>
    %260 = arith.addf %252, %259 : vector<16x16xf32>
    %261 = vector.extract_strided_slice %220 {offsets = [0, 5], sizes = [16, 16], strides = [1, 1]} : vector<16x22xf32> to vector<16x16xf32>
    %262 = vector.broadcast %12 : f32 to vector<16x16xf32>
    %263 = arith.mulf %261, %262 : vector<16x16xf32>
    %264 = vector.extract_strided_slice %221 {offsets = [0, 5], sizes = [16, 16], strides = [1, 1]} : vector<16x22xf32> to vector<16x16xf32>
    %265 = vector.broadcast %61 : f32 to vector<16x16xf32>
    %266 = arith.mulf %264, %265 : vector<16x16xf32>
    %267 = arith.addf %263, %266 : vector<16x16xf32>
    %268 = arith.addf %260, %267 : vector<16x16xf32>
    %269 = vector.extract_strided_slice %220 {offsets = [0, 6], sizes = [16, 16], strides = [1, 1]} : vector<16x22xf32> to vector<16x16xf32>
    %270 = vector.broadcast %13 : f32 to vector<16x16xf32>
    %271 = arith.mulf %269, %270 : vector<16x16xf32>
    %272 = vector.extract_strided_slice %221 {offsets = [0, 6], sizes = [16, 16], strides = [1, 1]} : vector<16x22xf32> to vector<16x16xf32>
    %273 = vector.broadcast %62 : f32 to vector<16x16xf32>
    %274 = arith.mulf %272, %273 : vector<16x16xf32>
    %275 = arith.addf %271, %274 : vector<16x16xf32>
    %276 = arith.addf %268, %275 : vector<16x16xf32>
    %c2_174 = arith.constant 2 : index
    %c0_175 = arith.constant 0 : index
    %277 = vector.load %arg6[%c2_174, %c0_175] : memref<22x22xf32, #tpu.memory_space<vmem>>, vector<16x22xf32>
    %c2_176 = arith.constant 2 : index
    %c0_177 = arith.constant 0 : index
    %278 = vector.load %arg7[%c2_176, %c0_177] : memref<22x22xf32, #tpu.memory_space<vmem>>, vector<16x22xf32>
    %279 = vector.extract_strided_slice %277 {offsets = [0, 0], sizes = [16, 16], strides = [1, 1]} : vector<16x22xf32> to vector<16x16xf32>
    %280 = vector.broadcast %14 : f32 to vector<16x16xf32>
    %281 = arith.mulf %279, %280 : vector<16x16xf32>
    %282 = vector.extract_strided_slice %278 {offsets = [0, 0], sizes = [16, 16], strides = [1, 1]} : vector<16x22xf32> to vector<16x16xf32>
    %283 = vector.broadcast %63 : f32 to vector<16x16xf32>
    %284 = arith.mulf %282, %283 : vector<16x16xf32>
    %285 = arith.addf %281, %284 : vector<16x16xf32>
    %286 = vector.extract_strided_slice %277 {offsets = [0, 1], sizes = [16, 16], strides = [1, 1]} : vector<16x22xf32> to vector<16x16xf32>
    %287 = vector.broadcast %15 : f32 to vector<16x16xf32>
    %288 = arith.mulf %286, %287 : vector<16x16xf32>
    %289 = vector.extract_strided_slice %278 {offsets = [0, 1], sizes = [16, 16], strides = [1, 1]} : vector<16x22xf32> to vector<16x16xf32>
    %290 = vector.broadcast %64 : f32 to vector<16x16xf32>
    %291 = arith.mulf %289, %290 : vector<16x16xf32>
    %292 = arith.addf %288, %291 : vector<16x16xf32>
    %293 = arith.addf %285, %292 : vector<16x16xf32>
    %294 = vector.extract_strided_slice %277 {offsets = [0, 2], sizes = [16, 16], strides = [1, 1]} : vector<16x22xf32> to vector<16x16xf32>
    %295 = vector.broadcast %16 : f32 to vector<16x16xf32>
    %296 = arith.mulf %294, %295 : vector<16x16xf32>
    %297 = vector.extract_strided_slice %278 {offsets = [0, 2], sizes = [16, 16], strides = [1, 1]} : vector<16x22xf32> to vector<16x16xf32>
    %298 = vector.broadcast %65 : f32 to vector<16x16xf32>
    %299 = arith.mulf %297, %298 : vector<16x16xf32>
    %300 = arith.addf %296, %299 : vector<16x16xf32>
    %301 = arith.addf %293, %300 : vector<16x16xf32>
    %302 = vector.extract_strided_slice %277 {offsets = [0, 3], sizes = [16, 16], strides = [1, 1]} : vector<16x22xf32> to vector<16x16xf32>
    %303 = vector.broadcast %17 : f32 to vector<16x16xf32>
    %304 = arith.mulf %302, %303 : vector<16x16xf32>
    %305 = vector.extract_strided_slice %278 {offsets = [0, 3], sizes = [16, 16], strides = [1, 1]} : vector<16x22xf32> to vector<16x16xf32>
    %306 = vector.broadcast %66 : f32 to vector<16x16xf32>
    %307 = arith.mulf %305, %306 : vector<16x16xf32>
    %308 = arith.addf %304, %307 : vector<16x16xf32>
    %309 = arith.addf %301, %308 : vector<16x16xf32>
    %310 = vector.extract_strided_slice %277 {offsets = [0, 4], sizes = [16, 16], strides = [1, 1]} : vector<16x22xf32> to vector<16x16xf32>
    %311 = vector.broadcast %18 : f32 to vector<16x16xf32>
    %312 = arith.mulf %310, %311 : vector<16x16xf32>
    %313 = vector.extract_strided_slice %278 {offsets = [0, 4], sizes = [16, 16], strides = [1, 1]} : vector<16x22xf32> to vector<16x16xf32>
    %314 = vector.broadcast %67 : f32 to vector<16x16xf32>
    %315 = arith.mulf %313, %314 : vector<16x16xf32>
    %316 = arith.addf %312, %315 : vector<16x16xf32>
    %317 = arith.addf %309, %316 : vector<16x16xf32>
    %318 = vector.extract_strided_slice %277 {offsets = [0, 5], sizes = [16, 16], strides = [1, 1]} : vector<16x22xf32> to vector<16x16xf32>
    %319 = vector.broadcast %19 : f32 to vector<16x16xf32>
    %320 = arith.mulf %318, %319 : vector<16x16xf32>
    %321 = vector.extract_strided_slice %278 {offsets = [0, 5], sizes = [16, 16], strides = [1, 1]} : vector<16x22xf32> to vector<16x16xf32>
    %322 = vector.broadcast %68 : f32 to vector<16x16xf32>
    %323 = arith.mulf %321, %322 : vector<16x16xf32>
    %324 = arith.addf %320, %323 : vector<16x16xf32>
    %325 = arith.addf %317, %324 : vector<16x16xf32>
    %326 = vector.extract_strided_slice %277 {offsets = [0, 6], sizes = [16, 16], strides = [1, 1]} : vector<16x22xf32> to vector<16x16xf32>
    %327 = vector.broadcast %20 : f32 to vector<16x16xf32>
    %328 = arith.mulf %326, %327 : vector<16x16xf32>
    %329 = vector.extract_strided_slice %278 {offsets = [0, 6], sizes = [16, 16], strides = [1, 1]} : vector<16x22xf32> to vector<16x16xf32>
    %330 = vector.broadcast %69 : f32 to vector<16x16xf32>
    %331 = arith.mulf %329, %330 : vector<16x16xf32>
    %332 = arith.addf %328, %331 : vector<16x16xf32>
    %333 = arith.addf %325, %332 : vector<16x16xf32>
    %334 = arith.addf %219, %333 : vector<16x16xf32>
    %c3_178 = arith.constant 3 : index
    %c0_179 = arith.constant 0 : index
    %335 = vector.load %arg6[%c3_178, %c0_179] : memref<22x22xf32, #tpu.memory_space<vmem>>, vector<16x22xf32>
    %c3_180 = arith.constant 3 : index
    %c0_181 = arith.constant 0 : index
    %336 = vector.load %arg7[%c3_180, %c0_181] : memref<22x22xf32, #tpu.memory_space<vmem>>, vector<16x22xf32>
    %337 = vector.extract_strided_slice %335 {offsets = [0, 0], sizes = [16, 16], strides = [1, 1]} : vector<16x22xf32> to vector<16x16xf32>
    %338 = vector.broadcast %21 : f32 to vector<16x16xf32>
    %339 = arith.mulf %337, %338 : vector<16x16xf32>
    %340 = vector.extract_strided_slice %336 {offsets = [0, 0], sizes = [16, 16], strides = [1, 1]} : vector<16x22xf32> to vector<16x16xf32>
    %341 = vector.broadcast %70 : f32 to vector<16x16xf32>
    %342 = arith.mulf %340, %341 : vector<16x16xf32>
    %343 = arith.addf %339, %342 : vector<16x16xf32>
    %344 = vector.extract_strided_slice %335 {offsets = [0, 1], sizes = [16, 16], strides = [1, 1]} : vector<16x22xf32> to vector<16x16xf32>
    %345 = vector.broadcast %22 : f32 to vector<16x16xf32>
    %346 = arith.mulf %344, %345 : vector<16x16xf32>
    %347 = vector.extract_strided_slice %336 {offsets = [0, 1], sizes = [16, 16], strides = [1, 1]} : vector<16x22xf32> to vector<16x16xf32>
    %348 = vector.broadcast %71 : f32 to vector<16x16xf32>
    %349 = arith.mulf %347, %348 : vector<16x16xf32>
    %350 = arith.addf %346, %349 : vector<16x16xf32>
    %351 = arith.addf %343, %350 : vector<16x16xf32>
    %352 = vector.extract_strided_slice %335 {offsets = [0, 2], sizes = [16, 16], strides = [1, 1]} : vector<16x22xf32> to vector<16x16xf32>
    %353 = vector.broadcast %23 : f32 to vector<16x16xf32>
    %354 = arith.mulf %352, %353 : vector<16x16xf32>
    %355 = vector.extract_strided_slice %336 {offsets = [0, 2], sizes = [16, 16], strides = [1, 1]} : vector<16x22xf32> to vector<16x16xf32>
    %356 = vector.broadcast %72 : f32 to vector<16x16xf32>
    %357 = arith.mulf %355, %356 : vector<16x16xf32>
    %358 = arith.addf %354, %357 : vector<16x16xf32>
    %359 = arith.addf %351, %358 : vector<16x16xf32>
    %360 = vector.extract_strided_slice %335 {offsets = [0, 3], sizes = [16, 16], strides = [1, 1]} : vector<16x22xf32> to vector<16x16xf32>
    %361 = vector.broadcast %24 : f32 to vector<16x16xf32>
    %362 = arith.mulf %360, %361 : vector<16x16xf32>
    %363 = vector.extract_strided_slice %336 {offsets = [0, 3], sizes = [16, 16], strides = [1, 1]} : vector<16x22xf32> to vector<16x16xf32>
    %364 = vector.broadcast %73 : f32 to vector<16x16xf32>
    %365 = arith.mulf %363, %364 : vector<16x16xf32>
    %366 = arith.addf %362, %365 : vector<16x16xf32>
    %367 = arith.addf %359, %366 : vector<16x16xf32>
    %368 = vector.extract_strided_slice %335 {offsets = [0, 4], sizes = [16, 16], strides = [1, 1]} : vector<16x22xf32> to vector<16x16xf32>
    %369 = vector.broadcast %25 : f32 to vector<16x16xf32>
    %370 = arith.mulf %368, %369 : vector<16x16xf32>
    %371 = vector.extract_strided_slice %336 {offsets = [0, 4], sizes = [16, 16], strides = [1, 1]} : vector<16x22xf32> to vector<16x16xf32>
    %372 = vector.broadcast %74 : f32 to vector<16x16xf32>
    %373 = arith.mulf %371, %372 : vector<16x16xf32>
    %374 = arith.addf %370, %373 : vector<16x16xf32>
    %375 = arith.addf %367, %374 : vector<16x16xf32>
    %376 = vector.extract_strided_slice %335 {offsets = [0, 5], sizes = [16, 16], strides = [1, 1]} : vector<16x22xf32> to vector<16x16xf32>
    %377 = vector.broadcast %26 : f32 to vector<16x16xf32>
    %378 = arith.mulf %376, %377 : vector<16x16xf32>
    %379 = vector.extract_strided_slice %336 {offsets = [0, 5], sizes = [16, 16], strides = [1, 1]} : vector<16x22xf32> to vector<16x16xf32>
    %380 = vector.broadcast %75 : f32 to vector<16x16xf32>
    %381 = arith.mulf %379, %380 : vector<16x16xf32>
    %382 = arith.addf %378, %381 : vector<16x16xf32>
    %383 = arith.addf %375, %382 : vector<16x16xf32>
    %384 = vector.extract_strided_slice %335 {offsets = [0, 6], sizes = [16, 16], strides = [1, 1]} : vector<16x22xf32> to vector<16x16xf32>
    %385 = vector.broadcast %27 : f32 to vector<16x16xf32>
    %386 = arith.mulf %384, %385 : vector<16x16xf32>
    %387 = vector.extract_strided_slice %336 {offsets = [0, 6], sizes = [16, 16], strides = [1, 1]} : vector<16x22xf32> to vector<16x16xf32>
    %388 = vector.broadcast %76 : f32 to vector<16x16xf32>
    %389 = arith.mulf %387, %388 : vector<16x16xf32>
    %390 = arith.addf %386, %389 : vector<16x16xf32>
    %391 = arith.addf %383, %390 : vector<16x16xf32>
    %392 = arith.addf %276, %391 : vector<16x16xf32>
    %c4_182 = arith.constant 4 : index
    %c0_183 = arith.constant 0 : index
    %393 = vector.load %arg6[%c4_182, %c0_183] : memref<22x22xf32, #tpu.memory_space<vmem>>, vector<16x22xf32>
    %c4_184 = arith.constant 4 : index
    %c0_185 = arith.constant 0 : index
    %394 = vector.load %arg7[%c4_184, %c0_185] : memref<22x22xf32, #tpu.memory_space<vmem>>, vector<16x22xf32>
    %395 = vector.extract_strided_slice %393 {offsets = [0, 0], sizes = [16, 16], strides = [1, 1]} : vector<16x22xf32> to vector<16x16xf32>
    %396 = vector.broadcast %28 : f32 to vector<16x16xf32>
    %397 = arith.mulf %395, %396 : vector<16x16xf32>
    %398 = vector.extract_strided_slice %394 {offsets = [0, 0], sizes = [16, 16], strides = [1, 1]} : vector<16x22xf32> to vector<16x16xf32>
    %399 = vector.broadcast %77 : f32 to vector<16x16xf32>
    %400 = arith.mulf %398, %399 : vector<16x16xf32>
    %401 = arith.addf %397, %400 : vector<16x16xf32>
    %402 = vector.extract_strided_slice %393 {offsets = [0, 1], sizes = [16, 16], strides = [1, 1]} : vector<16x22xf32> to vector<16x16xf32>
    %403 = vector.broadcast %29 : f32 to vector<16x16xf32>
    %404 = arith.mulf %402, %403 : vector<16x16xf32>
    %405 = vector.extract_strided_slice %394 {offsets = [0, 1], sizes = [16, 16], strides = [1, 1]} : vector<16x22xf32> to vector<16x16xf32>
    %406 = vector.broadcast %78 : f32 to vector<16x16xf32>
    %407 = arith.mulf %405, %406 : vector<16x16xf32>
    %408 = arith.addf %404, %407 : vector<16x16xf32>
    %409 = arith.addf %401, %408 : vector<16x16xf32>
    %410 = vector.extract_strided_slice %393 {offsets = [0, 2], sizes = [16, 16], strides = [1, 1]} : vector<16x22xf32> to vector<16x16xf32>
    %411 = vector.broadcast %30 : f32 to vector<16x16xf32>
    %412 = arith.mulf %410, %411 : vector<16x16xf32>
    %413 = vector.extract_strided_slice %394 {offsets = [0, 2], sizes = [16, 16], strides = [1, 1]} : vector<16x22xf32> to vector<16x16xf32>
    %414 = vector.broadcast %79 : f32 to vector<16x16xf32>
    %415 = arith.mulf %413, %414 : vector<16x16xf32>
    %416 = arith.addf %412, %415 : vector<16x16xf32>
    %417 = arith.addf %409, %416 : vector<16x16xf32>
    %418 = vector.extract_strided_slice %393 {offsets = [0, 3], sizes = [16, 16], strides = [1, 1]} : vector<16x22xf32> to vector<16x16xf32>
    %419 = vector.broadcast %31 : f32 to vector<16x16xf32>
    %420 = arith.mulf %418, %419 : vector<16x16xf32>
    %421 = vector.extract_strided_slice %394 {offsets = [0, 3], sizes = [16, 16], strides = [1, 1]} : vector<16x22xf32> to vector<16x16xf32>
    %422 = vector.broadcast %80 : f32 to vector<16x16xf32>
    %423 = arith.mulf %421, %422 : vector<16x16xf32>
    %424 = arith.addf %420, %423 : vector<16x16xf32>
    %425 = arith.addf %417, %424 : vector<16x16xf32>
    %426 = vector.extract_strided_slice %393 {offsets = [0, 4], sizes = [16, 16], strides = [1, 1]} : vector<16x22xf32> to vector<16x16xf32>
    %427 = vector.broadcast %32 : f32 to vector<16x16xf32>
    %428 = arith.mulf %426, %427 : vector<16x16xf32>
    %429 = vector.extract_strided_slice %394 {offsets = [0, 4], sizes = [16, 16], strides = [1, 1]} : vector<16x22xf32> to vector<16x16xf32>
    %430 = vector.broadcast %81 : f32 to vector<16x16xf32>
    %431 = arith.mulf %429, %430 : vector<16x16xf32>
    %432 = arith.addf %428, %431 : vector<16x16xf32>
    %433 = arith.addf %425, %432 : vector<16x16xf32>
    %434 = vector.extract_strided_slice %393 {offsets = [0, 5], sizes = [16, 16], strides = [1, 1]} : vector<16x22xf32> to vector<16x16xf32>
    %435 = vector.broadcast %33 : f32 to vector<16x16xf32>
    %436 = arith.mulf %434, %435 : vector<16x16xf32>
    %437 = vector.extract_strided_slice %394 {offsets = [0, 5], sizes = [16, 16], strides = [1, 1]} : vector<16x22xf32> to vector<16x16xf32>
    %438 = vector.broadcast %82 : f32 to vector<16x16xf32>
    %439 = arith.mulf %437, %438 : vector<16x16xf32>
    %440 = arith.addf %436, %439 : vector<16x16xf32>
    %441 = arith.addf %433, %440 : vector<16x16xf32>
    %442 = vector.extract_strided_slice %393 {offsets = [0, 6], sizes = [16, 16], strides = [1, 1]} : vector<16x22xf32> to vector<16x16xf32>
    %443 = vector.broadcast %34 : f32 to vector<16x16xf32>
    %444 = arith.mulf %442, %443 : vector<16x16xf32>
    %445 = vector.extract_strided_slice %394 {offsets = [0, 6], sizes = [16, 16], strides = [1, 1]} : vector<16x22xf32> to vector<16x16xf32>
    %446 = vector.broadcast %83 : f32 to vector<16x16xf32>
    %447 = arith.mulf %445, %446 : vector<16x16xf32>
    %448 = arith.addf %444, %447 : vector<16x16xf32>
    %449 = arith.addf %441, %448 : vector<16x16xf32>
    %450 = arith.addf %334, %449 : vector<16x16xf32>
    %c5_186 = arith.constant 5 : index
    %c0_187 = arith.constant 0 : index
    %451 = vector.load %arg6[%c5_186, %c0_187] : memref<22x22xf32, #tpu.memory_space<vmem>>, vector<16x22xf32>
    %c5_188 = arith.constant 5 : index
    %c0_189 = arith.constant 0 : index
    %452 = vector.load %arg7[%c5_188, %c0_189] : memref<22x22xf32, #tpu.memory_space<vmem>>, vector<16x22xf32>
    %453 = vector.extract_strided_slice %451 {offsets = [0, 0], sizes = [16, 16], strides = [1, 1]} : vector<16x22xf32> to vector<16x16xf32>
    %454 = vector.broadcast %35 : f32 to vector<16x16xf32>
    %455 = arith.mulf %453, %454 : vector<16x16xf32>
    %456 = vector.extract_strided_slice %452 {offsets = [0, 0], sizes = [16, 16], strides = [1, 1]} : vector<16x22xf32> to vector<16x16xf32>
    %457 = vector.broadcast %84 : f32 to vector<16x16xf32>
    %458 = arith.mulf %456, %457 : vector<16x16xf32>
    %459 = arith.addf %455, %458 : vector<16x16xf32>
    %460 = vector.extract_strided_slice %451 {offsets = [0, 1], sizes = [16, 16], strides = [1, 1]} : vector<16x22xf32> to vector<16x16xf32>
    %461 = vector.broadcast %36 : f32 to vector<16x16xf32>
    %462 = arith.mulf %460, %461 : vector<16x16xf32>
    %463 = vector.extract_strided_slice %452 {offsets = [0, 1], sizes = [16, 16], strides = [1, 1]} : vector<16x22xf32> to vector<16x16xf32>
    %464 = vector.broadcast %85 : f32 to vector<16x16xf32>
    %465 = arith.mulf %463, %464 : vector<16x16xf32>
    %466 = arith.addf %462, %465 : vector<16x16xf32>
    %467 = arith.addf %459, %466 : vector<16x16xf32>
    %468 = vector.extract_strided_slice %451 {offsets = [0, 2], sizes = [16, 16], strides = [1, 1]} : vector<16x22xf32> to vector<16x16xf32>
    %469 = vector.broadcast %37 : f32 to vector<16x16xf32>
    %470 = arith.mulf %468, %469 : vector<16x16xf32>
    %471 = vector.extract_strided_slice %452 {offsets = [0, 2], sizes = [16, 16], strides = [1, 1]} : vector<16x22xf32> to vector<16x16xf32>
    %472 = vector.broadcast %86 : f32 to vector<16x16xf32>
    %473 = arith.mulf %471, %472 : vector<16x16xf32>
    %474 = arith.addf %470, %473 : vector<16x16xf32>
    %475 = arith.addf %467, %474 : vector<16x16xf32>
    %476 = vector.extract_strided_slice %451 {offsets = [0, 3], sizes = [16, 16], strides = [1, 1]} : vector<16x22xf32> to vector<16x16xf32>
    %477 = vector.broadcast %38 : f32 to vector<16x16xf32>
    %478 = arith.mulf %476, %477 : vector<16x16xf32>
    %479 = vector.extract_strided_slice %452 {offsets = [0, 3], sizes = [16, 16], strides = [1, 1]} : vector<16x22xf32> to vector<16x16xf32>
    %480 = vector.broadcast %87 : f32 to vector<16x16xf32>
    %481 = arith.mulf %479, %480 : vector<16x16xf32>
    %482 = arith.addf %478, %481 : vector<16x16xf32>
    %483 = arith.addf %475, %482 : vector<16x16xf32>
    %484 = vector.extract_strided_slice %451 {offsets = [0, 4], sizes = [16, 16], strides = [1, 1]} : vector<16x22xf32> to vector<16x16xf32>
    %485 = vector.broadcast %39 : f32 to vector<16x16xf32>
    %486 = arith.mulf %484, %485 : vector<16x16xf32>
    %487 = vector.extract_strided_slice %452 {offsets = [0, 4], sizes = [16, 16], strides = [1, 1]} : vector<16x22xf32> to vector<16x16xf32>
    %488 = vector.broadcast %88 : f32 to vector<16x16xf32>
    %489 = arith.mulf %487, %488 : vector<16x16xf32>
    %490 = arith.addf %486, %489 : vector<16x16xf32>
    %491 = arith.addf %483, %490 : vector<16x16xf32>
    %492 = vector.extract_strided_slice %451 {offsets = [0, 5], sizes = [16, 16], strides = [1, 1]} : vector<16x22xf32> to vector<16x16xf32>
    %493 = vector.broadcast %40 : f32 to vector<16x16xf32>
    %494 = arith.mulf %492, %493 : vector<16x16xf32>
    %495 = vector.extract_strided_slice %452 {offsets = [0, 5], sizes = [16, 16], strides = [1, 1]} : vector<16x22xf32> to vector<16x16xf32>
    %496 = vector.broadcast %89 : f32 to vector<16x16xf32>
    %497 = arith.mulf %495, %496 : vector<16x16xf32>
    %498 = arith.addf %494, %497 : vector<16x16xf32>
    %499 = arith.addf %491, %498 : vector<16x16xf32>
    %500 = vector.extract_strided_slice %451 {offsets = [0, 6], sizes = [16, 16], strides = [1, 1]} : vector<16x22xf32> to vector<16x16xf32>
    %501 = vector.broadcast %41 : f32 to vector<16x16xf32>
    %502 = arith.mulf %500, %501 : vector<16x16xf32>
    %503 = vector.extract_strided_slice %452 {offsets = [0, 6], sizes = [16, 16], strides = [1, 1]} : vector<16x22xf32> to vector<16x16xf32>
    %504 = vector.broadcast %90 : f32 to vector<16x16xf32>
    %505 = arith.mulf %503, %504 : vector<16x16xf32>
    %506 = arith.addf %502, %505 : vector<16x16xf32>
    %507 = arith.addf %499, %506 : vector<16x16xf32>
    %508 = arith.addf %392, %507 : vector<16x16xf32>
    %c6_190 = arith.constant 6 : index
    %c0_191 = arith.constant 0 : index
    %509 = vector.load %arg6[%c6_190, %c0_191] : memref<22x22xf32, #tpu.memory_space<vmem>>, vector<16x22xf32>
    %c6_192 = arith.constant 6 : index
    %c0_193 = arith.constant 0 : index
    %510 = vector.load %arg7[%c6_192, %c0_193] : memref<22x22xf32, #tpu.memory_space<vmem>>, vector<16x22xf32>
    %511 = vector.extract_strided_slice %509 {offsets = [0, 0], sizes = [16, 16], strides = [1, 1]} : vector<16x22xf32> to vector<16x16xf32>
    %512 = vector.broadcast %42 : f32 to vector<16x16xf32>
    %513 = arith.mulf %511, %512 : vector<16x16xf32>
    %514 = vector.extract_strided_slice %510 {offsets = [0, 0], sizes = [16, 16], strides = [1, 1]} : vector<16x22xf32> to vector<16x16xf32>
    %515 = vector.broadcast %91 : f32 to vector<16x16xf32>
    %516 = arith.mulf %514, %515 : vector<16x16xf32>
    %517 = arith.addf %513, %516 : vector<16x16xf32>
    %518 = vector.extract_strided_slice %509 {offsets = [0, 1], sizes = [16, 16], strides = [1, 1]} : vector<16x22xf32> to vector<16x16xf32>
    %519 = vector.broadcast %43 : f32 to vector<16x16xf32>
    %520 = arith.mulf %518, %519 : vector<16x16xf32>
    %521 = vector.extract_strided_slice %510 {offsets = [0, 1], sizes = [16, 16], strides = [1, 1]} : vector<16x22xf32> to vector<16x16xf32>
    %522 = vector.broadcast %92 : f32 to vector<16x16xf32>
    %523 = arith.mulf %521, %522 : vector<16x16xf32>
    %524 = arith.addf %520, %523 : vector<16x16xf32>
    %525 = arith.addf %517, %524 : vector<16x16xf32>
    %526 = vector.extract_strided_slice %509 {offsets = [0, 2], sizes = [16, 16], strides = [1, 1]} : vector<16x22xf32> to vector<16x16xf32>
    %527 = vector.broadcast %44 : f32 to vector<16x16xf32>
    %528 = arith.mulf %526, %527 : vector<16x16xf32>
    %529 = vector.extract_strided_slice %510 {offsets = [0, 2], sizes = [16, 16], strides = [1, 1]} : vector<16x22xf32> to vector<16x16xf32>
    %530 = vector.broadcast %93 : f32 to vector<16x16xf32>
    %531 = arith.mulf %529, %530 : vector<16x16xf32>
    %532 = arith.addf %528, %531 : vector<16x16xf32>
    %533 = arith.addf %525, %532 : vector<16x16xf32>
    %534 = vector.extract_strided_slice %509 {offsets = [0, 3], sizes = [16, 16], strides = [1, 1]} : vector<16x22xf32> to vector<16x16xf32>
    %535 = vector.broadcast %45 : f32 to vector<16x16xf32>
    %536 = arith.mulf %534, %535 : vector<16x16xf32>
    %537 = vector.extract_strided_slice %510 {offsets = [0, 3], sizes = [16, 16], strides = [1, 1]} : vector<16x22xf32> to vector<16x16xf32>
    %538 = vector.broadcast %94 : f32 to vector<16x16xf32>
    %539 = arith.mulf %537, %538 : vector<16x16xf32>
    %540 = arith.addf %536, %539 : vector<16x16xf32>
    %541 = arith.addf %533, %540 : vector<16x16xf32>
    %542 = vector.extract_strided_slice %509 {offsets = [0, 4], sizes = [16, 16], strides = [1, 1]} : vector<16x22xf32> to vector<16x16xf32>
    %543 = vector.broadcast %46 : f32 to vector<16x16xf32>
    %544 = arith.mulf %542, %543 : vector<16x16xf32>
    %545 = vector.extract_strided_slice %510 {offsets = [0, 4], sizes = [16, 16], strides = [1, 1]} : vector<16x22xf32> to vector<16x16xf32>
    %546 = vector.broadcast %95 : f32 to vector<16x16xf32>
    %547 = arith.mulf %545, %546 : vector<16x16xf32>
    %548 = arith.addf %544, %547 : vector<16x16xf32>
    %549 = arith.addf %541, %548 : vector<16x16xf32>
    %550 = vector.extract_strided_slice %509 {offsets = [0, 5], sizes = [16, 16], strides = [1, 1]} : vector<16x22xf32> to vector<16x16xf32>
    %551 = vector.broadcast %47 : f32 to vector<16x16xf32>
    %552 = arith.mulf %550, %551 : vector<16x16xf32>
    %553 = vector.extract_strided_slice %510 {offsets = [0, 5], sizes = [16, 16], strides = [1, 1]} : vector<16x22xf32> to vector<16x16xf32>
    %554 = vector.broadcast %96 : f32 to vector<16x16xf32>
    %555 = arith.mulf %553, %554 : vector<16x16xf32>
    %556 = arith.addf %552, %555 : vector<16x16xf32>
    %557 = arith.addf %549, %556 : vector<16x16xf32>
    %558 = vector.extract_strided_slice %509 {offsets = [0, 6], sizes = [16, 16], strides = [1, 1]} : vector<16x22xf32> to vector<16x16xf32>
    %559 = vector.broadcast %48 : f32 to vector<16x16xf32>
    %560 = arith.mulf %558, %559 : vector<16x16xf32>
    %561 = vector.extract_strided_slice %510 {offsets = [0, 6], sizes = [16, 16], strides = [1, 1]} : vector<16x22xf32> to vector<16x16xf32>
    %562 = vector.broadcast %97 : f32 to vector<16x16xf32>
    %563 = arith.mulf %561, %562 : vector<16x16xf32>
    %564 = arith.addf %560, %563 : vector<16x16xf32>
    %565 = arith.addf %557, %564 : vector<16x16xf32>
    %566 = arith.addf %450, %565 : vector<16x16xf32>
    %567 = arith.addf %566, %508 : vector<16x16xf32>
    %568 = vector.broadcast %98 : f32 to vector<16x16xf32>
    %569 = arith.addf %567, %568 : vector<16x16xf32>
    %c0_194 = arith.constant 0 : index
    %c0_195 = arith.constant 0 : index
    %c0_196 = arith.constant 0 : index
    %c0_197 = arith.constant 0 : index
    %570 = vector.load %arg5[%c0_194, %c0_195, %c0_196, %c0_197] : memref<2x1x16x16xf32, #tpu.memory_space<vmem>>, vector<1x1x16x16xf32>
    %571 = vector.shape_cast %570 : vector<1x1x16x16xf32> to vector<16x16xf32>
    %572 = vector.shape_cast %569 : vector<16x16xf32> to vector<1x1x16x16xf32>
    tpu.vector_store %arg5[%c0_194, %c0_195, %c0_196, %c0_197], %572 {strides = array<i32>} : memref<2x1x16x16xf32, #tpu.memory_space<vmem>>, vector<1x1x16x16xf32>,
    %c1_198 = arith.constant 1 : index
    %c0_199 = arith.constant 0 : index
    %c0_200 = arith.constant 0 : index
    %c0_201 = arith.constant 0 : index
    %573 = vector.load %arg1[%c1_198, %c0_199, %c0_200, %c0_201] : memref<2x4x16x16xf32, #tpu.memory_space<vmem>>, vector<1x1x16x16xf32>
    %574 = vector.shape_cast %573 : vector<1x1x16x16xf32> to vector<16x16xf32>
    %c1_202 = arith.constant 1 : index
    %c1_203 = arith.constant 1 : index
    %c0_204 = arith.constant 0 : index
    %c0_205 = arith.constant 0 : index
    %575 = vector.load %arg1[%c1_202, %c1_203, %c0_204, %c0_205] : memref<2x4x16x16xf32, #tpu.memory_space<vmem>>, vector<1x1x16x16xf32>
    %576 = vector.shape_cast %575 : vector<1x1x16x16xf32> to vector<16x16xf32>
    %577 = arith.addf %574, %576 : vector<16x16xf32>
    %578 = arith.maximumf %574, %576 : vector<16x16xf32>
    %c1_206 = arith.constant 1 : index
    %c2_207 = arith.constant 2 : index
    %c0_208 = arith.constant 0 : index
    %c0_209 = arith.constant 0 : index
    %579 = vector.load %arg1[%c1_206, %c2_207, %c0_208, %c0_209] : memref<2x4x16x16xf32, #tpu.memory_space<vmem>>, vector<1x1x16x16xf32>
    %580 = vector.shape_cast %579 : vector<1x1x16x16xf32> to vector<16x16xf32>
    %581 = arith.addf %577, %580 : vector<16x16xf32>
    %582 = arith.maximumf %578, %580 : vector<16x16xf32>
    %c1_210 = arith.constant 1 : index
    %c3_211 = arith.constant 3 : index
    %c0_212 = arith.constant 0 : index
    %c0_213 = arith.constant 0 : index
    %583 = vector.load %arg1[%c1_210, %c3_211, %c0_212, %c0_213] : memref<2x4x16x16xf32, #tpu.memory_space<vmem>>, vector<1x1x16x16xf32>
    %584 = vector.shape_cast %583 : vector<1x1x16x16xf32> to vector<16x16xf32>
    %585 = arith.addf %581, %584 : vector<16x16xf32>
    %586 = arith.maximumf %582, %584 : vector<16x16xf32>
    %c3_214 = arith.constant 3 : index
    %c3_215 = arith.constant 3 : index
    %587 = vector.load %arg6[%c3_214, %c3_215] : memref<22x22xf32, #tpu.memory_space<vmem>>, vector<16x16xf32>
    tpu.vector_store %arg6[%c3_214, %c3_215], %585 {strides = array<i32>} : memref<22x22xf32, #tpu.memory_space<vmem>>, vector<16x16xf32>,
    %c3_216 = arith.constant 3 : index
    %c3_217 = arith.constant 3 : index
    %588 = vector.load %arg7[%c3_216, %c3_217] : memref<22x22xf32, #tpu.memory_space<vmem>>, vector<16x16xf32>
    tpu.vector_store %arg7[%c3_216, %c3_217], %586 {strides = array<i32>} : memref<22x22xf32, #tpu.memory_space<vmem>>, vector<16x16xf32>,
    %c6_218 = arith.constant 6 : index
    %c3_219 = arith.constant 3 : index
    %589 = vector.load %arg6[%c6_218, %c3_219] : memref<22x22xf32, #tpu.memory_space<vmem>>, vector<1x16xf32>
    %c0_220 = arith.constant 0 : index
    %c3_221 = arith.constant 3 : index
    %590 = vector.load %arg6[%c0_220, %c3_221] : memref<22x22xf32, #tpu.memory_space<vmem>>, vector<1x16xf32>
    tpu.vector_store %arg6[%c0_220, %c3_221], %589 {strides = array<i32>} : memref<22x22xf32, #tpu.memory_space<vmem>>, vector<1x16xf32>,
    %c17_222 = arith.constant 17 : index
    %c3_223 = arith.constant 3 : index
    %591 = vector.load %arg6[%c17_222, %c3_223] : memref<22x22xf32, #tpu.memory_space<vmem>>, vector<1x16xf32>
    %c19_224 = arith.constant 19 : index
    %c3_225 = arith.constant 3 : index
    %592 = vector.load %arg6[%c19_224, %c3_225] : memref<22x22xf32, #tpu.memory_space<vmem>>, vector<1x16xf32>
    tpu.vector_store %arg6[%c19_224, %c3_225], %591 {strides = array<i32>} : memref<22x22xf32, #tpu.memory_space<vmem>>, vector<1x16xf32>,
    %c5_226 = arith.constant 5 : index
    %c3_227 = arith.constant 3 : index
    %593 = vector.load %arg6[%c5_226, %c3_227] : memref<22x22xf32, #tpu.memory_space<vmem>>, vector<1x16xf32>
    %c1_228 = arith.constant 1 : index
    %c3_229 = arith.constant 3 : index
    %594 = vector.load %arg6[%c1_228, %c3_229] : memref<22x22xf32, #tpu.memory_space<vmem>>, vector<1x16xf32>
    tpu.vector_store %arg6[%c1_228, %c3_229], %593 {strides = array<i32>} : memref<22x22xf32, #tpu.memory_space<vmem>>, vector<1x16xf32>,
    %c16_230 = arith.constant 16 : index
    %c3_231 = arith.constant 3 : index
    %595 = vector.load %arg6[%c16_230, %c3_231] : memref<22x22xf32, #tpu.memory_space<vmem>>, vector<1x16xf32>
    %c20_232 = arith.constant 20 : index
    %c3_233 = arith.constant 3 : index
    %596 = vector.load %arg6[%c20_232, %c3_233] : memref<22x22xf32, #tpu.memory_space<vmem>>, vector<1x16xf32>
    tpu.vector_store %arg6[%c20_232, %c3_233], %595 {strides = array<i32>} : memref<22x22xf32, #tpu.memory_space<vmem>>, vector<1x16xf32>,
    %c4_234 = arith.constant 4 : index
    %c3_235 = arith.constant 3 : index
    %597 = vector.load %arg6[%c4_234, %c3_235] : memref<22x22xf32, #tpu.memory_space<vmem>>, vector<1x16xf32>
    %c2_236 = arith.constant 2 : index
    %c3_237 = arith.constant 3 : index
    %598 = vector.load %arg6[%c2_236, %c3_237] : memref<22x22xf32, #tpu.memory_space<vmem>>, vector<1x16xf32>
    tpu.vector_store %arg6[%c2_236, %c3_237], %597 {strides = array<i32>} : memref<22x22xf32, #tpu.memory_space<vmem>>, vector<1x16xf32>,
    %c15_238 = arith.constant 15 : index
    %c3_239 = arith.constant 3 : index
    %599 = vector.load %arg6[%c15_238, %c3_239] : memref<22x22xf32, #tpu.memory_space<vmem>>, vector<1x16xf32>
    %c21_240 = arith.constant 21 : index
    %c3_241 = arith.constant 3 : index
    %600 = vector.load %arg6[%c21_240, %c3_241] : memref<22x22xf32, #tpu.memory_space<vmem>>, vector<1x16xf32>
    tpu.vector_store %arg6[%c21_240, %c3_241], %599 {strides = array<i32>} : memref<22x22xf32, #tpu.memory_space<vmem>>, vector<1x16xf32>,
    %c0_242 = arith.constant 0 : index
    %c6_243 = arith.constant 6 : index
    %601 = vector.load %arg6[%c0_242, %c6_243] : memref<22x22xf32, #tpu.memory_space<vmem>>, vector<22x1xf32>
    %c0_244 = arith.constant 0 : index
    %c0_245 = arith.constant 0 : index
    %602 = vector.load %arg6[%c0_244, %c0_245] : memref<22x22xf32, #tpu.memory_space<vmem>>, vector<22x1xf32>
    tpu.vector_store %arg6[%c0_244, %c0_245], %601 {strides = array<i32>} : memref<22x22xf32, #tpu.memory_space<vmem>>, vector<22x1xf32>,
    %c0_246 = arith.constant 0 : index
    %c17_247 = arith.constant 17 : index
    %603 = vector.load %arg6[%c0_246, %c17_247] : memref<22x22xf32, #tpu.memory_space<vmem>>, vector<22x1xf32>
    %c0_248 = arith.constant 0 : index
    %c19_249 = arith.constant 19 : index
    %604 = vector.load %arg6[%c0_248, %c19_249] : memref<22x22xf32, #tpu.memory_space<vmem>>, vector<22x1xf32>
    tpu.vector_store %arg6[%c0_248, %c19_249], %603 {strides = array<i32>} : memref<22x22xf32, #tpu.memory_space<vmem>>, vector<22x1xf32>,
    %c0_250 = arith.constant 0 : index
    %c5_251 = arith.constant 5 : index
    %605 = vector.load %arg6[%c0_250, %c5_251] : memref<22x22xf32, #tpu.memory_space<vmem>>, vector<22x1xf32>
    %c0_252 = arith.constant 0 : index
    %c1_253 = arith.constant 1 : index
    %606 = vector.load %arg6[%c0_252, %c1_253] : memref<22x22xf32, #tpu.memory_space<vmem>>, vector<22x1xf32>
    tpu.vector_store %arg6[%c0_252, %c1_253], %605 {strides = array<i32>} : memref<22x22xf32, #tpu.memory_space<vmem>>, vector<22x1xf32>,
    %c0_254 = arith.constant 0 : index
    %c16_255 = arith.constant 16 : index
    %607 = vector.load %arg6[%c0_254, %c16_255] : memref<22x22xf32, #tpu.memory_space<vmem>>, vector<22x1xf32>
    %c0_256 = arith.constant 0 : index
    %c20_257 = arith.constant 20 : index
    %608 = vector.load %arg6[%c0_256, %c20_257] : memref<22x22xf32, #tpu.memory_space<vmem>>, vector<22x1xf32>
    tpu.vector_store %arg6[%c0_256, %c20_257], %607 {strides = array<i32>} : memref<22x22xf32, #tpu.memory_space<vmem>>, vector<22x1xf32>,
    %c0_258 = arith.constant 0 : index
    %c4_259 = arith.constant 4 : index
    %609 = vector.load %arg6[%c0_258, %c4_259] : memref<22x22xf32, #tpu.memory_space<vmem>>, vector<22x1xf32>
    %c0_260 = arith.constant 0 : index
    %c2_261 = arith.constant 2 : index
    %610 = vector.load %arg6[%c0_260, %c2_261] : memref<22x22xf32, #tpu.memory_space<vmem>>, vector<22x1xf32>
    tpu.vector_store %arg6[%c0_260, %c2_261], %609 {strides = array<i32>} : memref<22x22xf32, #tpu.memory_space<vmem>>, vector<22x1xf32>,
    %c0_262 = arith.constant 0 : index
    %c15_263 = arith.constant 15 : index
    %611 = vector.load %arg6[%c0_262, %c15_263] : memref<22x22xf32, #tpu.memory_space<vmem>>, vector<22x1xf32>
    %c0_264 = arith.constant 0 : index
    %c21_265 = arith.constant 21 : index
    %612 = vector.load %arg6[%c0_264, %c21_265] : memref<22x22xf32, #tpu.memory_space<vmem>>, vector<22x1xf32>
    tpu.vector_store %arg6[%c0_264, %c21_265], %611 {strides = array<i32>} : memref<22x22xf32, #tpu.memory_space<vmem>>, vector<22x1xf32>,
    %c6_266 = arith.constant 6 : index
    %c3_267 = arith.constant 3 : index
    %613 = vector.load %arg7[%c6_266, %c3_267] : memref<22x22xf32, #tpu.memory_space<vmem>>, vector<1x16xf32>
    %c0_268 = arith.constant 0 : index
    %c3_269 = arith.constant 3 : index
    %614 = vector.load %arg7[%c0_268, %c3_269] : memref<22x22xf32, #tpu.memory_space<vmem>>, vector<1x16xf32>
    tpu.vector_store %arg7[%c0_268, %c3_269], %613 {strides = array<i32>} : memref<22x22xf32, #tpu.memory_space<vmem>>, vector<1x16xf32>,
    %c17_270 = arith.constant 17 : index
    %c3_271 = arith.constant 3 : index
    %615 = vector.load %arg7[%c17_270, %c3_271] : memref<22x22xf32, #tpu.memory_space<vmem>>, vector<1x16xf32>
    %c19_272 = arith.constant 19 : index
    %c3_273 = arith.constant 3 : index
    %616 = vector.load %arg7[%c19_272, %c3_273] : memref<22x22xf32, #tpu.memory_space<vmem>>, vector<1x16xf32>
    tpu.vector_store %arg7[%c19_272, %c3_273], %615 {strides = array<i32>} : memref<22x22xf32, #tpu.memory_space<vmem>>, vector<1x16xf32>,
    %c5_274 = arith.constant 5 : index
    %c3_275 = arith.constant 3 : index
    %617 = vector.load %arg7[%c5_274, %c3_275] : memref<22x22xf32, #tpu.memory_space<vmem>>, vector<1x16xf32>
    %c1_276 = arith.constant 1 : index
    %c3_277 = arith.constant 3 : index
    %618 = vector.load %arg7[%c1_276, %c3_277] : memref<22x22xf32, #tpu.memory_space<vmem>>, vector<1x16xf32>
    tpu.vector_store %arg7[%c1_276, %c3_277], %617 {strides = array<i32>} : memref<22x22xf32, #tpu.memory_space<vmem>>, vector<1x16xf32>,
    %c16_278 = arith.constant 16 : index
    %c3_279 = arith.constant 3 : index
    %619 = vector.load %arg7[%c16_278, %c3_279] : memref<22x22xf32, #tpu.memory_space<vmem>>, vector<1x16xf32>
    %c20_280 = arith.constant 20 : index
    %c3_281 = arith.constant 3 : index
    %620 = vector.load %arg7[%c20_280, %c3_281] : memref<22x22xf32, #tpu.memory_space<vmem>>, vector<1x16xf32>
    tpu.vector_store %arg7[%c20_280, %c3_281], %619 {strides = array<i32>} : memref<22x22xf32, #tpu.memory_space<vmem>>, vector<1x16xf32>,
    %c4_282 = arith.constant 4 : index
    %c3_283 = arith.constant 3 : index
    %621 = vector.load %arg7[%c4_282, %c3_283] : memref<22x22xf32, #tpu.memory_space<vmem>>, vector<1x16xf32>
    %c2_284 = arith.constant 2 : index
    %c3_285 = arith.constant 3 : index
    %622 = vector.load %arg7[%c2_284, %c3_285] : memref<22x22xf32, #tpu.memory_space<vmem>>, vector<1x16xf32>
    tpu.vector_store %arg7[%c2_284, %c3_285], %621 {strides = array<i32>} : memref<22x22xf32, #tpu.memory_space<vmem>>, vector<1x16xf32>,
    %c15_286 = arith.constant 15 : index
    %c3_287 = arith.constant 3 : index
    %623 = vector.load %arg7[%c15_286, %c3_287] : memref<22x22xf32, #tpu.memory_space<vmem>>, vector<1x16xf32>
    %c21_288 = arith.constant 21 : index
    %c3_289 = arith.constant 3 : index
    %624 = vector.load %arg7[%c21_288, %c3_289] : memref<22x22xf32, #tpu.memory_space<vmem>>, vector<1x16xf32>
    tpu.vector_store %arg7[%c21_288, %c3_289], %623 {strides = array<i32>} : memref<22x22xf32, #tpu.memory_space<vmem>>, vector<1x16xf32>,
    %c0_290 = arith.constant 0 : index
    %c6_291 = arith.constant 6 : index
    %625 = vector.load %arg7[%c0_290, %c6_291] : memref<22x22xf32, #tpu.memory_space<vmem>>, vector<22x1xf32>
    %c0_292 = arith.constant 0 : index
    %c0_293 = arith.constant 0 : index
    %626 = vector.load %arg7[%c0_292, %c0_293] : memref<22x22xf32, #tpu.memory_space<vmem>>, vector<22x1xf32>
    tpu.vector_store %arg7[%c0_292, %c0_293], %625 {strides = array<i32>} : memref<22x22xf32, #tpu.memory_space<vmem>>, vector<22x1xf32>,
    %c0_294 = arith.constant 0 : index
    %c17_295 = arith.constant 17 : index
    %627 = vector.load %arg7[%c0_294, %c17_295] : memref<22x22xf32, #tpu.memory_space<vmem>>, vector<22x1xf32>
    %c0_296 = arith.constant 0 : index
    %c19_297 = arith.constant 19 : index
    %628 = vector.load %arg7[%c0_296, %c19_297] : memref<22x22xf32, #tpu.memory_space<vmem>>, vector<22x1xf32>
    tpu.vector_store %arg7[%c0_296, %c19_297], %627 {strides = array<i32>} : memref<22x22xf32, #tpu.memory_space<vmem>>, vector<22x1xf32>,
    %c0_298 = arith.constant 0 : index
    %c5_299 = arith.constant 5 : index
    %629 = vector.load %arg7[%c0_298, %c5_299] : memref<22x22xf32, #tpu.memory_space<vmem>>, vector<22x1xf32>
    %c0_300 = arith.constant 0 : index
    %c1_301 = arith.constant 1 : index
    %630 = vector.load %arg7[%c0_300, %c1_301] : memref<22x22xf32, #tpu.memory_space<vmem>>, vector<22x1xf32>
    tpu.vector_store %arg7[%c0_300, %c1_301], %629 {strides = array<i32>} : memref<22x22xf32, #tpu.memory_space<vmem>>, vector<22x1xf32>,
    %c0_302 = arith.constant 0 : index
    %c16_303 = arith.constant 16 : index
    %631 = vector.load %arg7[%c0_302, %c16_303] : memref<22x22xf32, #tpu.memory_space<vmem>>, vector<22x1xf32>
    %c0_304 = arith.constant 0 : index
    %c20_305 = arith.constant 20 : index
    %632 = vector.load %arg7[%c0_304, %c20_305] : memref<22x22xf32, #tpu.memory_space<vmem>>, vector<22x1xf32>
    tpu.vector_store %arg7[%c0_304, %c20_305], %631 {strides = array<i32>} : memref<22x22xf32, #tpu.memory_space<vmem>>, vector<22x1xf32>,
    %c0_306 = arith.constant 0 : index
    %c4_307 = arith.constant 4 : index
    %633 = vector.load %arg7[%c0_306, %c4_307] : memref<22x22xf32, #tpu.memory_space<vmem>>, vector<22x1xf32>
    %c0_308 = arith.constant 0 : index
    %c2_309 = arith.constant 2 : index
    %634 = vector.load %arg7[%c0_308, %c2_309] : memref<22x22xf32, #tpu.memory_space<vmem>>, vector<22x1xf32>
    tpu.vector_store %arg7[%c0_308, %c2_309], %633 {strides = array<i32>} : memref<22x22xf32, #tpu.memory_space<vmem>>, vector<22x1xf32>,
    %c0_310 = arith.constant 0 : index
    %c15_311 = arith.constant 15 : index
    %635 = vector.load %arg7[%c0_310, %c15_311] : memref<22x22xf32, #tpu.memory_space<vmem>>, vector<22x1xf32>
    %c0_312 = arith.constant 0 : index
    %c21_313 = arith.constant 21 : index
    %636 = vector.load %arg7[%c0_312, %c21_313] : memref<22x22xf32, #tpu.memory_space<vmem>>, vector<22x1xf32>
    tpu.vector_store %arg7[%c0_312, %c21_313], %635 {strides = array<i32>} : memref<22x22xf32, #tpu.memory_space<vmem>>, vector<22x1xf32>,
    %c0_314 = arith.constant 0 : index
    %c0_315 = arith.constant 0 : index
    %637 = vector.load %arg6[%c0_314, %c0_315] : memref<22x22xf32, #tpu.memory_space<vmem>>, vector<16x22xf32>
    %c0_316 = arith.constant 0 : index
    %c0_317 = arith.constant 0 : index
    %638 = vector.load %arg7[%c0_316, %c0_317] : memref<22x22xf32, #tpu.memory_space<vmem>>, vector<16x22xf32>
    %639 = vector.extract_strided_slice %637 {offsets = [0, 0], sizes = [16, 16], strides = [1, 1]} : vector<16x22xf32> to vector<16x16xf32>
    %640 = vector.broadcast %0 : f32 to vector<16x16xf32>
    %641 = arith.mulf %639, %640 : vector<16x16xf32>
    %642 = vector.extract_strided_slice %638 {offsets = [0, 0], sizes = [16, 16], strides = [1, 1]} : vector<16x22xf32> to vector<16x16xf32>
    %643 = vector.broadcast %49 : f32 to vector<16x16xf32>
    %644 = arith.mulf %642, %643 : vector<16x16xf32>
    %645 = arith.addf %641, %644 : vector<16x16xf32>
    %646 = vector.extract_strided_slice %637 {offsets = [0, 1], sizes = [16, 16], strides = [1, 1]} : vector<16x22xf32> to vector<16x16xf32>
    %647 = vector.broadcast %1 : f32 to vector<16x16xf32>
    %648 = arith.mulf %646, %647 : vector<16x16xf32>
    %649 = vector.extract_strided_slice %638 {offsets = [0, 1], sizes = [16, 16], strides = [1, 1]} : vector<16x22xf32> to vector<16x16xf32>
    %650 = vector.broadcast %50 : f32 to vector<16x16xf32>
    %651 = arith.mulf %649, %650 : vector<16x16xf32>
    %652 = arith.addf %648, %651 : vector<16x16xf32>
    %653 = arith.addf %645, %652 : vector<16x16xf32>
    %654 = vector.extract_strided_slice %637 {offsets = [0, 2], sizes = [16, 16], strides = [1, 1]} : vector<16x22xf32> to vector<16x16xf32>
    %655 = vector.broadcast %2 : f32 to vector<16x16xf32>
    %656 = arith.mulf %654, %655 : vector<16x16xf32>
    %657 = vector.extract_strided_slice %638 {offsets = [0, 2], sizes = [16, 16], strides = [1, 1]} : vector<16x22xf32> to vector<16x16xf32>
    %658 = vector.broadcast %51 : f32 to vector<16x16xf32>
    %659 = arith.mulf %657, %658 : vector<16x16xf32>
    %660 = arith.addf %656, %659 : vector<16x16xf32>
    %661 = arith.addf %653, %660 : vector<16x16xf32>
    %662 = vector.extract_strided_slice %637 {offsets = [0, 3], sizes = [16, 16], strides = [1, 1]} : vector<16x22xf32> to vector<16x16xf32>
    %663 = vector.broadcast %3 : f32 to vector<16x16xf32>
    %664 = arith.mulf %662, %663 : vector<16x16xf32>
    %665 = vector.extract_strided_slice %638 {offsets = [0, 3], sizes = [16, 16], strides = [1, 1]} : vector<16x22xf32> to vector<16x16xf32>
    %666 = vector.broadcast %52 : f32 to vector<16x16xf32>
    %667 = arith.mulf %665, %666 : vector<16x16xf32>
    %668 = arith.addf %664, %667 : vector<16x16xf32>
    %669 = arith.addf %661, %668 : vector<16x16xf32>
    %670 = vector.extract_strided_slice %637 {offsets = [0, 4], sizes = [16, 16], strides = [1, 1]} : vector<16x22xf32> to vector<16x16xf32>
    %671 = vector.broadcast %4 : f32 to vector<16x16xf32>
    %672 = arith.mulf %670, %671 : vector<16x16xf32>
    %673 = vector.extract_strided_slice %638 {offsets = [0, 4], sizes = [16, 16], strides = [1, 1]} : vector<16x22xf32> to vector<16x16xf32>
    %674 = vector.broadcast %53 : f32 to vector<16x16xf32>
    %675 = arith.mulf %673, %674 : vector<16x16xf32>
    %676 = arith.addf %672, %675 : vector<16x16xf32>
    %677 = arith.addf %669, %676 : vector<16x16xf32>
    %678 = vector.extract_strided_slice %637 {offsets = [0, 5], sizes = [16, 16], strides = [1, 1]} : vector<16x22xf32> to vector<16x16xf32>
    %679 = vector.broadcast %5 : f32 to vector<16x16xf32>
    %680 = arith.mulf %678, %679 : vector<16x16xf32>
    %681 = vector.extract_strided_slice %638 {offsets = [0, 5], sizes = [16, 16], strides = [1, 1]} : vector<16x22xf32> to vector<16x16xf32>
    %682 = vector.broadcast %54 : f32 to vector<16x16xf32>
    %683 = arith.mulf %681, %682 : vector<16x16xf32>
    %684 = arith.addf %680, %683 : vector<16x16xf32>
    %685 = arith.addf %677, %684 : vector<16x16xf32>
    %686 = vector.extract_strided_slice %637 {offsets = [0, 6], sizes = [16, 16], strides = [1, 1]} : vector<16x22xf32> to vector<16x16xf32>
    %687 = vector.broadcast %6 : f32 to vector<16x16xf32>
    %688 = arith.mulf %686, %687 : vector<16x16xf32>
    %689 = vector.extract_strided_slice %638 {offsets = [0, 6], sizes = [16, 16], strides = [1, 1]} : vector<16x22xf32> to vector<16x16xf32>
    %690 = vector.broadcast %55 : f32 to vector<16x16xf32>
    %691 = arith.mulf %689, %690 : vector<16x16xf32>
    %692 = arith.addf %688, %691 : vector<16x16xf32>
    %693 = arith.addf %685, %692 : vector<16x16xf32>
    %c1_318 = arith.constant 1 : index
    %c0_319 = arith.constant 0 : index
    %694 = vector.load %arg6[%c1_318, %c0_319] : memref<22x22xf32, #tpu.memory_space<vmem>>, vector<16x22xf32>
    %c1_320 = arith.constant 1 : index
    %c0_321 = arith.constant 0 : index
    %695 = vector.load %arg7[%c1_320, %c0_321] : memref<22x22xf32, #tpu.memory_space<vmem>>, vector<16x22xf32>
    %696 = vector.extract_strided_slice %694 {offsets = [0, 0], sizes = [16, 16], strides = [1, 1]} : vector<16x22xf32> to vector<16x16xf32>
    %697 = vector.broadcast %7 : f32 to vector<16x16xf32>
    %698 = arith.mulf %696, %697 : vector<16x16xf32>
    %699 = vector.extract_strided_slice %695 {offsets = [0, 0], sizes = [16, 16], strides = [1, 1]} : vector<16x22xf32> to vector<16x16xf32>
    %700 = vector.broadcast %56 : f32 to vector<16x16xf32>
    %701 = arith.mulf %699, %700 : vector<16x16xf32>
    %702 = arith.addf %698, %701 : vector<16x16xf32>
    %703 = vector.extract_strided_slice %694 {offsets = [0, 1], sizes = [16, 16], strides = [1, 1]} : vector<16x22xf32> to vector<16x16xf32>
    %704 = vector.broadcast %8 : f32 to vector<16x16xf32>
    %705 = arith.mulf %703, %704 : vector<16x16xf32>
    %706 = vector.extract_strided_slice %695 {offsets = [0, 1], sizes = [16, 16], strides = [1, 1]} : vector<16x22xf32> to vector<16x16xf32>
    %707 = vector.broadcast %57 : f32 to vector<16x16xf32>
    %708 = arith.mulf %706, %707 : vector<16x16xf32>
    %709 = arith.addf %705, %708 : vector<16x16xf32>
    %710 = arith.addf %702, %709 : vector<16x16xf32>
    %711 = vector.extract_strided_slice %694 {offsets = [0, 2], sizes = [16, 16], strides = [1, 1]} : vector<16x22xf32> to vector<16x16xf32>
    %712 = vector.broadcast %9 : f32 to vector<16x16xf32>
    %713 = arith.mulf %711, %712 : vector<16x16xf32>
    %714 = vector.extract_strided_slice %695 {offsets = [0, 2], sizes = [16, 16], strides = [1, 1]} : vector<16x22xf32> to vector<16x16xf32>
    %715 = vector.broadcast %58 : f32 to vector<16x16xf32>
    %716 = arith.mulf %714, %715 : vector<16x16xf32>
    %717 = arith.addf %713, %716 : vector<16x16xf32>
    %718 = arith.addf %710, %717 : vector<16x16xf32>
    %719 = vector.extract_strided_slice %694 {offsets = [0, 3], sizes = [16, 16], strides = [1, 1]} : vector<16x22xf32> to vector<16x16xf32>
    %720 = vector.broadcast %10 : f32 to vector<16x16xf32>
    %721 = arith.mulf %719, %720 : vector<16x16xf32>
    %722 = vector.extract_strided_slice %695 {offsets = [0, 3], sizes = [16, 16], strides = [1, 1]} : vector<16x22xf32> to vector<16x16xf32>
    %723 = vector.broadcast %59 : f32 to vector<16x16xf32>
    %724 = arith.mulf %722, %723 : vector<16x16xf32>
    %725 = arith.addf %721, %724 : vector<16x16xf32>
    %726 = arith.addf %718, %725 : vector<16x16xf32>
    %727 = vector.extract_strided_slice %694 {offsets = [0, 4], sizes = [16, 16], strides = [1, 1]} : vector<16x22xf32> to vector<16x16xf32>
    %728 = vector.broadcast %11 : f32 to vector<16x16xf32>
    %729 = arith.mulf %727, %728 : vector<16x16xf32>
    %730 = vector.extract_strided_slice %695 {offsets = [0, 4], sizes = [16, 16], strides = [1, 1]} : vector<16x22xf32> to vector<16x16xf32>
    %731 = vector.broadcast %60 : f32 to vector<16x16xf32>
    %732 = arith.mulf %730, %731 : vector<16x16xf32>
    %733 = arith.addf %729, %732 : vector<16x16xf32>
    %734 = arith.addf %726, %733 : vector<16x16xf32>
    %735 = vector.extract_strided_slice %694 {offsets = [0, 5], sizes = [16, 16], strides = [1, 1]} : vector<16x22xf32> to vector<16x16xf32>
    %736 = vector.broadcast %12 : f32 to vector<16x16xf32>
    %737 = arith.mulf %735, %736 : vector<16x16xf32>
    %738 = vector.extract_strided_slice %695 {offsets = [0, 5], sizes = [16, 16], strides = [1, 1]} : vector<16x22xf32> to vector<16x16xf32>
    %739 = vector.broadcast %61 : f32 to vector<16x16xf32>
    %740 = arith.mulf %738, %739 : vector<16x16xf32>
    %741 = arith.addf %737, %740 : vector<16x16xf32>
    %742 = arith.addf %734, %741 : vector<16x16xf32>
    %743 = vector.extract_strided_slice %694 {offsets = [0, 6], sizes = [16, 16], strides = [1, 1]} : vector<16x22xf32> to vector<16x16xf32>
    %744 = vector.broadcast %13 : f32 to vector<16x16xf32>
    %745 = arith.mulf %743, %744 : vector<16x16xf32>
    %746 = vector.extract_strided_slice %695 {offsets = [0, 6], sizes = [16, 16], strides = [1, 1]} : vector<16x22xf32> to vector<16x16xf32>
    %747 = vector.broadcast %62 : f32 to vector<16x16xf32>
    %748 = arith.mulf %746, %747 : vector<16x16xf32>
    %749 = arith.addf %745, %748 : vector<16x16xf32>
    %750 = arith.addf %742, %749 : vector<16x16xf32>
    %c2_322 = arith.constant 2 : index
    %c0_323 = arith.constant 0 : index
    %751 = vector.load %arg6[%c2_322, %c0_323] : memref<22x22xf32, #tpu.memory_space<vmem>>, vector<16x22xf32>
    %c2_324 = arith.constant 2 : index
    %c0_325 = arith.constant 0 : index
    %752 = vector.load %arg7[%c2_324, %c0_325] : memref<22x22xf32, #tpu.memory_space<vmem>>, vector<16x22xf32>
    %753 = vector.extract_strided_slice %751 {offsets = [0, 0], sizes = [16, 16], strides = [1, 1]} : vector<16x22xf32> to vector<16x16xf32>
    %754 = vector.broadcast %14 : f32 to vector<16x16xf32>
    %755 = arith.mulf %753, %754 : vector<16x16xf32>
    %756 = vector.extract_strided_slice %752 {offsets = [0, 0], sizes = [16, 16], strides = [1, 1]} : vector<16x22xf32> to vector<16x16xf32>
    %757 = vector.broadcast %63 : f32 to vector<16x16xf32>
    %758 = arith.mulf %756, %757 : vector<16x16xf32>
    %759 = arith.addf %755, %758 : vector<16x16xf32>
    %760 = vector.extract_strided_slice %751 {offsets = [0, 1], sizes = [16, 16], strides = [1, 1]} : vector<16x22xf32> to vector<16x16xf32>
    %761 = vector.broadcast %15 : f32 to vector<16x16xf32>
    %762 = arith.mulf %760, %761 : vector<16x16xf32>
    %763 = vector.extract_strided_slice %752 {offsets = [0, 1], sizes = [16, 16], strides = [1, 1]} : vector<16x22xf32> to vector<16x16xf32>
    %764 = vector.broadcast %64 : f32 to vector<16x16xf32>
    %765 = arith.mulf %763, %764 : vector<16x16xf32>
    %766 = arith.addf %762, %765 : vector<16x16xf32>
    %767 = arith.addf %759, %766 : vector<16x16xf32>
    %768 = vector.extract_strided_slice %751 {offsets = [0, 2], sizes = [16, 16], strides = [1, 1]} : vector<16x22xf32> to vector<16x16xf32>
    %769 = vector.broadcast %16 : f32 to vector<16x16xf32>
    %770 = arith.mulf %768, %769 : vector<16x16xf32>
    %771 = vector.extract_strided_slice %752 {offsets = [0, 2], sizes = [16, 16], strides = [1, 1]} : vector<16x22xf32> to vector<16x16xf32>
    %772 = vector.broadcast %65 : f32 to vector<16x16xf32>
    %773 = arith.mulf %771, %772 : vector<16x16xf32>
    %774 = arith.addf %770, %773 : vector<16x16xf32>
    %775 = arith.addf %767, %774 : vector<16x16xf32>
    %776 = vector.extract_strided_slice %751 {offsets = [0, 3], sizes = [16, 16], strides = [1, 1]} : vector<16x22xf32> to vector<16x16xf32>
    %777 = vector.broadcast %17 : f32 to vector<16x16xf32>
    %778 = arith.mulf %776, %777 : vector<16x16xf32>
    %779 = vector.extract_strided_slice %752 {offsets = [0, 3], sizes = [16, 16], strides = [1, 1]} : vector<16x22xf32> to vector<16x16xf32>
    %780 = vector.broadcast %66 : f32 to vector<16x16xf32>
    %781 = arith.mulf %779, %780 : vector<16x16xf32>
    %782 = arith.addf %778, %781 : vector<16x16xf32>
    %783 = arith.addf %775, %782 : vector<16x16xf32>
    %784 = vector.extract_strided_slice %751 {offsets = [0, 4], sizes = [16, 16], strides = [1, 1]} : vector<16x22xf32> to vector<16x16xf32>
    %785 = vector.broadcast %18 : f32 to vector<16x16xf32>
    %786 = arith.mulf %784, %785 : vector<16x16xf32>
    %787 = vector.extract_strided_slice %752 {offsets = [0, 4], sizes = [16, 16], strides = [1, 1]} : vector<16x22xf32> to vector<16x16xf32>
    %788 = vector.broadcast %67 : f32 to vector<16x16xf32>
    %789 = arith.mulf %787, %788 : vector<16x16xf32>
    %790 = arith.addf %786, %789 : vector<16x16xf32>
    %791 = arith.addf %783, %790 : vector<16x16xf32>
    %792 = vector.extract_strided_slice %751 {offsets = [0, 5], sizes = [16, 16], strides = [1, 1]} : vector<16x22xf32> to vector<16x16xf32>
    %793 = vector.broadcast %19 : f32 to vector<16x16xf32>
    %794 = arith.mulf %792, %793 : vector<16x16xf32>
    %795 = vector.extract_strided_slice %752 {offsets = [0, 5], sizes = [16, 16], strides = [1, 1]} : vector<16x22xf32> to vector<16x16xf32>
    %796 = vector.broadcast %68 : f32 to vector<16x16xf32>
    %797 = arith.mulf %795, %796 : vector<16x16xf32>
    %798 = arith.addf %794, %797 : vector<16x16xf32>
    %799 = arith.addf %791, %798 : vector<16x16xf32>
    %800 = vector.extract_strided_slice %751 {offsets = [0, 6], sizes = [16, 16], strides = [1, 1]} : vector<16x22xf32> to vector<16x16xf32>
    %801 = vector.broadcast %20 : f32 to vector<16x16xf32>
    %802 = arith.mulf %800, %801 : vector<16x16xf32>
    %803 = vector.extract_strided_slice %752 {offsets = [0, 6], sizes = [16, 16], strides = [1, 1]} : vector<16x22xf32> to vector<16x16xf32>
    %804 = vector.broadcast %69 : f32 to vector<16x16xf32>
    %805 = arith.mulf %803, %804 : vector<16x16xf32>
    %806 = arith.addf %802, %805 : vector<16x16xf32>
    %807 = arith.addf %799, %806 : vector<16x16xf32>
    %808 = arith.addf %693, %807 : vector<16x16xf32>
    %c3_326 = arith.constant 3 : index
    %c0_327 = arith.constant 0 : index
    %809 = vector.load %arg6[%c3_326, %c0_327] : memref<22x22xf32, #tpu.memory_space<vmem>>, vector<16x22xf32>
    %c3_328 = arith.constant 3 : index
    %c0_329 = arith.constant 0 : index
    %810 = vector.load %arg7[%c3_328, %c0_329] : memref<22x22xf32, #tpu.memory_space<vmem>>, vector<16x22xf32>
    %811 = vector.extract_strided_slice %809 {offsets = [0, 0], sizes = [16, 16], strides = [1, 1]} : vector<16x22xf32> to vector<16x16xf32>
    %812 = vector.broadcast %21 : f32 to vector<16x16xf32>
    %813 = arith.mulf %811, %812 : vector<16x16xf32>
    %814 = vector.extract_strided_slice %810 {offsets = [0, 0], sizes = [16, 16], strides = [1, 1]} : vector<16x22xf32> to vector<16x16xf32>
    %815 = vector.broadcast %70 : f32 to vector<16x16xf32>
    %816 = arith.mulf %814, %815 : vector<16x16xf32>
    %817 = arith.addf %813, %816 : vector<16x16xf32>
    %818 = vector.extract_strided_slice %809 {offsets = [0, 1], sizes = [16, 16], strides = [1, 1]} : vector<16x22xf32> to vector<16x16xf32>
    %819 = vector.broadcast %22 : f32 to vector<16x16xf32>
    %820 = arith.mulf %818, %819 : vector<16x16xf32>
    %821 = vector.extract_strided_slice %810 {offsets = [0, 1], sizes = [16, 16], strides = [1, 1]} : vector<16x22xf32> to vector<16x16xf32>
    %822 = vector.broadcast %71 : f32 to vector<16x16xf32>
    %823 = arith.mulf %821, %822 : vector<16x16xf32>
    %824 = arith.addf %820, %823 : vector<16x16xf32>
    %825 = arith.addf %817, %824 : vector<16x16xf32>
    %826 = vector.extract_strided_slice %809 {offsets = [0, 2], sizes = [16, 16], strides = [1, 1]} : vector<16x22xf32> to vector<16x16xf32>
    %827 = vector.broadcast %23 : f32 to vector<16x16xf32>
    %828 = arith.mulf %826, %827 : vector<16x16xf32>
    %829 = vector.extract_strided_slice %810 {offsets = [0, 2], sizes = [16, 16], strides = [1, 1]} : vector<16x22xf32> to vector<16x16xf32>
    %830 = vector.broadcast %72 : f32 to vector<16x16xf32>
    %831 = arith.mulf %829, %830 : vector<16x16xf32>
    %832 = arith.addf %828, %831 : vector<16x16xf32>
    %833 = arith.addf %825, %832 : vector<16x16xf32>
    %834 = vector.extract_strided_slice %809 {offsets = [0, 3], sizes = [16, 16], strides = [1, 1]} : vector<16x22xf32> to vector<16x16xf32>
    %835 = vector.broadcast %24 : f32 to vector<16x16xf32>
    %836 = arith.mulf %834, %835 : vector<16x16xf32>
    %837 = vector.extract_strided_slice %810 {offsets = [0, 3], sizes = [16, 16], strides = [1, 1]} : vector<16x22xf32> to vector<16x16xf32>
    %838 = vector.broadcast %73 : f32 to vector<16x16xf32>
    %839 = arith.mulf %837, %838 : vector<16x16xf32>
    %840 = arith.addf %836, %839 : vector<16x16xf32>
    %841 = arith.addf %833, %840 : vector<16x16xf32>
    %842 = vector.extract_strided_slice %809 {offsets = [0, 4], sizes = [16, 16], strides = [1, 1]} : vector<16x22xf32> to vector<16x16xf32>
    %843 = vector.broadcast %25 : f32 to vector<16x16xf32>
    %844 = arith.mulf %842, %843 : vector<16x16xf32>
    %845 = vector.extract_strided_slice %810 {offsets = [0, 4], sizes = [16, 16], strides = [1, 1]} : vector<16x22xf32> to vector<16x16xf32>
    %846 = vector.broadcast %74 : f32 to vector<16x16xf32>
    %847 = arith.mulf %845, %846 : vector<16x16xf32>
    %848 = arith.addf %844, %847 : vector<16x16xf32>
    %849 = arith.addf %841, %848 : vector<16x16xf32>
    %850 = vector.extract_strided_slice %809 {offsets = [0, 5], sizes = [16, 16], strides = [1, 1]} : vector<16x22xf32> to vector<16x16xf32>
    %851 = vector.broadcast %26 : f32 to vector<16x16xf32>
    %852 = arith.mulf %850, %851 : vector<16x16xf32>
    %853 = vector.extract_strided_slice %810 {offsets = [0, 5], sizes = [16, 16], strides = [1, 1]} : vector<16x22xf32> to vector<16x16xf32>
    %854 = vector.broadcast %75 : f32 to vector<16x16xf32>
    %855 = arith.mulf %853, %854 : vector<16x16xf32>
    %856 = arith.addf %852, %855 : vector<16x16xf32>
    %857 = arith.addf %849, %856 : vector<16x16xf32>
    %858 = vector.extract_strided_slice %809 {offsets = [0, 6], sizes = [16, 16], strides = [1, 1]} : vector<16x22xf32> to vector<16x16xf32>
    %859 = vector.broadcast %27 : f32 to vector<16x16xf32>
    %860 = arith.mulf %858, %859 : vector<16x16xf32>
    %861 = vector.extract_strided_slice %810 {offsets = [0, 6], sizes = [16, 16], strides = [1, 1]} : vector<16x22xf32> to vector<16x16xf32>
    %862 = vector.broadcast %76 : f32 to vector<16x16xf32>
    %863 = arith.mulf %861, %862 : vector<16x16xf32>
    %864 = arith.addf %860, %863 : vector<16x16xf32>
    %865 = arith.addf %857, %864 : vector<16x16xf32>
    %866 = arith.addf %750, %865 : vector<16x16xf32>
    %c4_330 = arith.constant 4 : index
    %c0_331 = arith.constant 0 : index
    %867 = vector.load %arg6[%c4_330, %c0_331] : memref<22x22xf32, #tpu.memory_space<vmem>>, vector<16x22xf32>
    %c4_332 = arith.constant 4 : index
    %c0_333 = arith.constant 0 : index
    %868 = vector.load %arg7[%c4_332, %c0_333] : memref<22x22xf32, #tpu.memory_space<vmem>>, vector<16x22xf32>
    %869 = vector.extract_strided_slice %867 {offsets = [0, 0], sizes = [16, 16], strides = [1, 1]} : vector<16x22xf32> to vector<16x16xf32>
    %870 = vector.broadcast %28 : f32 to vector<16x16xf32>
    %871 = arith.mulf %869, %870 : vector<16x16xf32>
    %872 = vector.extract_strided_slice %868 {offsets = [0, 0], sizes = [16, 16], strides = [1, 1]} : vector<16x22xf32> to vector<16x16xf32>
    %873 = vector.broadcast %77 : f32 to vector<16x16xf32>
    %874 = arith.mulf %872, %873 : vector<16x16xf32>
    %875 = arith.addf %871, %874 : vector<16x16xf32>
    %876 = vector.extract_strided_slice %867 {offsets = [0, 1], sizes = [16, 16], strides = [1, 1]} : vector<16x22xf32> to vector<16x16xf32>
    %877 = vector.broadcast %29 : f32 to vector<16x16xf32>
    %878 = arith.mulf %876, %877 : vector<16x16xf32>
    %879 = vector.extract_strided_slice %868 {offsets = [0, 1], sizes = [16, 16], strides = [1, 1]} : vector<16x22xf32> to vector<16x16xf32>
    %880 = vector.broadcast %78 : f32 to vector<16x16xf32>
    %881 = arith.mulf %879, %880 : vector<16x16xf32>
    %882 = arith.addf %878, %881 : vector<16x16xf32>
    %883 = arith.addf %875, %882 : vector<16x16xf32>
    %884 = vector.extract_strided_slice %867 {offsets = [0, 2], sizes = [16, 16], strides = [1, 1]} : vector<16x22xf32> to vector<16x16xf32>
    %885 = vector.broadcast %30 : f32 to vector<16x16xf32>
    %886 = arith.mulf %884, %885 : vector<16x16xf32>
    %887 = vector.extract_strided_slice %868 {offsets = [0, 2], sizes = [16, 16], strides = [1, 1]} : vector<16x22xf32> to vector<16x16xf32>
    %888 = vector.broadcast %79 : f32 to vector<16x16xf32>
    %889 = arith.mulf %887, %888 : vector<16x16xf32>
    %890 = arith.addf %886, %889 : vector<16x16xf32>
    %891 = arith.addf %883, %890 : vector<16x16xf32>
    %892 = vector.extract_strided_slice %867 {offsets = [0, 3], sizes = [16, 16], strides = [1, 1]} : vector<16x22xf32> to vector<16x16xf32>
    %893 = vector.broadcast %31 : f32 to vector<16x16xf32>
    %894 = arith.mulf %892, %893 : vector<16x16xf32>
    %895 = vector.extract_strided_slice %868 {offsets = [0, 3], sizes = [16, 16], strides = [1, 1]} : vector<16x22xf32> to vector<16x16xf32>
    %896 = vector.broadcast %80 : f32 to vector<16x16xf32>
    %897 = arith.mulf %895, %896 : vector<16x16xf32>
    %898 = arith.addf %894, %897 : vector<16x16xf32>
    %899 = arith.addf %891, %898 : vector<16x16xf32>
    %900 = vector.extract_strided_slice %867 {offsets = [0, 4], sizes = [16, 16], strides = [1, 1]} : vector<16x22xf32> to vector<16x16xf32>
    %901 = vector.broadcast %32 : f32 to vector<16x16xf32>
    %902 = arith.mulf %900, %901 : vector<16x16xf32>
    %903 = vector.extract_strided_slice %868 {offsets = [0, 4], sizes = [16, 16], strides = [1, 1]} : vector<16x22xf32> to vector<16x16xf32>
    %904 = vector.broadcast %81 : f32 to vector<16x16xf32>
    %905 = arith.mulf %903, %904 : vector<16x16xf32>
    %906 = arith.addf %902, %905 : vector<16x16xf32>
    %907 = arith.addf %899, %906 : vector<16x16xf32>
    %908 = vector.extract_strided_slice %867 {offsets = [0, 5], sizes = [16, 16], strides = [1, 1]} : vector<16x22xf32> to vector<16x16xf32>
    %909 = vector.broadcast %33 : f32 to vector<16x16xf32>
    %910 = arith.mulf %908, %909 : vector<16x16xf32>
    %911 = vector.extract_strided_slice %868 {offsets = [0, 5], sizes = [16, 16], strides = [1, 1]} : vector<16x22xf32> to vector<16x16xf32>
    %912 = vector.broadcast %82 : f32 to vector<16x16xf32>
    %913 = arith.mulf %911, %912 : vector<16x16xf32>
    %914 = arith.addf %910, %913 : vector<16x16xf32>
    %915 = arith.addf %907, %914 : vector<16x16xf32>
    %916 = vector.extract_strided_slice %867 {offsets = [0, 6], sizes = [16, 16], strides = [1, 1]} : vector<16x22xf32> to vector<16x16xf32>
    %917 = vector.broadcast %34 : f32 to vector<16x16xf32>
    %918 = arith.mulf %916, %917 : vector<16x16xf32>
    %919 = vector.extract_strided_slice %868 {offsets = [0, 6], sizes = [16, 16], strides = [1, 1]} : vector<16x22xf32> to vector<16x16xf32>
    %920 = vector.broadcast %83 : f32 to vector<16x16xf32>
    %921 = arith.mulf %919, %920 : vector<16x16xf32>
    %922 = arith.addf %918, %921 : vector<16x16xf32>
    %923 = arith.addf %915, %922 : vector<16x16xf32>
    %924 = arith.addf %808, %923 : vector<16x16xf32>
    %c5_334 = arith.constant 5 : index
    %c0_335 = arith.constant 0 : index
    %925 = vector.load %arg6[%c5_334, %c0_335] : memref<22x22xf32, #tpu.memory_space<vmem>>, vector<16x22xf32>
    %c5_336 = arith.constant 5 : index
    %c0_337 = arith.constant 0 : index
    %926 = vector.load %arg7[%c5_336, %c0_337] : memref<22x22xf32, #tpu.memory_space<vmem>>, vector<16x22xf32>
    %927 = vector.extract_strided_slice %925 {offsets = [0, 0], sizes = [16, 16], strides = [1, 1]} : vector<16x22xf32> to vector<16x16xf32>
    %928 = vector.broadcast %35 : f32 to vector<16x16xf32>
    %929 = arith.mulf %927, %928 : vector<16x16xf32>
    %930 = vector.extract_strided_slice %926 {offsets = [0, 0], sizes = [16, 16], strides = [1, 1]} : vector<16x22xf32> to vector<16x16xf32>
    %931 = vector.broadcast %84 : f32 to vector<16x16xf32>
    %932 = arith.mulf %930, %931 : vector<16x16xf32>
    %933 = arith.addf %929, %932 : vector<16x16xf32>
    %934 = vector.extract_strided_slice %925 {offsets = [0, 1], sizes = [16, 16], strides = [1, 1]} : vector<16x22xf32> to vector<16x16xf32>
    %935 = vector.broadcast %36 : f32 to vector<16x16xf32>
    %936 = arith.mulf %934, %935 : vector<16x16xf32>
    %937 = vector.extract_strided_slice %926 {offsets = [0, 1], sizes = [16, 16], strides = [1, 1]} : vector<16x22xf32> to vector<16x16xf32>
    %938 = vector.broadcast %85 : f32 to vector<16x16xf32>
    %939 = arith.mulf %937, %938 : vector<16x16xf32>
    %940 = arith.addf %936, %939 : vector<16x16xf32>
    %941 = arith.addf %933, %940 : vector<16x16xf32>
    %942 = vector.extract_strided_slice %925 {offsets = [0, 2], sizes = [16, 16], strides = [1, 1]} : vector<16x22xf32> to vector<16x16xf32>
    %943 = vector.broadcast %37 : f32 to vector<16x16xf32>
    %944 = arith.mulf %942, %943 : vector<16x16xf32>
    %945 = vector.extract_strided_slice %926 {offsets = [0, 2], sizes = [16, 16], strides = [1, 1]} : vector<16x22xf32> to vector<16x16xf32>
    %946 = vector.broadcast %86 : f32 to vector<16x16xf32>
    %947 = arith.mulf %945, %946 : vector<16x16xf32>
    %948 = arith.addf %944, %947 : vector<16x16xf32>
    %949 = arith.addf %941, %948 : vector<16x16xf32>
    %950 = vector.extract_strided_slice %925 {offsets = [0, 3], sizes = [16, 16], strides = [1, 1]} : vector<16x22xf32> to vector<16x16xf32>
    %951 = vector.broadcast %38 : f32 to vector<16x16xf32>
    %952 = arith.mulf %950, %951 : vector<16x16xf32>
    %953 = vector.extract_strided_slice %926 {offsets = [0, 3], sizes = [16, 16], strides = [1, 1]} : vector<16x22xf32> to vector<16x16xf32>
    %954 = vector.broadcast %87 : f32 to vector<16x16xf32>
    %955 = arith.mulf %953, %954 : vector<16x16xf32>
    %956 = arith.addf %952, %955 : vector<16x16xf32>
    %957 = arith.addf %949, %956 : vector<16x16xf32>
    %958 = vector.extract_strided_slice %925 {offsets = [0, 4], sizes = [16, 16], strides = [1, 1]} : vector<16x22xf32> to vector<16x16xf32>
    %959 = vector.broadcast %39 : f32 to vector<16x16xf32>
    %960 = arith.mulf %958, %959 : vector<16x16xf32>
    %961 = vector.extract_strided_slice %926 {offsets = [0, 4], sizes = [16, 16], strides = [1, 1]} : vector<16x22xf32> to vector<16x16xf32>
    %962 = vector.broadcast %88 : f32 to vector<16x16xf32>
    %963 = arith.mulf %961, %962 : vector<16x16xf32>
    %964 = arith.addf %960, %963 : vector<16x16xf32>
    %965 = arith.addf %957, %964 : vector<16x16xf32>
    %966 = vector.extract_strided_slice %925 {offsets = [0, 5], sizes = [16, 16], strides = [1, 1]} : vector<16x22xf32> to vector<16x16xf32>
    %967 = vector.broadcast %40 : f32 to vector<16x16xf32>
    %968 = arith.mulf %966, %967 : vector<16x16xf32>
    %969 = vector.extract_strided_slice %926 {offsets = [0, 5], sizes = [16, 16], strides = [1, 1]} : vector<16x22xf32> to vector<16x16xf32>
    %970 = vector.broadcast %89 : f32 to vector<16x16xf32>
    %971 = arith.mulf %969, %970 : vector<16x16xf32>
    %972 = arith.addf %968, %971 : vector<16x16xf32>
    %973 = arith.addf %965, %972 : vector<16x16xf32>
    %974 = vector.extract_strided_slice %925 {offsets = [0, 6], sizes = [16, 16], strides = [1, 1]} : vector<16x22xf32> to vector<16x16xf32>
    %975 = vector.broadcast %41 : f32 to vector<16x16xf32>
    %976 = arith.mulf %974, %975 : vector<16x16xf32>
    %977 = vector.extract_strided_slice %926 {offsets = [0, 6], sizes = [16, 16], strides = [1, 1]} : vector<16x22xf32> to vector<16x16xf32>
    %978 = vector.broadcast %90 : f32 to vector<16x16xf32>
    %979 = arith.mulf %977, %978 : vector<16x16xf32>
    %980 = arith.addf %976, %979 : vector<16x16xf32>
    %981 = arith.addf %973, %980 : vector<16x16xf32>
    %982 = arith.addf %866, %981 : vector<16x16xf32>
    %c6_338 = arith.constant 6 : index
    %c0_339 = arith.constant 0 : index
    %983 = vector.load %arg6[%c6_338, %c0_339] : memref<22x22xf32, #tpu.memory_space<vmem>>, vector<16x22xf32>
    %c6_340 = arith.constant 6 : index
    %c0_341 = arith.constant 0 : index
    %984 = vector.load %arg7[%c6_340, %c0_341] : memref<22x22xf32, #tpu.memory_space<vmem>>, vector<16x22xf32>
    %985 = vector.extract_strided_slice %983 {offsets = [0, 0], sizes = [16, 16], strides = [1, 1]} : vector<16x22xf32> to vector<16x16xf32>
    %986 = vector.broadcast %42 : f32 to vector<16x16xf32>
    %987 = arith.mulf %985, %986 : vector<16x16xf32>
    %988 = vector.extract_strided_slice %984 {offsets = [0, 0], sizes = [16, 16], strides = [1, 1]} : vector<16x22xf32> to vector<16x16xf32>
    %989 = vector.broadcast %91 : f32 to vector<16x16xf32>
    %990 = arith.mulf %988, %989 : vector<16x16xf32>
    %991 = arith.addf %987, %990 : vector<16x16xf32>
    %992 = vector.extract_strided_slice %983 {offsets = [0, 1], sizes = [16, 16], strides = [1, 1]} : vector<16x22xf32> to vector<16x16xf32>
    %993 = vector.broadcast %43 : f32 to vector<16x16xf32>
    %994 = arith.mulf %992, %993 : vector<16x16xf32>
    %995 = vector.extract_strided_slice %984 {offsets = [0, 1], sizes = [16, 16], strides = [1, 1]} : vector<16x22xf32> to vector<16x16xf32>
    %996 = vector.broadcast %92 : f32 to vector<16x16xf32>
    %997 = arith.mulf %995, %996 : vector<16x16xf32>
    %998 = arith.addf %994, %997 : vector<16x16xf32>
    %999 = arith.addf %991, %998 : vector<16x16xf32>
    %1000 = vector.extract_strided_slice %983 {offsets = [0, 2], sizes = [16, 16], strides = [1, 1]} : vector<16x22xf32> to vector<16x16xf32>
    %1001 = vector.broadcast %44 : f32 to vector<16x16xf32>
    %1002 = arith.mulf %1000, %1001 : vector<16x16xf32>
    %1003 = vector.extract_strided_slice %984 {offsets = [0, 2], sizes = [16, 16], strides = [1, 1]} : vector<16x22xf32> to vector<16x16xf32>
    %1004 = vector.broadcast %93 : f32 to vector<16x16xf32>
    %1005 = arith.mulf %1003, %1004 : vector<16x16xf32>
    %1006 = arith.addf %1002, %1005 : vector<16x16xf32>
    %1007 = arith.addf %999, %1006 : vector<16x16xf32>
    %1008 = vector.extract_strided_slice %983 {offsets = [0, 3], sizes = [16, 16], strides = [1, 1]} : vector<16x22xf32> to vector<16x16xf32>
    %1009 = vector.broadcast %45 : f32 to vector<16x16xf32>
    %1010 = arith.mulf %1008, %1009 : vector<16x16xf32>
    %1011 = vector.extract_strided_slice %984 {offsets = [0, 3], sizes = [16, 16], strides = [1, 1]} : vector<16x22xf32> to vector<16x16xf32>
    %1012 = vector.broadcast %94 : f32 to vector<16x16xf32>
    %1013 = arith.mulf %1011, %1012 : vector<16x16xf32>
    %1014 = arith.addf %1010, %1013 : vector<16x16xf32>
    %1015 = arith.addf %1007, %1014 : vector<16x16xf32>
    %1016 = vector.extract_strided_slice %983 {offsets = [0, 4], sizes = [16, 16], strides = [1, 1]} : vector<16x22xf32> to vector<16x16xf32>
    %1017 = vector.broadcast %46 : f32 to vector<16x16xf32>
    %1018 = arith.mulf %1016, %1017 : vector<16x16xf32>
    %1019 = vector.extract_strided_slice %984 {offsets = [0, 4], sizes = [16, 16], strides = [1, 1]} : vector<16x22xf32> to vector<16x16xf32>
    %1020 = vector.broadcast %95 : f32 to vector<16x16xf32>
    %1021 = arith.mulf %1019, %1020 : vector<16x16xf32>
    %1022 = arith.addf %1018, %1021 : vector<16x16xf32>
    %1023 = arith.addf %1015, %1022 : vector<16x16xf32>
    %1024 = vector.extract_strided_slice %983 {offsets = [0, 5], sizes = [16, 16], strides = [1, 1]} : vector<16x22xf32> to vector<16x16xf32>
    %1025 = vector.broadcast %47 : f32 to vector<16x16xf32>
    %1026 = arith.mulf %1024, %1025 : vector<16x16xf32>
    %1027 = vector.extract_strided_slice %984 {offsets = [0, 5], sizes = [16, 16], strides = [1, 1]} : vector<16x22xf32> to vector<16x16xf32>
    %1028 = vector.broadcast %96 : f32 to vector<16x16xf32>
    %1029 = arith.mulf %1027, %1028 : vector<16x16xf32>
    %1030 = arith.addf %1026, %1029 : vector<16x16xf32>
    %1031 = arith.addf %1023, %1030 : vector<16x16xf32>
    %1032 = vector.extract_strided_slice %983 {offsets = [0, 6], sizes = [16, 16], strides = [1, 1]} : vector<16x22xf32> to vector<16x16xf32>
    %1033 = vector.broadcast %48 : f32 to vector<16x16xf32>
    %1034 = arith.mulf %1032, %1033 : vector<16x16xf32>
    %1035 = vector.extract_strided_slice %984 {offsets = [0, 6], sizes = [16, 16], strides = [1, 1]} : vector<16x22xf32> to vector<16x16xf32>
    %1036 = vector.broadcast %97 : f32 to vector<16x16xf32>
    %1037 = arith.mulf %1035, %1036 : vector<16x16xf32>
    %1038 = arith.addf %1034, %1037 : vector<16x16xf32>
    %1039 = arith.addf %1031, %1038 : vector<16x16xf32>
    %1040 = arith.addf %924, %1039 : vector<16x16xf32>
    %1041 = arith.addf %1040, %982 : vector<16x16xf32>
    %1042 = vector.broadcast %98 : f32 to vector<16x16xf32>
    %1043 = arith.addf %1041, %1042 : vector<16x16xf32>
    %c1_342 = arith.constant 1 : index
    %c0_343 = arith.constant 0 : index
    %c0_344 = arith.constant 0 : index
    %c0_345 = arith.constant 0 : index
    %1044 = vector.load %arg5[%c1_342, %c0_343, %c0_344, %c0_345] : memref<2x1x16x16xf32, #tpu.memory_space<vmem>>, vector<1x1x16x16xf32>
    %1045 = vector.shape_cast %1044 : vector<1x1x16x16xf32> to vector<16x16xf32>
    %1046 = vector.shape_cast %1043 : vector<16x16xf32> to vector<1x1x16x16xf32>
    tpu.vector_store %arg5[%c1_342, %c0_343, %c0_344, %c0_345], %1046 {strides = array<i32>} : memref<2x1x16x16xf32, #tpu.memory_space<vmem>>, vector<1x1x16x16xf32>,
    return
  }
  func.func @transform_0(%arg0: i32) -> (i32, i32, i32, i32) {
    %c0_i32 = arith.constant 0 : i32
    %c0_i32_0 = arith.constant 0 : i32
    %c0_i32_1 = arith.constant 0 : i32
    %c0_i32_2 = arith.constant 0 : i32
    return %arg0, %c0_i32, %c0_i32_0, %c0_i32_1 : i32, i32, i32, i32
  }
  func.func @transform_1(%arg0: i32) -> i32 {
    %c0_i32 = arith.constant 0 : i32
    %c0_i32_0 = arith.constant 0 : i32
    return %c0_i32 : i32
  }
  func.func @transform_2(%arg0: i32) -> i32 {
    %c0_i32 = arith.constant 0 : i32
    %c0_i32_0 = arith.constant 0 : i32
    return %c0_i32 : i32
  }
  func.func @transform_3(%arg0: i32) -> i32 {
    %c0_i32 = arith.constant 0 : i32
    %c0_i32_0 = arith.constant 0 : i32
    return %c0_i32 : i32
  }
  func.func @transform_4(%arg0: i32) -> (i32, i32, i32, i32) {
    %c0_i32 = arith.constant 0 : i32
    %c0_i32_0 = arith.constant 0 : i32
    %c0_i32_1 = arith.constant 0 : i32
    %c0_i32_2 = arith.constant 0 : i32
    return %arg0, %c0_i32, %c0_i32_0, %c0_i32_1 : i32, i32, i32, i32
  }
}

</mosaic_0001>

<llo_original>
// kernel: tpu_custom_call.1
$region0: #{tpu_custom_call.1}
  #allocation0 [shape = 'u32[]', space=smem, size = 0x4, offset = 0x4, fixed_abs, tag = 'smem constant byte address 0x4 - core index']
  #allocation1 [shape = 'u32[144,128]{1,0:T(1,128)}', space=vmem, size = 0x12000, scoped, tag = 'internal scratch']
  #allocation2 [shape = 'f32[22,22]{1,0:T(8,128)}', space=vmem, size = 0x3000, scoped, tag = 'scratch operand']
  #allocation3 [shape = 'f32[22,22]{1,0:T(8,128)}', space=vmem, size = 0x3000, scoped, tag = 'scratch operand']
  #allocation4 [shape = 'f32[1]{0:T(128)S(6)}', space=smem, size = 0x200, scoped, tag = 'scoped memory for tpu_custom_call.1']
  %s0 = inlined_call_operand.hbm [shape: f32[2,4,16,16], index: 0, kind: input, shape index: {}]
  %s1 = inlined_call_operand.vmem [shape: f32[49], index: 1, kind: input, shape index: {}]
  %s2 = inlined_call_operand.vmem [shape: f32[49], index: 2, kind: input, shape index: {}]
  %s3 = inlined_call_operand.<no memory space> [shape: f32[1], index: 3, kind: input, shape index: {}]
  %s4 = inlined_call_operand.hbm [shape: f32[2,1,16,16], index: 4, kind: output, shape index: {}]
  %s5 = sld [smem:[#allocation0]]
  $region38: #{tpu_custom_call.1} parent=0
    _
  %s7 = ssub.s32 1, %s5
  %s8 = scalar_select 0, %s7, %s5
  %9 = sst [smem:[#allocation4]] %s3
  $region1: #{tpu_custom_call.1} parent=0
    #allocation5 [shape = 'u8[65536]{0}', space=vmem, size = 0x10000, scoped, tag = 'input window, operand 0, single buffered']
    #allocation6 [shape = 's32[1]{0}', space=sflag, size = 0x4, scoped, tag = 'scoped memory for tpu_custom_call.1']
    #allocation7 [shape = 's32[1]{0}', space=sflag, size = 0x4, scoped, tag = 'scoped memory for tpu_custom_call.1']
    #allocation8 [shape = 's32[1]{0}', space=sflag, size = 0x4, scoped, tag = 'scoped memory for tpu_custom_call.1']
    #allocation9 [shape = 'u8[512]{0}', space=smem, size = 0x200, scoped, tag = 'input window, operand 1, single buffered']
    #allocation10 [shape = 'u8[512]{0}', space=smem, size = 0x200, scoped, tag = 'input window, operand 2, single buffered']
    #allocation11 [shape = 's32[1]{0}', space=sflag, size = 0x4, scoped, tag = 'scoped memory for tpu_custom_call.1']
    #allocation12 [shape = 'u8[16384]{0}', space=vmem, size = 0x4000, scoped, tag = 'output window, operand 0, single buffered']
    %10 = vsyncpa [#allocation6], 0
    %11 = vsyncpa [#allocation8], 0
    %12 = vsyncpa [#allocation11], 0
    %13 = vsyncpa [#allocation7], 0
    // Predicated region
    $region2: #{tpu_custom_call.1} parent=1 // pred_check
      _
    $region3: #{tpu_custom_call.1} parent=1 // pred_check_branch
      %15 = sbr.rel (0) target = $region5
    $region4: #{tpu_custom_call.1} parent=1 // pred_region
      %s17 = ssub.s32 2048, 2048
      %18 = vsyncadd [#allocation6], %s17
      %s19 = sshll.u32 [#allocation5], 4
      %s20 = int_to_ptr.vmem [resolvable:$true] %s19
      %25 = dma.hbm_to_vmem [thread:$0]  %s0, 2048, %s20, [#allocation6], 128, 128, 8
    $region5: #{tpu_custom_call.1} parent=1 // pred_fallthru
      _
    // Predicated region
    $region6: #{tpu_custom_call.1} parent=1 // pred_check
      _
    $region7: #{tpu_custom_call.1} parent=1 // pred_check_branch
      %27 = sbr.rel (0) target = $region9
    $region8: #{tpu_custom_call.1} parent=1 // pred_region
      %s29 = ssub.s32 16, 16
      %30 = vsyncadd [#allocation8], %s29
      %s32 = sshll.u32 %s1, 4
      %s33 = int_to_ptr.vmem [resolvable:$true] %s32
      %35 = dma.vmem_to_smem %s33, 16, [#allocation9], [#allocation8]
    $region9: #{tpu_custom_call.1} parent=1 // pred_fallthru
      _
    // Predicated region
    $region10: #{tpu_custom_call.1} parent=1 // pred_check
      _
    $region11: #{tpu_custom_call.1} parent=1 // pred_check_branch
      %37 = sbr.rel (0) target = $region13
    $region12: #{tpu_custom_call.1} parent=1 // pred_region
      %s39 = ssub.s32 16, 16
      %40 = vsyncadd [#allocation11], %s39
      %s42 = sshll.u32 %s2, 4
      %s43 = int_to_ptr.vmem [resolvable:$true] %s42
      %45 = dma.vmem_to_smem %s43, 16, [#allocation10], [#allocation11]
    $region13: #{tpu_custom_call.1} parent=1 // pred_fallthru
      _
    // Predicated region
    $region14: #{tpu_custom_call.1} parent=1 // pred_check
      _
    $region15: #{tpu_custom_call.1} parent=1 // pred_check_branch
      %47 = sbr.rel (0) target = $region17
    $region16: #{tpu_custom_call.1} parent=1 // pred_region
      _
    $region17: #{tpu_custom_call.1} parent=1 // pred_fallthru
      _
    // Predicated region
    $region18: #{tpu_custom_call.1} parent=1 // pred_check
      _
    $region19: #{tpu_custom_call.1} parent=1 // pred_check_branch
      %49 = sbr.rel (0) target = $region21
    $region20: #{tpu_custom_call.1} parent=1 // pred_region
      %50 = dma.done [#allocation6], 2048
    $region21: #{tpu_custom_call.1} parent=1 // pred_fallthru
      _
    // Predicated region
    $region22: #{tpu_custom_call.1} parent=1 // pred_check
      _
    $region23: #{tpu_custom_call.1} parent=1 // pred_check_branch
      %52 = sbr.rel (0) target = $region25
    $region24: #{tpu_custom_call.1} parent=1 // pred_region
      %53 = dma.done [#allocation8], 16
    $region25: #{tpu_custom_call.1} parent=1 // pred_fallthru
      _
    // Predicated region
    $region26: #{tpu_custom_call.1} parent=1 // pred_check
      _
    $region27: #{tpu_custom_call.1} parent=1 // pred_check_branch
      %55 = sbr.rel (0) target = $region29
    $region28: #{tpu_custom_call.1} parent=1 // pred_region
      %56 = dma.done [#allocation11], 16
    $region29: #{tpu_custom_call.1} parent=1 // pred_fallthru
      _
    %57 = sfence
    %s58 = sld [smem:[#allocation9]]
    %s59 = sld [smem:[#allocation9 + $0x1]]
    %s60 = sld [smem:[#allocation9 + $0x2]]
    %s61 = sld [smem:[#allocation9 + $0x3]]
    %s62 = sld [smem:[#allocation9 + $0x4]]
    %s63 = sld [smem:[#allocation9 + $0x5]]
    %s64 = sld [smem:[#allocation9 + $0x6]]
    %s65 = sld [smem:[#allocation9 + $0x7]]
    %s66 = sld [smem:[#allocation9 + $0x8]]
    %s67 = sld [smem:[#allocation9 + $0x9]]
    %s68 = sld [smem:[#allocation9 + $0xa]]
    %s69 = sld [smem:[#allocation9 + $0xb]]
    %s70 = sld [smem:[#allocation9 + $0xc]]
    %s71 = sld [smem:[#allocation9 + $0xd]]
    %s72 = sld [smem:[#allocation9 + $0xe]]
    %s73 = sld [smem:[#allocation9 + $0xf]]
    %s74 = sld [smem:[#allocation9 + $0x10]]
    %s75 = sld [smem:[#allocation9 + $0x11]]
    %s76 = sld [smem:[#allocation9 + $0x12]]
    %s77 = sld [smem:[#allocation9 + $0x13]]
    %s78 = sld [smem:[#allocation9 + $0x14]]
    %s79 = sld [smem:[#allocation9 + $0x15]]
    %s80 = sld [smem:[#allocation9 + $0x16]]
    %s81 = sld [smem:[#allocation9 + $0x17]]
    %s82 = sld [smem:[#allocation9 + $0x18]]
    %s83 = sld [smem:[#allocation9 + $0x19]]
    %s84 = sld [smem:[#allocation9 + $0x1a]]
    %s85 = sld [smem:[#allocation9 + $0x1b]]
    %s86 = sld [smem:[#allocation9 + $0x1c]]
    %s87 = sld [smem:[#allocation9 + $0x1d]]
    %s88 = sld [smem:[#allocation9 + $0x1e]]
    %s89 = sld [smem:[#allocation9 + $0x1f]]
    %s90 = sld [smem:[#allocation9 + $0x20]]
    %s91 = sld [smem:[#allocation9 + $0x21]]
    %s92 = sld [smem:[#allocation9 + $0x22]]
    %s93 = sld [smem:[#allocation9 + $0x23]]
    %s94 = sld [smem:[#allocation9 + $0x24]]
    %s95 = sld [smem:[#allocation9 + $0x25]]
    %s96 = sld [smem:[#allocation9 + $0x26]]
    %s97 = sld [smem:[#allocation9 + $0x27]]
    %s98 = sld [smem:[#allocation9 + $0x28]]
    %s99 = sld [smem:[#allocation9 + $0x29]]
    %s100 = sld [smem:[#allocation9 + $0x2a]]
    %s101 = sld [smem:[#allocation9 + $0x2b]]
    %s102 = sld [smem:[#allocation9 + $0x2c]]
    %s103 = sld [smem:[#allocation9 + $0x2d]]
    %s104 = sld [smem:[#allocation9 + $0x2e]]
    %s105 = sld [smem:[#allocation9 + $0x2f]]
    %s106 = sld [smem:[#allocation9 + $0x30]]
    %s107 = sld [smem:[#allocation10]]
    %s108 = sld [smem:[#allocation10 + $0x1]]
    %s109 = sld [smem:[#allocation10 + $0x2]]
    %s110 = sld [smem:[#allocation10 + $0x3]]
    %s111 = sld [smem:[#allocation10 + $0x4]]
    %s112 = sld [smem:[#allocation10 + $0x5]]
    %s113 = sld [smem:[#allocation10 + $0x6]]
    %s114 = sld [smem:[#allocation10 + $0x7]]
    %s115 = sld [smem:[#allocation10 + $0x8]]
    %s116 = sld [smem:[#allocation10 + $0x9]]
    %s117 = sld [smem:[#allocation10 + $0xa]]
    %s118 = sld [smem:[#allocation10 + $0xb]]
    %s119 = sld [smem:[#allocation10 + $0xc]]
    %s120 = sld [smem:[#allocation10 + $0xd]]
    %s121 = sld [smem:[#allocation10 + $0xe]]
    %s122 = sld [smem:[#allocation10 + $0xf]]
    %s123 = sld [smem:[#allocation10 + $0x10]]
    %s124 = sld [smem:[#allocation10 + $0x11]]
    %s125 = sld [smem:[#allocation10 + $0x12]]
    %s126 = sld [smem:[#allocation10 + $0x13]]
    %s127 = sld [smem:[#allocation10 + $0x14]]
    %s128 = sld [smem:[#allocation10 + $0x15]]
    %s129 = sld [smem:[#allocation10 + $0x16]]
    %s130 = sld [smem:[#allocation10 + $0x17]]
    %s131 = sld [smem:[#allocation10 + $0x18]]
    %s132 = sld [smem:[#allocation10 + $0x19]]
    %s133 = sld [smem:[#allocation10 + $0x1a]]
    %s134 = sld [smem:[#allocation10 + $0x1b]]
    %s135 = sld [smem:[#allocation10 + $0x1c]]
    %s136 = sld [smem:[#allocation10 + $0x1d]]
    %s137 = sld [smem:[#allocation10 + $0x1e]]
    %s138 = sld [smem:[#allocation10 + $0x1f]]
    %s139 = sld [smem:[#allocation10 + $0x20]]
    %s140 = sld [smem:[#allocation10 + $0x21]]
    %s141 = sld [smem:[#allocation10 + $0x22]]
    %s142 = sld [smem:[#allocation10 + $0x23]]
    %s143 = sld [smem:[#allocation10 + $0x24]]
    %s144 = sld [smem:[#allocation10 + $0x25]]
    %s145 = sld [smem:[#allocation10 + $0x26]]
    %s146 = sld [smem:[#allocation10 + $0x27]]
    %s147 = sld [smem:[#allocation10 + $0x28]]
    %s148 = sld [smem:[#allocation10 + $0x29]]
    %s149 = sld [smem:[#allocation10 + $0x2a]]
    %s150 = sld [smem:[#allocation10 + $0x2b]]
    %s151 = sld [smem:[#allocation10 + $0x2c]]
    %s152 = sld [smem:[#allocation10 + $0x2d]]
    %s153 = sld [smem:[#allocation10 + $0x2e]]
    %s154 = sld [smem:[#allocation10 + $0x2f]]
    %s155 = sld [smem:[#allocation10 + $0x30]]
    %s156 = sld [smem:[#allocation4]]
    %v157 = vld [vmem:[#allocation5] sm:$0xff]
    %v158 = vld [vmem:[#allocation5 + $0x8] sm:$0xff]
    %s159 = scalar_lea.vmem [#allocation5], 16
    %v160 = vld [vmem:[%s159] sm:$0xff]
    %v161 = vld [vmem:[%s159 + $0x8] sm:$0xff]
    %v162 = vadd.f32 %v157, %v160
    %v163 = vadd.f32 %v158, %v161
    %v164 = vmax.f32 %v157, %v160
    %v165 = vmax.f32 %v158, %v161
    %s166 = scalar_lea.vmem [#allocation5], 32
    %v167 = vld [vmem:[%s166] sm:$0xff]
    %v168 = vld [vmem:[%s166 + $0x8] sm:$0xff]
    %v169 = vadd.f32 %v162, %v167
    %v170 = vadd.f32 %v163, %v168
    %v171 = vmax.f32 %v164, %v167
    %v172 = vmax.f32 %v165, %v168
    %s173 = scalar_lea.vmem [#allocation5], 48
    %v174 = vld [vmem:[%s173] sm:$0xff]
    %v175 = vld [vmem:[%s173 + $0x8] sm:$0xff]
    %v176 = vadd.f32 %v169, %v174
    %v177 = vadd.f32 %v170, %v175
    %v178 = vmax.f32 %v171, %v174
    %v179 = vmax.f32 %v172, %v175
    %182 = vrot.lane.b32.xlu0 %v176, 3
    %v183 = vpop.permute.xlu0 %182
    %184 = vrot.lane.b32.xlu0 %v177, 3
    %v185 = vpop.permute.xlu0 %184
    %vm188 = vcmask 154648
    %189 = vst.msk [vmem:[#allocation2 + $0x3] sm:$0xff] %vm188, %v183
    %190 = vst.msk [vmem:[#allocation2 + $0xb] sm:$0xff] %vm188, %v185
    %193 = vrot.lane.b32.xlu0 %v178, 3
    %v194 = vpop.permute.xlu0 %193
    %195 = vrot.lane.b32.xlu0 %v179, 3
    %v196 = vpop.permute.xlu0 %195
    %199 = vst.msk [vmem:[#allocation3 + $0x3] sm:$0xff] %vm188, %v194
    %200 = vst.msk [vmem:[#allocation3 + $0xb] sm:$0xff] %vm188, %v196
    %v201 = vld [vmem:[#allocation2 + $0x6] sm:$0x1]
    %vm202 = vcmask 147480
    %203 = vst.msk [vmem:[#allocation2] sm:$0x1] %vm202, %v201
    %v204 = vld [vmem:[#allocation2 + $0x11] sm:$0x1]
    %205 = vst.msk [vmem:[#allocation2 + $0x13] sm:$0x1] %vm202, %v204
    %v206 = vld [vmem:[#allocation2 + $0x5] sm:$0x1]
    %207 = vst.msk [vmem:[#allocation2 + $0x1] sm:$0x1] %vm202, %v206
    %v208 = vld [vmem:[#allocation2 + $0x10] sm:$0x1]
    %209 = vst.msk [vmem:[#allocation2 + $0x14] sm:$0x1] %vm202, %v208
    %v210 = vld [vmem:[#allocation2 + $0x4] sm:$0x1]
    %211 = vst.msk [vmem:[#allocation2 + $0x2] sm:$0x1] %vm202, %v210
    %v212 = vld [vmem:[#allocation2 + $0xf] sm:$0x1]
    %213 = vst.msk [vmem:[#allocation2 + $0x15] sm:$0x1] %vm202, %v212
    %v214 = vld [vmem:[#allocation2] sm:$0xff]
    %v215 = vld [vmem:[#allocation2 + $0x8] sm:$0xff]
    %v216 = vld [vmem:[#allocation2 + $0x10] sm:$0x3f]
    %220 = vrot.lane.b32.xlu0 %v214, 122
    %v221 = vpop.permute.xlu0 %220
    %222 = vrot.lane.b32.xlu0 %v215, 122
    %v223 = vpop.permute.xlu0 %222
    %224 = vrot.lane.b32.xlu0 %v216, 122
    %v225 = vpop.permute.xlu0 %224
    %vm229 = vcmask 7168
    %230 = vst.msk [vmem:[#allocation2] sm:$0xff] %vm229, %v221
    %231 = vst.msk [vmem:[#allocation2 + $0x8] sm:$0xff] %vm229, %v223
    %vm232 = vcmask 5120
    %233 = vst.msk [vmem:[#allocation2 + $0x10] sm:$0x3f] %vm232, %v225
    %v234 = vld [vmem:[#allocation2] sm:$0xff]
    %v235 = vld [vmem:[#allocation2 + $0x8] sm:$0xff]
    %v236 = vld [vmem:[#allocation2 + $0x10] sm:$0x3f]
    %240 = vrot.lane.b32.xlu0 %v234, 2
    %v241 = vpop.permute.xlu0 %240
    %242 = vrot.lane.b32.xlu0 %v235, 2
    %v243 = vpop.permute.xlu0 %242
    %244 = vrot.lane.b32.xlu0 %v236, 2
    %v245 = vpop.permute.xlu0 %244
    %vm249 = vcmask 162968
    %250 = vst.msk [vmem:[#allocation2] sm:$0xff] %vm249, %v241
    %251 = vst.msk [vmem:[#allocation2 + $0x8] sm:$0xff] %vm249, %v243
    %vm252 = vcmask 160920
    %253 = vst.msk [vmem:[#allocation2 + $0x10] sm:$0x3f] %vm252, %v245
    %v254 = vld [vmem:[#allocation2] sm:$0xff]
    %v255 = vld [vmem:[#allocation2 + $0x8] sm:$0xff]
    %v256 = vld [vmem:[#allocation2 + $0x10] sm:$0x3f]
    %260 = vrot.lane.b32.xlu0 %v254, 124
    %v261 = vpop.permute.xlu0 %260
    %262 = vrot.lane.b32.xlu0 %v255, 124
    %v263 = vpop.permute.xlu0 %262
    %264 = vrot.lane.b32.xlu0 %v256, 124
    %v265 = vpop.permute.xlu0 %264
    %vm269 = vcmask 15368
    %270 = vst.msk [vmem:[#allocation2] sm:$0xff] %vm269, %v261
    %271 = vst.msk [vmem:[#allocation2 + $0x8] sm:$0xff] %vm269, %v263
    %vm272 = vcmask 13320
    %273 = vst.msk [vmem:[#allocation2 + $0x10] sm:$0x3f] %vm272, %v265
    %v274 = vld [vmem:[#allocation2] sm:$0xff]
    %v275 = vld [vmem:[#allocation2 + $0x8] sm:$0xff]
    %v276 = vld [vmem:[#allocation2 + $0x10] sm:$0x3f]
    %280 = vrot.lane.b32.xlu0 %v274, 4
    %v281 = vpop.permute.xlu0 %280
    %282 = vrot.lane.b32.xlu0 %v275, 4
    %v283 = vpop.permute.xlu0 %282
    %284 = vrot.lane.b32.xlu0 %v276, 4
    %v285 = vpop.permute.xlu0 %284
    %vm289 = vcmask 171168
    %290 = vst.msk [vmem:[#allocation2] sm:$0xff] %vm289, %v281
    %291 = vst.msk [vmem:[#allocation2 + $0x8] sm:$0xff] %vm289, %v283
    %vm292 = vcmask 169120
    %293 = vst.msk [vmem:[#allocation2 + $0x10] sm:$0x3f] %vm292, %v285
    %v294 = vld [vmem:[#allocation2] sm:$0xff]
    %v295 = vld [vmem:[#allocation2 + $0x8] sm:$0xff]
    %v296 = vld [vmem:[#allocation2 + $0x10] sm:$0x3f]
    %300 = vrot.lane.b32.xlu0 %v294, 126
    %v301 = vpop.permute.xlu0 %300
    %302 = vrot.lane.b32.xlu0 %v295, 126
    %v303 = vpop.permute.xlu0 %302
    %304 = vrot.lane.b32.xlu0 %v296, 126
    %v305 = vpop.permute.xlu0 %304
    %vm309 = vcmask 23568
    %310 = vst.msk [vmem:[#allocation2] sm:$0xff] %vm309, %v301
    %311 = vst.msk [vmem:[#allocation2 + $0x8] sm:$0xff] %vm309, %v303
    %vm312 = vcmask 21520
    %313 = vst.msk [vmem:[#allocation2 + $0x10] sm:$0x3f] %vm312, %v305
    %v314 = vld [vmem:[#allocation2] sm:$0xff]
    %v315 = vld [vmem:[#allocation2 + $0x8] sm:$0xff]
    %v316 = vld [vmem:[#allocation2 + $0x10] sm:$0x3f]
    %320 = vrot.lane.b32.xlu0 %v314, 6
    %v321 = vpop.permute.xlu0 %320
    %322 = vrot.lane.b32.xlu0 %v315, 6
    %v323 = vpop.permute.xlu0 %322
    %324 = vrot.lane.b32.xlu0 %v316, 6
    %v325 = vpop.permute.xlu0 %324
    %vm329 = vcmask 179368
    %330 = vst.msk [vmem:[#allocation2] sm:$0xff] %vm329, %v321
    %331 = vst.msk [vmem:[#allocation2 + $0x8] sm:$0xff] %vm329, %v323
    %vm332 = vcmask 177320
    %333 = vst.msk [vmem:[#allocation2 + $0x10] sm:$0x3f] %vm332, %v325
    %v334 = vld [vmem:[#allocation3 + $0x6] sm:$0x1]
    %335 = vst.msk [vmem:[#allocation3] sm:$0x1] %vm202, %v334
    %v336 = vld [vmem:[#allocation3 + $0x11] sm:$0x1]
    %337 = vst.msk [vmem:[#allocation3 + $0x13] sm:$0x1] %vm202, %v336
    %v338 = vld [vmem:[#allocation3 + $0x5] sm:$0x1]
    %339 = vst.msk [vmem:[#allocation3 + $0x1] sm:$0x1] %vm202, %v338
    %v340 = vld [vmem:[#allocation3 + $0x10] sm:$0x1]
    %341 = vst.msk [vmem:[#allocation3 + $0x14] sm:$0x1] %vm202, %v340
    %v342 = vld [vmem:[#allocation3 + $0x4] sm:$0x1]
    %343 = vst.msk [vmem:[#allocation3 + $0x2] sm:$0x1] %vm202, %v342
    %v344 = vld [vmem:[#allocation3 + $0xf] sm:$0x1]
    %345 = vst.msk [vmem:[#allocation3 + $0x15] sm:$0x1] %vm202, %v344
    %v346 = vld [vmem:[#allocation3] sm:$0xff]
    %v347 = vld [vmem:[#allocation3 + $0x8] sm:$0xff]
    %v348 = vld [vmem:[#allocation3 + $0x10] sm:$0x3f]
    %352 = vrot.lane.b32.xlu0 %v346, 122
    %v353 = vpop.permute.xlu0 %352
    %354 = vrot.lane.b32.xlu0 %v347, 122
    %v355 = vpop.permute.xlu0 %354
    %356 = vrot.lane.b32.xlu0 %v348, 122
    %v357 = vpop.permute.xlu0 %356
    %361 = vst.msk [vmem:[#allocation3] sm:$0xff] %vm229, %v353
    %362 = vst.msk [vmem:[#allocation3 + $0x8] sm:$0xff] %vm229, %v355
    %363 = vst.msk [vmem:[#allocation3 + $0x10] sm:$0x3f] %vm232, %v357
    %v364 = vld [vmem:[#allocation3] sm:$0xff]
    %v365 = vld [vmem:[#allocation3 + $0x8] sm:$0xff]
    %v366 = vld [vmem:[#allocation3 + $0x10] sm:$0x3f]
    %370 = vrot.lane.b32.xlu0 %v364, 2
    %v371 = vpop.permute.xlu0 %370
    %372 = vrot.lane.b32.xlu0 %v365, 2
    %v373 = vpop.permute.xlu0 %372
    %374 = vrot.lane.b32.xlu0 %v366, 2
    %v375 = vpop.permute.xlu0 %374
    %379 = vst.msk [vmem:[#allocation3] sm:$0xff] %vm249, %v371
    %380 = vst.msk [vmem:[#allocation3 + $0x8] sm:$0xff] %vm249, %v373
    %381 = vst.msk [vmem:[#allocation3 + $0x10] sm:$0x3f] %vm252, %v375
    %v382 = vld [vmem:[#allocation3] sm:$0xff]
    %v383 = vld [vmem:[#allocation3 + $0x8] sm:$0xff]
    %v384 = vld [vmem:[#allocation3 + $0x10] sm:$0x3f]
    %388 = vrot.lane.b32.xlu0 %v382, 124
    %v389 = vpop.permute.xlu0 %388
    %390 = vrot.lane.b32.xlu0 %v383, 124
    %v391 = vpop.permute.xlu0 %390
    %392 = vrot.lane.b32.xlu0 %v384, 124
    %v393 = vpop.permute.xlu0 %392
    %397 = vst.msk [vmem:[#allocation3] sm:$0xff] %vm269, %v389
    %398 = vst.msk [vmem:[#allocation3 + $0x8] sm:$0xff] %vm269, %v391
    %399 = vst.msk [vmem:[#allocation3 + $0x10] sm:$0x3f] %vm272, %v393
    %v400 = vld [vmem:[#allocation3] sm:$0xff]
    %v401 = vld [vmem:[#allocation3 + $0x8] sm:$0xff]
    %v402 = vld [vmem:[#allocation3 + $0x10] sm:$0x3f]
    %406 = vrot.lane.b32.xlu0 %v400, 4
    %v407 = vpop.permute.xlu0 %406
    %408 = vrot.lane.b32.xlu0 %v401, 4
    %v409 = vpop.permute.xlu0 %408
    %410 = vrot.lane.b32.xlu0 %v402, 4
    %v411 = vpop.permute.xlu0 %410
    %415 = vst.msk [vmem:[#allocation3] sm:$0xff] %vm289, %v407
    %416 = vst.msk [vmem:[#allocation3 + $0x8] sm:$0xff] %vm289, %v409
    %417 = vst.msk [vmem:[#allocation3 + $0x10] sm:$0x3f] %vm292, %v411
    %v418 = vld [vmem:[#allocation3] sm:$0xff]
    %v419 = vld [vmem:[#allocation3 + $0x8] sm:$0xff]
    %v420 = vld [vmem:[#allocation3 + $0x10] sm:$0x3f]
    %424 = vrot.lane.b32.xlu0 %v418, 126
    %v425 = vpop.permute.xlu0 %424
    %426 = vrot.lane.b32.xlu0 %v419, 126
    %v427 = vpop.permute.xlu0 %426
    %428 = vrot.lane.b32.xlu0 %v420, 126
    %v429 = vpop.permute.xlu0 %428
    %433 = vst.msk [vmem:[#allocation3] sm:$0xff] %vm309, %v425
    %434 = vst.msk [vmem:[#allocation3 + $0x8] sm:$0xff] %vm309, %v427
    %435 = vst.msk [vmem:[#allocation3 + $0x10] sm:$0x3f] %vm312, %v429
    %v436 = vld [vmem:[#allocation3] sm:$0xff]
    %v437 = vld [vmem:[#allocation3 + $0x8] sm:$0xff]
    %v438 = vld [vmem:[#allocation3 + $0x10] sm:$0x3f]
    %442 = vrot.lane.b32.xlu0 %v436, 6
    %v443 = vpop.permute.xlu0 %442
    %444 = vrot.lane.b32.xlu0 %v437, 6
    %v445 = vpop.permute.xlu0 %444
    %446 = vrot.lane.b32.xlu0 %v438, 6
    %v447 = vpop.permute.xlu0 %446
    %451 = vst.msk [vmem:[#allocation3] sm:$0xff] %vm329, %v443
    %452 = vst.msk [vmem:[#allocation3 + $0x8] sm:$0xff] %vm329, %v445
    %453 = vst.msk [vmem:[#allocation3 + $0x10] sm:$0x3f] %vm332, %v447
    %v454 = vld [vmem:[#allocation2] sm:$0xff]
    %v455 = vld [vmem:[#allocation2 + $0x8] sm:$0xff]
    %v456 = vld [vmem:[#allocation3] sm:$0xff]
    %v457 = vld [vmem:[#allocation3 + $0x8] sm:$0xff]
    %v458 = vstv %s58
    %v459 = vmul.f32 %v454, %v458
    %v460 = vmul.f32 %v455, %v458
    %v461 = vstv %s107
    %v462 = vmul.f32 %v456, %v461
    %v463 = vmul.f32 %v457, %v461
    %v464 = vadd.f32 %v459, %v462
    %v465 = vadd.f32 %v460, %v463
    %v466 = vstv %s59
    %v467 = vmul.f32 %v454, %v466
    %v468 = vmul.f32 %v455, %v466
    %v469 = vstv %s108
    %v470 = vmul.f32 %v456, %v469
    %v471 = vmul.f32 %v457, %v469
    %v472 = vadd.f32 %v467, %v470
    %v473 = vadd.f32 %v468, %v471
    %476 = vrot.lane.b32.xlu0 %v472, 127
    %v477 = vpop.permute.xlu0 %476
    %478 = vrot.lane.b32.xlu0 %v473, 127
    %v479 = vpop.permute.xlu0 %478
    %v482 = vadd.f32 %v464, %v477
    %v483 = vadd.f32 %v465, %v479
    %v484 = vstv %s60
    %v485 = vmul.f32 %v454, %v484
    %v486 = vmul.f32 %v455, %v484
    %v487 = vstv %s109
    %v488 = vmul.f32 %v456, %v487
    %v489 = vmul.f32 %v457, %v487
    %v490 = vadd.f32 %v485, %v488
    %v491 = vadd.f32 %v486, %v489
    %494 = vrot.lane.b32.xlu0 %v490, 126
    %v495 = vpop.permute.xlu0 %494
    %496 = vrot.lane.b32.xlu0 %v491, 126
    %v497 = vpop.permute.xlu0 %496
    %v500 = vadd.f32 %v482, %v495
    %v501 = vadd.f32 %v483, %v497
    %v502 = vstv %s61
    %v503 = vmul.f32 %v454, %v502
    %v504 = vmul.f32 %v455, %v502
    %v505 = vstv %s110
    %v506 = vmul.f32 %v456, %v505
    %v507 = vmul.f32 %v457, %v505
    %v508 = vadd.f32 %v503, %v506
    %v509 = vadd.f32 %v504, %v507
    %512 = vrot.lane.b32.xlu0 %v508, 125
    %v513 = vpop.permute.xlu0 %512
    %514 = vrot.lane.b32.xlu0 %v509, 125
    %v515 = vpop.permute.xlu0 %514
    %v518 = vadd.f32 %v500, %v513
    %v519 = vadd.f32 %v501, %v515
    %v520 = vstv %s62
    %v521 = vmul.f32 %v454, %v520
    %v522 = vmul.f32 %v455, %v520
    %v523 = vstv %s111
    %v524 = vmul.f32 %v456, %v523
    %v525 = vmul.f32 %v457, %v523
    %v526 = vadd.f32 %v521, %v524
    %v527 = vadd.f32 %v522, %v525
    %530 = vrot.lane.b32.xlu0 %v526, 124
    %v531 = vpop.permute.xlu0 %530
    %532 = vrot.lane.b32.xlu0 %v527, 124
    %v533 = vpop.permute.xlu0 %532
    %v536 = vadd.f32 %v518, %v531
    %v537 = vadd.f32 %v519, %v533
    %v538 = vstv %s63
    %v539 = vmul.f32 %v454, %v538
    %v540 = vmul.f32 %v455, %v538
    %v541 = vstv %s112
    %v542 = vmul.f32 %v456, %v541
    %v543 = vmul.f32 %v457, %v541
    %v544 = vadd.f32 %v539, %v542
    %v545 = vadd.f32 %v540, %v543
    %548 = vrot.lane.b32.xlu0 %v544, 123
    %v549 = vpop.permute.xlu0 %548
    %550 = vrot.lane.b32.xlu0 %v545, 123
    %v551 = vpop.permute.xlu0 %550
    %v554 = vadd.f32 %v536, %v549
    %v555 = vadd.f32 %v537, %v551
    %v556 = vstv %s64
    %v557 = vmul.f32 %v454, %v556
    %v558 = vmul.f32 %v455, %v556
    %v559 = vstv %s113
    %v560 = vmul.f32 %v456, %v559
    %v561 = vmul.f32 %v457, %v559
    %v562 = vadd.f32 %v557, %v560
    %v563 = vadd.f32 %v558, %v561
    %566 = vrot.lane.b32.xlu0 %v562, 122
    %v567 = vpop.permute.xlu0 %566
    %568 = vrot.lane.b32.xlu0 %v563, 122
    %v569 = vpop.permute.xlu0 %568
    %v572 = vadd.f32 %v554, %v567
    %v573 = vadd.f32 %v555, %v569
    %v574 = vld [vmem:[#allocation2 + $0x1] sm:$0xff]
    %v575 = vld [vmem:[#allocation2 + $0x9] sm:$0xff]
    %v576 = vld [vmem:[#allocation3 + $0x1] sm:$0xff]
    %v577 = vld [vmem:[#allocation3 + $0x9] sm:$0xff]
    %v578 = vstv %s65
    %v579 = vmul.f32 %v574, %v578
    %v580 = vmul.f32 %v575, %v578
    %v581 = vstv %s114
    %v582 = vmul.f32 %v576, %v581
    %v583 = vmul.f32 %v577, %v581
    %v584 = vadd.f32 %v579, %v582
    %v585 = vadd.f32 %v580, %v583
    %v586 = vstv %s66
    %v587 = vmul.f32 %v574, %v586
    %v588 = vmul.f32 %v575, %v586
    %v589 = vstv %s115
    %v590 = vmul.f32 %v576, %v589
    %v591 = vmul.f32 %v577, %v589
    %v592 = vadd.f32 %v587, %v590
    %v593 = vadd.f32 %v588, %v591
    %596 = vrot.lane.b32.xlu0 %v592, 127
    %v597 = vpop.permute.xlu0 %596
    %598 = vrot.lane.b32.xlu0 %v593, 127
    %v599 = vpop.permute.xlu0 %598
    %v602 = vadd.f32 %v584, %v597
    %v603 = vadd.f32 %v585, %v599
    %v604 = vstv %s67
    %v605 = vmul.f32 %v574, %v604
    %v606 = vmul.f32 %v575, %v604
    %v607 = vstv %s116
    %v608 = vmul.f32 %v576, %v607
    %v609 = vmul.f32 %v577, %v607
    %v610 = vadd.f32 %v605, %v608
    %v611 = vadd.f32 %v606, %v609
    %614 = vrot.lane.b32.xlu0 %v610, 126
    %v615 = vpop.permute.xlu0 %614
    %616 = vrot.lane.b32.xlu0 %v611, 126
    %v617 = vpop.permute.xlu0 %616
    %v620 = vadd.f32 %v602, %v615
    %v621 = vadd.f32 %v603, %v617
    %v622 = vstv %s68
    %v623 = vmul.f32 %v574, %v622
    %v624 = vmul.f32 %v575, %v622
    %v625 = vstv %s117
    %v626 = vmul.f32 %v576, %v625
    %v627 = vmul.f32 %v577, %v625
    %v628 = vadd.f32 %v623, %v626
    %v629 = vadd.f32 %v624, %v627
    %632 = vrot.lane.b32.xlu0 %v628, 125
    %v633 = vpop.permute.xlu0 %632
    %634 = vrot.lane.b32.xlu0 %v629, 125
    %v635 = vpop.permute.xlu0 %634
    %v638 = vadd.f32 %v620, %v633
    %v639 = vadd.f32 %v621, %v635
    %v640 = vstv %s69
    %v641 = vmul.f32 %v574, %v640
    %v642 = vmul.f32 %v575, %v640
    %v643 = vstv %s118
    %v644 = vmul.f32 %v576, %v643
    %v645 = vmul.f32 %v577, %v643
    %v646 = vadd.f32 %v641, %v644
    %v647 = vadd.f32 %v642, %v645
    %650 = vrot.lane.b32.xlu0 %v646, 124
    %v651 = vpop.permute.xlu0 %650
    %652 = vrot.lane.b32.xlu0 %v647, 124
    %v653 = vpop.permute.xlu0 %652
    %v656 = vadd.f32 %v638, %v651
    %v657 = vadd.f32 %v639, %v653
    %v658 = vstv %s70
    %v659 = vmul.f32 %v574, %v658
    %v660 = vmul.f32 %v575, %v658
    %v661 = vstv %s119
    %v662 = vmul.f32 %v576, %v661
    %v663 = vmul.f32 %v577, %v661
    %v664 = vadd.f32 %v659, %v662
    %v665 = vadd.f32 %v660, %v663
    %668 = vrot.lane.b32.xlu0 %v664, 123
    %v669 = vpop.permute.xlu0 %668
    %670 = vrot.lane.b32.xlu0 %v665, 123
    %v671 = vpop.permute.xlu0 %670
    %v674 = vadd.f32 %v656, %v669
    %v675 = vadd.f32 %v657, %v671
    %v676 = vstv %s71
    %v677 = vmul.f32 %v574, %v676
    %v678 = vmul.f32 %v575, %v676
    %v679 = vstv %s120
    %v680 = vmul.f32 %v576, %v679
    %v681 = vmul.f32 %v577, %v679
    %v682 = vadd.f32 %v677, %v680
    %v683 = vadd.f32 %v678, %v681
    %686 = vrot.lane.b32.xlu0 %v682, 122
    %v687 = vpop.permute.xlu0 %686
    %688 = vrot.lane.b32.xlu0 %v683, 122
    %v689 = vpop.permute.xlu0 %688
    %v692 = vadd.f32 %v674, %v687
    %v693 = vadd.f32 %v675, %v689
    %v694 = vld [vmem:[#allocation2 + $0x2] sm:$0xff]
    %v695 = vld [vmem:[#allocation2 + $0xa] sm:$0xff]
    %v696 = vld [vmem:[#allocation3 + $0x2] sm:$0xff]
    %v697 = vld [vmem:[#allocation3 + $0xa] sm:$0xff]
    %v698 = vstv %s72
    %v699 = vmul.f32 %v694, %v698
    %v700 = vmul.f32 %v695, %v698
    %v701 = vstv %s121
    %v702 = vmul.f32 %v696, %v701
    %v703 = vmul.f32 %v697, %v701
    %v704 = vadd.f32 %v699, %v702
    %v705 = vadd.f32 %v700, %v703
    %v706 = vstv %s73
    %v707 = vmul.f32 %v694, %v706
    %v708 = vmul.f32 %v695, %v706
    %v709 = vstv %s122
    %v710 = vmul.f32 %v696, %v709
    %v711 = vmul.f32 %v697, %v709
    %v712 = vadd.f32 %v707, %v710
    %v713 = vadd.f32 %v708, %v711
    %716 = vrot.lane.b32.xlu0 %v712, 127
    %v717 = vpop.permute.xlu0 %716
    %718 = vrot.lane.b32.xlu0 %v713, 127
    %v719 = vpop.permute.xlu0 %718
    %v722 = vadd.f32 %v704, %v717
    %v723 = vadd.f32 %v705, %v719
    %v724 = vstv %s74
    %v725 = vmul.f32 %v694, %v724
    %v726 = vmul.f32 %v695, %v724
    %v727 = vstv %s123
    %v728 = vmul.f32 %v696, %v727
    %v729 = vmul.f32 %v697, %v727
    %v730 = vadd.f32 %v725, %v728
    %v731 = vadd.f32 %v726, %v729
    %734 = vrot.lane.b32.xlu0 %v730, 126
    %v735 = vpop.permute.xlu0 %734
    %736 = vrot.lane.b32.xlu0 %v731, 126
    %v737 = vpop.permute.xlu0 %736
    %v740 = vadd.f32 %v722, %v735
    %v741 = vadd.f32 %v723, %v737
    %v742 = vstv %s75
    %v743 = vmul.f32 %v694, %v742
    %v744 = vmul.f32 %v695, %v742
    %v745 = vstv %s124
    %v746 = vmul.f32 %v696, %v745
    %v747 = vmul.f32 %v697, %v745
    %v748 = vadd.f32 %v743, %v746
    %v749 = vadd.f32 %v744, %v747
    %752 = vrot.lane.b32.xlu0 %v748, 125
    %v753 = vpop.permute.xlu0 %752
    %754 = vrot.lane.b32.xlu0 %v749, 125
    %v755 = vpop.permute.xlu0 %754
    %v758 = vadd.f32 %v740, %v753
    %v759 = vadd.f32 %v741, %v755
    %v760 = vstv %s76
    %v761 = vmul.f32 %v694, %v760
    %v762 = vmul.f32 %v695, %v760
    %v763 = vstv %s125
    %v764 = vmul.f32 %v696, %v763
    %v765 = vmul.f32 %v697, %v763
    %v766 = vadd.f32 %v761, %v764
    %v767 = vadd.f32 %v762, %v765
    %770 = vrot.lane.b32.xlu0 %v766, 124
    %v771 = vpop.permute.xlu0 %770
    %772 = vrot.lane.b32.xlu0 %v767, 124
    %v773 = vpop.permute.xlu0 %772
    %v776 = vadd.f32 %v758, %v771
    %v777 = vadd.f32 %v759, %v773
    %v778 = vstv %s77
    %v779 = vmul.f32 %v694, %v778
    %v780 = vmul.f32 %v695, %v778
    %v781 = vstv %s126
    %v782 = vmul.f32 %v696, %v781
    %v783 = vmul.f32 %v697, %v781
    %v784 = vadd.f32 %v779, %v782
    %v785 = vadd.f32 %v780, %v783
    %788 = vrot.lane.b32.xlu0 %v784, 123
    %v789 = vpop.permute.xlu0 %788
    %790 = vrot.lane.b32.xlu0 %v785, 123
    %v791 = vpop.permute.xlu0 %790
    %v794 = vadd.f32 %v776, %v789
    %v795 = vadd.f32 %v777, %v791
    %v796 = vstv %s78
    %v797 = vmul.f32 %v694, %v796
    %v798 = vmul.f32 %v695, %v796
    %v799 = vstv %s127
    %v800 = vmul.f32 %v696, %v799
    %v801 = vmul.f32 %v697, %v799
    %v802 = vadd.f32 %v797, %v800
    %v803 = vadd.f32 %v798, %v801
    %806 = vrot.lane.b32.xlu0 %v802, 122
    %v807 = vpop.permute.xlu0 %806
    %808 = vrot.lane.b32.xlu0 %v803, 122
    %v809 = vpop.permute.xlu0 %808
    %v812 = vadd.f32 %v794, %v807
    %v813 = vadd.f32 %v795, %v809
    %v814 = vadd.f32 %v572, %v812
    %v815 = vadd.f32 %v573, %v813
    %v816 = vld [vmem:[#allocation2 + $0x3] sm:$0xff]
    %v817 = vld [vmem:[#allocation2 + $0xb] sm:$0xff]
    %v818 = vld [vmem:[#allocation3 + $0x3] sm:$0xff]
    %v819 = vld [vmem:[#allocation3 + $0xb] sm:$0xff]
    %v820 = vstv %s79
    %v821 = vmul.f32 %v816, %v820
    %v822 = vmul.f32 %v817, %v820
    %v823 = vstv %s128
    %v824 = vmul.f32 %v818, %v823
    %v825 = vmul.f32 %v819, %v823
    %v826 = vadd.f32 %v821, %v824
    %v827 = vadd.f32 %v822, %v825
    %v828 = vstv %s80
    %v829 = vmul.f32 %v816, %v828
    %v830 = vmul.f32 %v817, %v828
    %v831 = vstv %s129
    %v832 = vmul.f32 %v818, %v831
    %v833 = vmul.f32 %v819, %v831
    %v834 = vadd.f32 %v829, %v832
    %v835 = vadd.f32 %v830, %v833
    %838 = vrot.lane.b32.xlu0 %v834, 127
    %v839 = vpop.permute.xlu0 %838
    %840 = vrot.lane.b32.xlu0 %v835, 127
    %v841 = vpop.permute.xlu0 %840
    %v844 = vadd.f32 %v826, %v839
    %v845 = vadd.f32 %v827, %v841
    %v846 = vstv %s81
    %v847 = vmul.f32 %v816, %v846
    %v848 = vmul.f32 %v817, %v846
    %v849 = vstv %s130
    %v850 = vmul.f32 %v818, %v849
    %v851 = vmul.f32 %v819, %v849
    %v852 = vadd.f32 %v847, %v850
    %v853 = vadd.f32 %v848, %v851
    %856 = vrot.lane.b32.xlu0 %v852, 126
    %v857 = vpop.permute.xlu0 %856
    %858 = vrot.lane.b32.xlu0 %v853, 126
    %v859 = vpop.permute.xlu0 %858
    %v862 = vadd.f32 %v844, %v857
    %v863 = vadd.f32 %v845, %v859
    %v864 = vstv %s82
    %v865 = vmul.f32 %v816, %v864
    %v866 = vmul.f32 %v817, %v864
    %v867 = vstv %s131
    %v868 = vmul.f32 %v818, %v867
    %v869 = vmul.f32 %v819, %v867
    %v870 = vadd.f32 %v865, %v868
    %v871 = vadd.f32 %v866, %v869
    %874 = vrot.lane.b32.xlu0 %v870, 125
    %v875 = vpop.permute.xlu0 %874
    %876 = vrot.lane.b32.xlu0 %v871, 125
    %v877 = vpop.permute.xlu0 %876
    %v880 = vadd.f32 %v862, %v875
    %v881 = vadd.f32 %v863, %v877
    %v882 = vstv %s83
    %v883 = vmul.f32 %v816, %v882
    %v884 = vmul.f32 %v817, %v882
    %v885 = vstv %s132
    %v886 = vmul.f32 %v818, %v885
    %v887 = vmul.f32 %v819, %v885
    %v888 = vadd.f32 %v883, %v886
    %v889 = vadd.f32 %v884, %v887
    %892 = vrot.lane.b32.xlu0 %v888, 124
    %v893 = vpop.permute.xlu0 %892
    %894 = vrot.lane.b32.xlu0 %v889, 124
    %v895 = vpop.permute.xlu0 %894
    %v898 = vadd.f32 %v880, %v893
    %v899 = vadd.f32 %v881, %v895
    %v900 = vstv %s84
    %v901 = vmul.f32 %v816, %v900
    %v902 = vmul.f32 %v817, %v900
    %v903 = vstv %s133
    %v904 = vmul.f32 %v818, %v903
    %v905 = vmul.f32 %v819, %v903
    %v906 = vadd.f32 %v901, %v904
    %v907 = vadd.f32 %v902, %v905
    %910 = vrot.lane.b32.xlu0 %v906, 123
    %v911 = vpop.permute.xlu0 %910
    %912 = vrot.lane.b32.xlu0 %v907, 123
    %v913 = vpop.permute.xlu0 %912
    %v916 = vadd.f32 %v898, %v911
    %v917 = vadd.f32 %v899, %v913
    %v918 = vstv %s85
    %v919 = vmul.f32 %v816, %v918
    %v920 = vmul.f32 %v817, %v918
    %v921 = vstv %s134
    %v922 = vmul.f32 %v818, %v921
    %v923 = vmul.f32 %v819, %v921
    %v924 = vadd.f32 %v919, %v922
    %v925 = vadd.f32 %v920, %v923
    %928 = vrot.lane.b32.xlu0 %v924, 122
    %v929 = vpop.permute.xlu0 %928
    %930 = vrot.lane.b32.xlu0 %v925, 122
    %v931 = vpop.permute.xlu0 %930
    %v934 = vadd.f32 %v916, %v929
    %v935 = vadd.f32 %v917, %v931
    %v936 = vadd.f32 %v692, %v934
    %v937 = vadd.f32 %v693, %v935
    %v938 = vld [vmem:[#allocation2 + $0x4] sm:$0xff]
    %v939 = vld [vmem:[#allocation2 + $0xc] sm:$0xff]
    %v940 = vld [vmem:[#allocation3 + $0x4] sm:$0xff]
    %v941 = vld [vmem:[#allocation3 + $0xc] sm:$0xff]
    %v942 = vstv %s86
    %v943 = vmul.f32 %v938, %v942
    %v944 = vmul.f32 %v939, %v942
    %v945 = vstv %s135
    %v946 = vmul.f32 %v940, %v945
    %v947 = vmul.f32 %v941, %v945
    %v948 = vadd.f32 %v943, %v946
    %v949 = vadd.f32 %v944, %v947
    %v950 = vstv %s87
    %v951 = vmul.f32 %v938, %v950
    %v952 = vmul.f32 %v939, %v950
    %v953 = vstv %s136
    %v954 = vmul.f32 %v940, %v953
    %v955 = vmul.f32 %v941, %v953
    %v956 = vadd.f32 %v951, %v954
    %v957 = vadd.f32 %v952, %v955
    %960 = vrot.lane.b32.xlu0 %v956, 127
    %v961 = vpop.permute.xlu0 %960
    %962 = vrot.lane.b32.xlu0 %v957, 127
    %v963 = vpop.permute.xlu0 %962
    %v966 = vadd.f32 %v948, %v961
    %v967 = vadd.f32 %v949, %v963
    %v968 = vstv %s88
    %v969 = vmul.f32 %v938, %v968
    %v970 = vmul.f32 %v939, %v968
    %v971 = vstv %s137
    %v972 = vmul.f32 %v940, %v971
    %v973 = vmul.f32 %v941, %v971
    %v974 = vadd.f32 %v969, %v972
    %v975 = vadd.f32 %v970, %v973
    %978 = vrot.lane.b32.xlu0 %v974, 126
    %v979 = vpop.permute.xlu0 %978
    %980 = vrot.lane.b32.xlu0 %v975, 126
    %v981 = vpop.permute.xlu0 %980
    %v984 = vadd.f32 %v966, %v979
    %v985 = vadd.f32 %v967, %v981
    %v986 = vstv %s89
    %v987 = vmul.f32 %v938, %v986
    %v988 = vmul.f32 %v939, %v986
    %v989 = vstv %s138
    %v990 = vmul.f32 %v940, %v989
    %v991 = vmul.f32 %v941, %v989
    %v992 = vadd.f32 %v987, %v990
    %v993 = vadd.f32 %v988, %v991
    %996 = vrot.lane.b32.xlu0 %v992, 125
    %v997 = vpop.permute.xlu0 %996
    %998 = vrot.lane.b32.xlu0 %v993, 125
    %v999 = vpop.permute.xlu0 %998
    %v1002 = vadd.f32 %v984, %v997
    %v1003 = vadd.f32 %v985, %v999
    %v1004 = vstv %s90
    %v1005 = vmul.f32 %v938, %v1004
    %v1006 = vmul.f32 %v939, %v1004
    %v1007 = vstv %s139
    %v1008 = vmul.f32 %v940, %v1007
    %v1009 = vmul.f32 %v941, %v1007
    %v1010 = vadd.f32 %v1005, %v1008
    %v1011 = vadd.f32 %v1006, %v1009
    %1014 = vrot.lane.b32.xlu0 %v1010, 124
    %v1015 = vpop.permute.xlu0 %1014
    %1016 = vrot.lane.b32.xlu0 %v1011, 124
    %v1017 = vpop.permute.xlu0 %1016
    %v1020 = vadd.f32 %v1002, %v1015
    %v1021 = vadd.f32 %v1003, %v1017
    %v1022 = vstv %s91
    %v1023 = vmul.f32 %v938, %v1022
    %v1024 = vmul.f32 %v939, %v1022
    %v1025 = vstv %s140
    %v1026 = vmul.f32 %v940, %v1025
    %v1027 = vmul.f32 %v941, %v1025
    %v1028 = vadd.f32 %v1023, %v1026
    %v1029 = vadd.f32 %v1024, %v1027
    %1032 = vrot.lane.b32.xlu0 %v1028, 123
    %v1033 = vpop.permute.xlu0 %1032
    %1034 = vrot.lane.b32.xlu0 %v1029, 123
    %v1035 = vpop.permute.xlu0 %1034
    %v1038 = vadd.f32 %v1020, %v1033
    %v1039 = vadd.f32 %v1021, %v1035
    %v1040 = vstv %s92
    %v1041 = vmul.f32 %v938, %v1040
    %v1042 = vmul.f32 %v939, %v1040
    %v1043 = vstv %s141
    %v1044 = vmul.f32 %v940, %v1043
    %v1045 = vmul.f32 %v941, %v1043
    %v1046 = vadd.f32 %v1041, %v1044
    %v1047 = vadd.f32 %v1042, %v1045
    %1050 = vrot.lane.b32.xlu0 %v1046, 122
    %v1051 = vpop.permute.xlu0 %1050
    %1052 = vrot.lane.b32.xlu0 %v1047, 122
    %v1053 = vpop.permute.xlu0 %1052
    %v1056 = vadd.f32 %v1038, %v1051
    %v1057 = vadd.f32 %v1039, %v1053
    %v1058 = vadd.f32 %v814, %v1056
    %v1059 = vadd.f32 %v815, %v1057
    %v1060 = vld [vmem:[#allocation2 + $0x5] sm:$0xff]
    %v1061 = vld [vmem:[#allocation2 + $0xd] sm:$0xff]
    %v1062 = vld [vmem:[#allocation3 + $0x5] sm:$0xff]
    %v1063 = vld [vmem:[#allocation3 + $0xd] sm:$0xff]
    %v1064 = vstv %s93
    %v1065 = vmul.f32 %v1060, %v1064
    %v1066 = vmul.f32 %v1061, %v1064
    %v1067 = vstv %s142
    %v1068 = vmul.f32 %v1062, %v1067
    %v1069 = vmul.f32 %v1063, %v1067
    %v1070 = vadd.f32 %v1065, %v1068
    %v1071 = vadd.f32 %v1066, %v1069
    %v1072 = vstv %s94
    %v1073 = vmul.f32 %v1060, %v1072
    %v1074 = vmul.f32 %v1061, %v1072
    %v1075 = vstv %s143
    %v1076 = vmul.f32 %v1062, %v1075
    %v1077 = vmul.f32 %v1063, %v1075
    %v1078 = vadd.f32 %v1073, %v1076
    %v1079 = vadd.f32 %v1074, %v1077
    %1082 = vrot.lane.b32.xlu0 %v1078, 127
    %v1083 = vpop.permute.xlu0 %1082
    %1084 = vrot.lane.b32.xlu0 %v1079, 127
    %v1085 = vpop.permute.xlu0 %1084
    %v1088 = vadd.f32 %v1070, %v1083
    %v1089 = vadd.f32 %v1071, %v1085
    %v1090 = vstv %s95
    %v1091 = vmul.f32 %v1060, %v1090
    %v1092 = vmul.f32 %v1061, %v1090
    %v1093 = vstv %s144
    %v1094 = vmul.f32 %v1062, %v1093
    %v1095 = vmul.f32 %v1063, %v1093
    %v1096 = vadd.f32 %v1091, %v1094
    %v1097 = vadd.f32 %v1092, %v1095
    %1100 = vrot.lane.b32.xlu0 %v1096, 126
    %v1101 = vpop.permute.xlu0 %1100
    %1102 = vrot.lane.b32.xlu0 %v1097, 126
    %v1103 = vpop.permute.xlu0 %1102
    %v1106 = vadd.f32 %v1088, %v1101
    %v1107 = vadd.f32 %v1089, %v1103
    %v1108 = vstv %s96
    %v1109 = vmul.f32 %v1060, %v1108
    %v1110 = vmul.f32 %v1061, %v1108
    %v1111 = vstv %s145
    %v1112 = vmul.f32 %v1062, %v1111
    %v1113 = vmul.f32 %v1063, %v1111
    %v1114 = vadd.f32 %v1109, %v1112
    %v1115 = vadd.f32 %v1110, %v1113
    %1118 = vrot.lane.b32.xlu0 %v1114, 125
    %v1119 = vpop.permute.xlu0 %1118
    %1120 = vrot.lane.b32.xlu0 %v1115, 125
    %v1121 = vpop.permute.xlu0 %1120
    %v1124 = vadd.f32 %v1106, %v1119
    %v1125 = vadd.f32 %v1107, %v1121
    %v1126 = vstv %s97
    %v1127 = vmul.f32 %v1060, %v1126
    %v1128 = vmul.f32 %v1061, %v1126
    %v1129 = vstv %s146
    %v1130 = vmul.f32 %v1062, %v1129
    %v1131 = vmul.f32 %v1063, %v1129
    %v1132 = vadd.f32 %v1127, %v1130
    %v1133 = vadd.f32 %v1128, %v1131
    %1136 = vrot.lane.b32.xlu0 %v1132, 124
    %v1137 = vpop.permute.xlu0 %1136
    %1138 = vrot.lane.b32.xlu0 %v1133, 124
    %v1139 = vpop.permute.xlu0 %1138
    %v1142 = vadd.f32 %v1124, %v1137
    %v1143 = vadd.f32 %v1125, %v1139
    %v1144 = vstv %s98
    %v1145 = vmul.f32 %v1060, %v1144
    %v1146 = vmul.f32 %v1061, %v1144
    %v1147 = vstv %s147
    %v1148 = vmul.f32 %v1062, %v1147
    %v1149 = vmul.f32 %v1063, %v1147
    %v1150 = vadd.f32 %v1145, %v1148
    %v1151 = vadd.f32 %v1146, %v1149
    %1154 = vrot.lane.b32.xlu0 %v1150, 123
    %v1155 = vpop.permute.xlu0 %1154
    %1156 = vrot.lane.b32.xlu0 %v1151, 123
    %v1157 = vpop.permute.xlu0 %1156
    %v1160 = vadd.f32 %v1142, %v1155
    %v1161 = vadd.f32 %v1143, %v1157
    %v1162 = vstv %s99
    %v1163 = vmul.f32 %v1060, %v1162
    %v1164 = vmul.f32 %v1061, %v1162
    %v1165 = vstv %s148
    %v1166 = vmul.f32 %v1062, %v1165
    %v1167 = vmul.f32 %v1063, %v1165
    %v1168 = vadd.f32 %v1163, %v1166
    %v1169 = vadd.f32 %v1164, %v1167
    %1172 = vrot.lane.b32.xlu0 %v1168, 122
    %v1173 = vpop.permute.xlu0 %1172
    %1174 = vrot.lane.b32.xlu0 %v1169, 122
    %v1175 = vpop.permute.xlu0 %1174
    %v1178 = vadd.f32 %v1160, %v1173
    %v1179 = vadd.f32 %v1161, %v1175
    %v1180 = vadd.f32 %v936, %v1178
    %v1181 = vadd.f32 %v937, %v1179
    %v1182 = vld [vmem:[#allocation2 + $0x6] sm:$0xff]
    %v1183 = vld [vmem:[#allocation2 + $0xe] sm:$0xff]
    %v1184 = vld [vmem:[#allocation3 + $0x6] sm:$0xff]
    %v1185 = vld [vmem:[#allocation3 + $0xe] sm:$0xff]
    %v1186 = vstv %s100
    %v1187 = vmul.f32 %v1182, %v1186
    %v1188 = vmul.f32 %v1183, %v1186
    %v1189 = vstv %s149
    %v1190 = vmul.f32 %v1184, %v1189
    %v1191 = vmul.f32 %v1185, %v1189
    %v1192 = vadd.f32 %v1187, %v1190
    %v1193 = vadd.f32 %v1188, %v1191
    %v1194 = vstv %s101
    %v1195 = vmul.f32 %v1182, %v1194
    %v1196 = vmul.f32 %v1183, %v1194
    %v1197 = vstv %s150
    %v1198 = vmul.f32 %v1184, %v1197
    %v1199 = vmul.f32 %v1185, %v1197
    %v1200 = vadd.f32 %v1195, %v1198
    %v1201 = vadd.f32 %v1196, %v1199
    %1204 = vrot.lane.b32.xlu0 %v1200, 127
    %v1205 = vpop.permute.xlu0 %1204
    %1206 = vrot.lane.b32.xlu0 %v1201, 127
    %v1207 = vpop.permute.xlu0 %1206
    %v1210 = vadd.f32 %v1192, %v1205
    %v1211 = vadd.f32 %v1193, %v1207
    %v1212 = vstv %s102
    %v1213 = vmul.f32 %v1182, %v1212
    %v1214 = vmul.f32 %v1183, %v1212
    %v1215 = vstv %s151
    %v1216 = vmul.f32 %v1184, %v1215
    %v1217 = vmul.f32 %v1185, %v1215
    %v1218 = vadd.f32 %v1213, %v1216
    %v1219 = vadd.f32 %v1214, %v1217
    %1222 = vrot.lane.b32.xlu0 %v1218, 126
    %v1223 = vpop.permute.xlu0 %1222
    %1224 = vrot.lane.b32.xlu0 %v1219, 126
    %v1225 = vpop.permute.xlu0 %1224
    %v1228 = vadd.f32 %v1210, %v1223
    %v1229 = vadd.f32 %v1211, %v1225
    %v1230 = vstv %s103
    %v1231 = vmul.f32 %v1182, %v1230
    %v1232 = vmul.f32 %v1183, %v1230
    %v1233 = vstv %s152
    %v1234 = vmul.f32 %v1184, %v1233
    %v1235 = vmul.f32 %v1185, %v1233
    %v1236 = vadd.f32 %v1231, %v1234
    %v1237 = vadd.f32 %v1232, %v1235
    %1240 = vrot.lane.b32.xlu0 %v1236, 125
    %v1241 = vpop.permute.xlu0 %1240
    %1242 = vrot.lane.b32.xlu0 %v1237, 125
    %v1243 = vpop.permute.xlu0 %1242
    %v1246 = vadd.f32 %v1228, %v1241
    %v1247 = vadd.f32 %v1229, %v1243
    %v1248 = vstv %s104
    %v1249 = vmul.f32 %v1182, %v1248
    %v1250 = vmul.f32 %v1183, %v1248
    %v1251 = vstv %s153
    %v1252 = vmul.f32 %v1184, %v1251
    %v1253 = vmul.f32 %v1185, %v1251
    %v1254 = vadd.f32 %v1249, %v1252
    %v1255 = vadd.f32 %v1250, %v1253
    %1258 = vrot.lane.b32.xlu0 %v1254, 124
    %v1259 = vpop.permute.xlu0 %1258
    %1260 = vrot.lane.b32.xlu0 %v1255, 124
    %v1261 = vpop.permute.xlu0 %1260
    %v1264 = vadd.f32 %v1246, %v1259
    %v1265 = vadd.f32 %v1247, %v1261
    %v1266 = vstv %s105
    %v1267 = vmul.f32 %v1182, %v1266
    %v1268 = vmul.f32 %v1183, %v1266
    %v1269 = vstv %s154
    %v1270 = vmul.f32 %v1184, %v1269
    %v1271 = vmul.f32 %v1185, %v1269
    %v1272 = vadd.f32 %v1267, %v1270
    %v1273 = vadd.f32 %v1268, %v1271
    %1276 = vrot.lane.b32.xlu0 %v1272, 123
    %v1277 = vpop.permute.xlu0 %1276
    %1278 = vrot.lane.b32.xlu0 %v1273, 123
    %v1279 = vpop.permute.xlu0 %1278
    %v1282 = vadd.f32 %v1264, %v1277
    %v1283 = vadd.f32 %v1265, %v1279
    %v1284 = vstv %s106
    %v1285 = vmul.f32 %v1182, %v1284
    %v1286 = vmul.f32 %v1183, %v1284
    %v1287 = vstv %s155
    %v1288 = vmul.f32 %v1184, %v1287
    %v1289 = vmul.f32 %v1185, %v1287
    %v1290 = vadd.f32 %v1285, %v1288
    %v1291 = vadd.f32 %v1286, %v1289
    %1294 = vrot.lane.b32.xlu0 %v1290, 122
    %v1295 = vpop.permute.xlu0 %1294
    %1296 = vrot.lane.b32.xlu0 %v1291, 122
    %v1297 = vpop.permute.xlu0 %1296
    %v1300 = vadd.f32 %v1282, %v1295
    %v1301 = vadd.f32 %v1283, %v1297
    %v1302 = vadd.f32 %v1058, %v1300
    %v1303 = vadd.f32 %v1059, %v1301
    %v1304 = vadd.f32 %v1302, %v1180
    %v1305 = vadd.f32 %v1303, %v1181
    %v1306 = vstv %s156
    %v1307 = vadd.f32 %v1304, %v1306
    %v1308 = vadd.f32 %v1305, %v1306
    %vm1309 = vcmask 130048
    %1310 = vst.msk [vmem:[#allocation12] sm:$0xff] %vm1309, %v1307
    %1311 = vst.msk [vmem:[#allocation12 + $0x8] sm:$0xff] %vm1309, %v1308
    %s1312 = scalar_lea.vmem [#allocation5], 64
    %v1313 = vld [vmem:[%s1312] sm:$0xff]
    %v1314 = vld [vmem:[%s1312 + $0x8] sm:$0xff]
    %s1315 = scalar_lea.vmem [#allocation5], 80
    %v1316 = vld [vmem:[%s1315] sm:$0xff]
    %v1317 = vld [vmem:[%s1315 + $0x8] sm:$0xff]
    %v1318 = vadd.f32 %v1313, %v1316
    %v1319 = vadd.f32 %v1314, %v1317
    %v1320 = vmax.f32 %v1313, %v1316
    %v1321 = vmax.f32 %v1314, %v1317
    %s1322 = scalar_lea.vmem [#allocation5], 96
    %v1323 = vld [vmem:[%s1322] sm:$0xff]
    %v1324 = vld [vmem:[%s1322 + $0x8] sm:$0xff]
    %v1325 = vadd.f32 %v1318, %v1323
    %v1326 = vadd.f32 %v1319, %v1324
    %v1327 = vmax.f32 %v1320, %v1323
    %v1328 = vmax.f32 %v1321, %v1324
    %s1329 = scalar_lea.vmem [#allocation5], 112
    %v1330 = vld [vmem:[%s1329] sm:$0xff]
    %v1331 = vld [vmem:[%s1329 + $0x8] sm:$0xff]
    %v1332 = vadd.f32 %v1325, %v1330
    %v1333 = vadd.f32 %v1326, %v1331
    %v1334 = vmax.f32 %v1327, %v1330
    %v1335 = vmax.f32 %v1328, %v1331
    %1338 = vrot.lane.b32.xlu0 %v1332, 3
    %v1339 = vpop.permute.xlu0 %1338
    %1340 = vrot.lane.b32.xlu0 %v1333, 3
    %v1341 = vpop.permute.xlu0 %1340
    %1344 = vst.msk [vmem:[#allocation2 + $0x3] sm:$0xff] %vm188, %v1339
    %1345 = vst.msk [vmem:[#allocation2 + $0xb] sm:$0xff] %vm188, %v1341
    %1348 = vrot.lane.b32.xlu0 %v1334, 3
    %v1349 = vpop.permute.xlu0 %1348
    %1350 = vrot.lane.b32.xlu0 %v1335, 3
    %v1351 = vpop.permute.xlu0 %1350
    %1354 = vst.msk [vmem:[#allocation3 + $0x3] sm:$0xff] %vm188, %v1349
    %1355 = vst.msk [vmem:[#allocation3 + $0xb] sm:$0xff] %vm188, %v1351
    %v1356 = vld [vmem:[#allocation2 + $0x6] sm:$0x1]
    %1357 = vst.msk [vmem:[#allocation2] sm:$0x1] %vm202, %v1356
    %v1358 = vld [vmem:[#allocation2 + $0x11] sm:$0x1]
    %1359 = vst.msk [vmem:[#allocation2 + $0x13] sm:$0x1] %vm202, %v1358
    %v1360 = vld [vmem:[#allocation2 + $0x5] sm:$0x1]
    %1361 = vst.msk [vmem:[#allocation2 + $0x1] sm:$0x1] %vm202, %v1360
    %v1362 = vld [vmem:[#allocation2 + $0x10] sm:$0x1]
    %1363 = vst.msk [vmem:[#allocation2 + $0x14] sm:$0x1] %vm202, %v1362
    %v1364 = vld [vmem:[#allocation2 + $0x4] sm:$0x1]
    %1365 = vst.msk [vmem:[#allocation2 + $0x2] sm:$0x1] %vm202, %v1364
    %v1366 = vld [vmem:[#allocation2 + $0xf] sm:$0x1]
    %1367 = vst.msk [vmem:[#allocation2 + $0x15] sm:$0x1] %vm202, %v1366
    %v1368 = vld [vmem:[#allocation2] sm:$0xff]
    %v1369 = vld [vmem:[#allocation2 + $0x8] sm:$0xff]
    %v1370 = vld [vmem:[#allocation2 + $0x10] sm:$0x3f]
    %1374 = vrot.lane.b32.xlu0 %v1368, 122
    %v1375 = vpop.permute.xlu0 %1374
    %1376 = vrot.lane.b32.xlu0 %v1369, 122
    %v1377 = vpop.permute.xlu0 %1376
    %1378 = vrot.lane.b32.xlu0 %v1370, 122
    %v1379 = vpop.permute.xlu0 %1378
    %1383 = vst.msk [vmem:[#allocation2] sm:$0xff] %vm229, %v1375
    %1384 = vst.msk [vmem:[#allocation2 + $0x8] sm:$0xff] %vm229, %v1377
    %1385 = vst.msk [vmem:[#allocation2 + $0x10] sm:$0x3f] %vm232, %v1379
    %v1386 = vld [vmem:[#allocation2] sm:$0xff]
    %v1387 = vld [vmem:[#allocation2 + $0x8] sm:$0xff]
    %v1388 = vld [vmem:[#allocation2 + $0x10] sm:$0x3f]
    %1392 = vrot.lane.b32.xlu0 %v1386, 2
    %v1393 = vpop.permute.xlu0 %1392
    %1394 = vrot.lane.b32.xlu0 %v1387, 2
    %v1395 = vpop.permute.xlu0 %1394
    %1396 = vrot.lane.b32.xlu0 %v1388, 2
    %v1397 = vpop.permute.xlu0 %1396
    %1401 = vst.msk [vmem:[#allocation2] sm:$0xff] %vm249, %v1393
    %1402 = vst.msk [vmem:[#allocation2 + $0x8] sm:$0xff] %vm249, %v1395
    %1403 = vst.msk [vmem:[#allocation2 + $0x10] sm:$0x3f] %vm252, %v1397
    %v1404 = vld [vmem:[#allocation2] sm:$0xff]
    %v1405 = vld [vmem:[#allocation2 + $0x8] sm:$0xff]
    %v1406 = vld [vmem:[#allocation2 + $0x10] sm:$0x3f]
    %1410 = vrot.lane.b32.xlu0 %v1404, 124
    %v1411 = vpop.permute.xlu0 %1410
    %1412 = vrot.lane.b32.xlu0 %v1405, 124
    %v1413 = vpop.permute.xlu0 %1412
    %1414 = vrot.lane.b32.xlu0 %v1406, 124
    %v1415 = vpop.permute.xlu0 %1414
    %1419 = vst.msk [vmem:[#allocation2] sm:$0xff] %vm269, %v1411
    %1420 = vst.msk [vmem:[#allocation2 + $0x8] sm:$0xff] %vm269, %v1413
    %1421 = vst.msk [vmem:[#allocation2 + $0x10] sm:$0x3f] %vm272, %v1415
    %v1422 = vld [vmem:[#allocation2] sm:$0xff]
    %v1423 = vld [vmem:[#allocation2 + $0x8] sm:$0xff]
    %v1424 = vld [vmem:[#allocation2 + $0x10] sm:$0x3f]
    %1428 = vrot.lane.b32.xlu0 %v1422, 4
    %v1429 = vpop.permute.xlu0 %1428
    %1430 = vrot.lane.b32.xlu0 %v1423, 4
    %v1431 = vpop.permute.xlu0 %1430
    %1432 = vrot.lane.b32.xlu0 %v1424, 4
    %v1433 = vpop.permute.xlu0 %1432
    %1437 = vst.msk [vmem:[#allocation2] sm:$0xff] %vm289, %v1429
    %1438 = vst.msk [vmem:[#allocation2 + $0x8] sm:$0xff] %vm289, %v1431
    %1439 = vst.msk [vmem:[#allocation2 + $0x10] sm:$0x3f] %vm292, %v1433
    %v1440 = vld [vmem:[#allocation2] sm:$0xff]
    %v1441 = vld [vmem:[#allocation2 + $0x8] sm:$0xff]
    %v1442 = vld [vmem:[#allocation2 + $0x10] sm:$0x3f]
    %1446 = vrot.lane.b32.xlu0 %v1440, 126
    %v1447 = vpop.permute.xlu0 %1446
    %1448 = vrot.lane.b32.xlu0 %v1441, 126
    %v1449 = vpop.permute.xlu0 %1448
    %1450 = vrot.lane.b32.xlu0 %v1442, 126
    %v1451 = vpop.permute.xlu0 %1450
    %1455 = vst.msk [vmem:[#allocation2] sm:$0xff] %vm309, %v1447
    %1456 = vst.msk [vmem:[#allocation2 + $0x8] sm:$0xff] %vm309, %v1449
    %1457 = vst.msk [vmem:[#allocation2 + $0x10] sm:$0x3f] %vm312, %v1451
    %v1458 = vld [vmem:[#allocation2] sm:$0xff]
    %v1459 = vld [vmem:[#allocation2 + $0x8] sm:$0xff]
    %v1460 = vld [vmem:[#allocation2 + $0x10] sm:$0x3f]
    %1464 = vrot.lane.b32.xlu0 %v1458, 6
    %v1465 = vpop.permute.xlu0 %1464
    %1466 = vrot.lane.b32.xlu0 %v1459, 6
    %v1467 = vpop.permute.xlu0 %1466
    %1468 = vrot.lane.b32.xlu0 %v1460, 6
    %v1469 = vpop.permute.xlu0 %1468
    %1473 = vst.msk [vmem:[#allocation2] sm:$0xff] %vm329, %v1465
    %1474 = vst.msk [vmem:[#allocation2 + $0x8] sm:$0xff] %vm329, %v1467
    %1475 = vst.msk [vmem:[#allocation2 + $0x10] sm:$0x3f] %vm332, %v1469
    %v1476 = vld [vmem:[#allocation3 + $0x6] sm:$0x1]
    %1477 = vst.msk [vmem:[#allocation3] sm:$0x1] %vm202, %v1476
    %v1478 = vld [vmem:[#allocation3 + $0x11] sm:$0x1]
    %1479 = vst.msk [vmem:[#allocation3 + $0x13] sm:$0x1] %vm202, %v1478
    %v1480 = vld [vmem:[#allocation3 + $0x5] sm:$0x1]
    %1481 = vst.msk [vmem:[#allocation3 + $0x1] sm:$0x1] %vm202, %v1480
    %v1482 = vld [vmem:[#allocation3 + $0x10] sm:$0x1]
    %1483 = vst.msk [vmem:[#allocation3 + $0x14] sm:$0x1] %vm202, %v1482
    %v1484 = vld [vmem:[#allocation3 + $0x4] sm:$0x1]
    %1485 = vst.msk [vmem:[#allocation3 + $0x2] sm:$0x1] %vm202, %v1484
    %v1486 = vld [vmem:[#allocation3 + $0xf] sm:$0x1]
    %1487 = vst.msk [vmem:[#allocation3 + $0x15] sm:$0x1] %vm202, %v1486
    %v1488 = vld [vmem:[#allocation3] sm:$0xff]
    %v1489 = vld [vmem:[#allocation3 + $0x8] sm:$0xff]
    %v1490 = vld [vmem:[#allocation3 + $0x10] sm:$0x3f]
    %1494 = vrot.lane.b32.xlu0 %v1488, 122
    %v1495 = vpop.permute.xlu0 %1494
    %1496 = vrot.lane.b32.xlu0 %v1489, 122
    %v1497 = vpop.permute.xlu0 %1496
    %1498 = vrot.lane.b32.xlu0 %v1490, 122
    %v1499 = vpop.permute.xlu0 %1498
    %1503 = vst.msk [vmem:[#allocation3] sm:$0xff] %vm229, %v1495
    %1504 = vst.msk [vmem:[#allocation3 + $0x8] sm:$0xff] %vm229, %v1497
    %1505 = vst.msk [vmem:[#allocation3 + $0x10] sm:$0x3f] %vm232, %v1499
    %v1506 = vld [vmem:[#allocation3] sm:$0xff]
    %v1507 = vld [vmem:[#allocation3 + $0x8] sm:$0xff]
    %v1508 = vld [vmem:[#allocation3 + $0x10] sm:$0x3f]
    %1512 = vrot.lane.b32.xlu0 %v1506, 2
    %v1513 = vpop.permute.xlu0 %1512
    %1514 = vrot.lane.b32.xlu0 %v1507, 2
    %v1515 = vpop.permute.xlu0 %1514
    %1516 = vrot.lane.b32.xlu0 %v1508, 2
    %v1517 = vpop.permute.xlu0 %1516
    %1521 = vst.msk [vmem:[#allocation3] sm:$0xff] %vm249, %v1513
    %1522 = vst.msk [vmem:[#allocation3 + $0x8] sm:$0xff] %vm249, %v1515
    %1523 = vst.msk [vmem:[#allocation3 + $0x10] sm:$0x3f] %vm252, %v1517
    %v1524 = vld [vmem:[#allocation3] sm:$0xff]
    %v1525 = vld [vmem:[#allocation3 + $0x8] sm:$0xff]
    %v1526 = vld [vmem:[#allocation3 + $0x10] sm:$0x3f]
    %1530 = vrot.lane.b32.xlu0 %v1524, 124
    %v1531 = vpop.permute.xlu0 %1530
    %1532 = vrot.lane.b32.xlu0 %v1525, 124
    %v1533 = vpop.permute.xlu0 %1532
    %1534 = vrot.lane.b32.xlu0 %v1526, 124
    %v1535 = vpop.permute.xlu0 %1534
    %1539 = vst.msk [vmem:[#allocation3] sm:$0xff] %vm269, %v1531
    %1540 = vst.msk [vmem:[#allocation3 + $0x8] sm:$0xff] %vm269, %v1533
    %1541 = vst.msk [vmem:[#allocation3 + $0x10] sm:$0x3f] %vm272, %v1535
    %v1542 = vld [vmem:[#allocation3] sm:$0xff]
    %v1543 = vld [vmem:[#allocation3 + $0x8] sm:$0xff]
    %v1544 = vld [vmem:[#allocation3 + $0x10] sm:$0x3f]
    %1548 = vrot.lane.b32.xlu0 %v1542, 4
    %v1549 = vpop.permute.xlu0 %1548
    %1550 = vrot.lane.b32.xlu0 %v1543, 4
    %v1551 = vpop.permute.xlu0 %1550
    %1552 = vrot.lane.b32.xlu0 %v1544, 4
    %v1553 = vpop.permute.xlu0 %1552
    %1557 = vst.msk [vmem:[#allocation3] sm:$0xff] %vm289, %v1549
    %1558 = vst.msk [vmem:[#allocation3 + $0x8] sm:$0xff] %vm289, %v1551
    %1559 = vst.msk [vmem:[#allocation3 + $0x10] sm:$0x3f] %vm292, %v1553
    %v1560 = vld [vmem:[#allocation3] sm:$0xff]
    %v1561 = vld [vmem:[#allocation3 + $0x8] sm:$0xff]
    %v1562 = vld [vmem:[#allocation3 + $0x10] sm:$0x3f]
    %1566 = vrot.lane.b32.xlu0 %v1560, 126
    %v1567 = vpop.permute.xlu0 %1566
    %1568 = vrot.lane.b32.xlu0 %v1561, 126
    %v1569 = vpop.permute.xlu0 %1568
    %1570 = vrot.lane.b32.xlu0 %v1562, 126
    %v1571 = vpop.permute.xlu0 %1570
    %1575 = vst.msk [vmem:[#allocation3] sm:$0xff] %vm309, %v1567
    %1576 = vst.msk [vmem:[#allocation3 + $0x8] sm:$0xff] %vm309, %v1569
    %1577 = vst.msk [vmem:[#allocation3 + $0x10] sm:$0x3f] %vm312, %v1571
    %v1578 = vld [vmem:[#allocation3] sm:$0xff]
    %v1579 = vld [vmem:[#allocation3 + $0x8] sm:$0xff]
    %v1580 = vld [vmem:[#allocation3 + $0x10] sm:$0x3f]
    %1584 = vrot.lane.b32.xlu0 %v1578, 6
    %v1585 = vpop.permute.xlu0 %1584
    %1586 = vrot.lane.b32.xlu0 %v1579, 6
    %v1587 = vpop.permute.xlu0 %1586
    %1588 = vrot.lane.b32.xlu0 %v1580, 6
    %v1589 = vpop.permute.xlu0 %1588
    %1593 = vst.msk [vmem:[#allocation3] sm:$0xff] %vm329, %v1585
    %1594 = vst.msk [vmem:[#allocation3 + $0x8] sm:$0xff] %vm329, %v1587
    %1595 = vst.msk [vmem:[#allocation3 + $0x10] sm:$0x3f] %vm332, %v1589
    %v1596 = vld [vmem:[#allocation2] sm:$0xff]
    %v1597 = vld [vmem:[#allocation2 + $0x8] sm:$0xff]
    %v1598 = vld [vmem:[#allocation3] sm:$0xff]
    %v1599 = vld [vmem:[#allocation3 + $0x8] sm:$0xff]
    %v1600 = vmul.f32 %v1596, %v458
    %v1601 = vmul.f32 %v1597, %v458
    %v1602 = vmul.f32 %v1598, %v461
    %v1603 = vmul.f32 %v1599, %v461
    %v1604 = vadd.f32 %v1600, %v1602
    %v1605 = vadd.f32 %v1601, %v1603
    %v1606 = vmul.f32 %v1596, %v466
    %v1607 = vmul.f32 %v1597, %v466
    %v1608 = vmul.f32 %v1598, %v469
    %v1609 = vmul.f32 %v1599, %v469
    %v1610 = vadd.f32 %v1606, %v1608
    %v1611 = vadd.f32 %v1607, %v1609
    %1614 = vrot.lane.b32.xlu0 %v1610, 127
    %v1615 = vpop.permute.xlu0 %1614
    %1616 = vrot.lane.b32.xlu0 %v1611, 127
    %v1617 = vpop.permute.xlu0 %1616
    %v1620 = vadd.f32 %v1604, %v1615
    %v1621 = vadd.f32 %v1605, %v1617
    %v1622 = vmul.f32 %v1596, %v484
    %v1623 = vmul.f32 %v1597, %v484
    %v1624 = vmul.f32 %v1598, %v487
    %v1625 = vmul.f32 %v1599, %v487
    %v1626 = vadd.f32 %v1622, %v1624
    %v1627 = vadd.f32 %v1623, %v1625
    %1630 = vrot.lane.b32.xlu0 %v1626, 126
    %v1631 = vpop.permute.xlu0 %1630
    %1632 = vrot.lane.b32.xlu0 %v1627, 126
    %v1633 = vpop.permute.xlu0 %1632
    %v1636 = vadd.f32 %v1620, %v1631
    %v1637 = vadd.f32 %v1621, %v1633
    %v1638 = vmul.f32 %v1596, %v502
    %v1639 = vmul.f32 %v1597, %v502
    %v1640 = vmul.f32 %v1598, %v505
    %v1641 = vmul.f32 %v1599, %v505
    %v1642 = vadd.f32 %v1638, %v1640
    %v1643 = vadd.f32 %v1639, %v1641
    %1646 = vrot.lane.b32.xlu0 %v1642, 125
    %v1647 = vpop.permute.xlu0 %1646
    %1648 = vrot.lane.b32.xlu0 %v1643, 125
    %v1649 = vpop.permute.xlu0 %1648
    %v1652 = vadd.f32 %v1636, %v1647
    %v1653 = vadd.f32 %v1637, %v1649
    %v1654 = vmul.f32 %v1596, %v520
    %v1655 = vmul.f32 %v1597, %v520
    %v1656 = vmul.f32 %v1598, %v523
    %v1657 = vmul.f32 %v1599, %v523
    %v1658 = vadd.f32 %v1654, %v1656
    %v1659 = vadd.f32 %v1655, %v1657
    %1662 = vrot.lane.b32.xlu0 %v1658, 124
    %v1663 = vpop.permute.xlu0 %1662
    %1664 = vrot.lane.b32.xlu0 %v1659, 124
    %v1665 = vpop.permute.xlu0 %1664
    %v1668 = vadd.f32 %v1652, %v1663
    %v1669 = vadd.f32 %v1653, %v1665
    %v1670 = vmul.f32 %v1596, %v538
    %v1671 = vmul.f32 %v1597, %v538
    %v1672 = vmul.f32 %v1598, %v541
    %v1673 = vmul.f32 %v1599, %v541
    %v1674 = vadd.f32 %v1670, %v1672
    %v1675 = vadd.f32 %v1671, %v1673
    %1678 = vrot.lane.b32.xlu0 %v1674, 123
    %v1679 = vpop.permute.xlu0 %1678
    %1680 = vrot.lane.b32.xlu0 %v1675, 123
    %v1681 = vpop.permute.xlu0 %1680
    %v1684 = vadd.f32 %v1668, %v1679
    %v1685 = vadd.f32 %v1669, %v1681
    %v1686 = vmul.f32 %v1596, %v556
    %v1687 = vmul.f32 %v1597, %v556
    %v1688 = vmul.f32 %v1598, %v559
    %v1689 = vmul.f32 %v1599, %v559
    %v1690 = vadd.f32 %v1686, %v1688
    %v1691 = vadd.f32 %v1687, %v1689
    %1694 = vrot.lane.b32.xlu0 %v1690, 122
    %v1695 = vpop.permute.xlu0 %1694
    %1696 = vrot.lane.b32.xlu0 %v1691, 122
    %v1697 = vpop.permute.xlu0 %1696
    %v1700 = vadd.f32 %v1684, %v1695
    %v1701 = vadd.f32 %v1685, %v1697
    %v1702 = vld [vmem:[#allocation2 + $0x1] sm:$0xff]
    %v1703 = vld [vmem:[#allocation2 + $0x9] sm:$0xff]
    %v1704 = vld [vmem:[#allocation3 + $0x1] sm:$0xff]
    %v1705 = vld [vmem:[#allocation3 + $0x9] sm:$0xff]
    %v1706 = vmul.f32 %v1702, %v578
    %v1707 = vmul.f32 %v1703, %v578
    %v1708 = vmul.f32 %v1704, %v581
    %v1709 = vmul.f32 %v1705, %v581
    %v1710 = vadd.f32 %v1706, %v1708
    %v1711 = vadd.f32 %v1707, %v1709
    %v1712 = vmul.f32 %v1702, %v586
    %v1713 = vmul.f32 %v1703, %v586
    %v1714 = vmul.f32 %v1704, %v589
    %v1715 = vmul.f32 %v1705, %v589
    %v1716 = vadd.f32 %v1712, %v1714
    %v1717 = vadd.f32 %v1713, %v1715
    %1720 = vrot.lane.b32.xlu0 %v1716, 127
    %v1721 = vpop.permute.xlu0 %1720
    %1722 = vrot.lane.b32.xlu0 %v1717, 127
    %v1723 = vpop.permute.xlu0 %1722
    %v1726 = vadd.f32 %v1710, %v1721
    %v1727 = vadd.f32 %v1711, %v1723
    %v1728 = vmul.f32 %v1702, %v604
    %v1729 = vmul.f32 %v1703, %v604
    %v1730 = vmul.f32 %v1704, %v607
    %v1731 = vmul.f32 %v1705, %v607
    %v1732 = vadd.f32 %v1728, %v1730
    %v1733 = vadd.f32 %v1729, %v1731
    %1736 = vrot.lane.b32.xlu0 %v1732, 126
    %v1737 = vpop.permute.xlu0 %1736
    %1738 = vrot.lane.b32.xlu0 %v1733, 126
    %v1739 = vpop.permute.xlu0 %1738
    %v1742 = vadd.f32 %v1726, %v1737
    %v1743 = vadd.f32 %v1727, %v1739
    %v1744 = vmul.f32 %v1702, %v622
    %v1745 = vmul.f32 %v1703, %v622
    %v1746 = vmul.f32 %v1704, %v625
    %v1747 = vmul.f32 %v1705, %v625
    %v1748 = vadd.f32 %v1744, %v1746
    %v1749 = vadd.f32 %v1745, %v1747
    %1752 = vrot.lane.b32.xlu0 %v1748, 125
    %v1753 = vpop.permute.xlu0 %1752
    %1754 = vrot.lane.b32.xlu0 %v1749, 125
    %v1755 = vpop.permute.xlu0 %1754
    %v1758 = vadd.f32 %v1742, %v1753
    %v1759 = vadd.f32 %v1743, %v1755
    %v1760 = vmul.f32 %v1702, %v640
    %v1761 = vmul.f32 %v1703, %v640
    %v1762 = vmul.f32 %v1704, %v643
    %v1763 = vmul.f32 %v1705, %v643
    %v1764 = vadd.f32 %v1760, %v1762
    %v1765 = vadd.f32 %v1761, %v1763
    %1768 = vrot.lane.b32.xlu0 %v1764, 124
    %v1769 = vpop.permute.xlu0 %1768
    %1770 = vrot.lane.b32.xlu0 %v1765, 124
    %v1771 = vpop.permute.xlu0 %1770
    %v1774 = vadd.f32 %v1758, %v1769
    %v1775 = vadd.f32 %v1759, %v1771
    %v1776 = vmul.f32 %v1702, %v658
    %v1777 = vmul.f32 %v1703, %v658
    %v1778 = vmul.f32 %v1704, %v661
    %v1779 = vmul.f32 %v1705, %v661
    %v1780 = vadd.f32 %v1776, %v1778
    %v1781 = vadd.f32 %v1777, %v1779
    %1784 = vrot.lane.b32.xlu0 %v1780, 123
    %v1785 = vpop.permute.xlu0 %1784
    %1786 = vrot.lane.b32.xlu0 %v1781, 123
    %v1787 = vpop.permute.xlu0 %1786
    %v1790 = vadd.f32 %v1774, %v1785
    %v1791 = vadd.f32 %v1775, %v1787
    %v1792 = vmul.f32 %v1702, %v676
    %v1793 = vmul.f32 %v1703, %v676
    %v1794 = vmul.f32 %v1704, %v679
    %v1795 = vmul.f32 %v1705, %v679
    %v1796 = vadd.f32 %v1792, %v1794
    %v1797 = vadd.f32 %v1793, %v1795
    %1800 = vrot.lane.b32.xlu0 %v1796, 122
    %v1801 = vpop.permute.xlu0 %1800
    %1802 = vrot.lane.b32.xlu0 %v1797, 122
    %v1803 = vpop.permute.xlu0 %1802
    %v1806 = vadd.f32 %v1790, %v1801
    %v1807 = vadd.f32 %v1791, %v1803
    %v1808 = vld [vmem:[#allocation2 + $0x2] sm:$0xff]
    %v1809 = vld [vmem:[#allocation2 + $0xa] sm:$0xff]
    %v1810 = vld [vmem:[#allocation3 + $0x2] sm:$0xff]
    %v1811 = vld [vmem:[#allocation3 + $0xa] sm:$0xff]
    %v1812 = vmul.f32 %v1808, %v698
    %v1813 = vmul.f32 %v1809, %v698
    %v1814 = vmul.f32 %v1810, %v701
    %v1815 = vmul.f32 %v1811, %v701
    %v1816 = vadd.f32 %v1812, %v1814
    %v1817 = vadd.f32 %v1813, %v1815
    %v1818 = vmul.f32 %v1808, %v706
    %v1819 = vmul.f32 %v1809, %v706
    %v1820 = vmul.f32 %v1810, %v709
    %v1821 = vmul.f32 %v1811, %v709
    %v1822 = vadd.f32 %v1818, %v1820
    %v1823 = vadd.f32 %v1819, %v1821
    %1826 = vrot.lane.b32.xlu0 %v1822, 127
    %v1827 = vpop.permute.xlu0 %1826
    %1828 = vrot.lane.b32.xlu0 %v1823, 127
    %v1829 = vpop.permute.xlu0 %1828
    %v1832 = vadd.f32 %v1816, %v1827
    %v1833 = vadd.f32 %v1817, %v1829
    %v1834 = vmul.f32 %v1808, %v724
    %v1835 = vmul.f32 %v1809, %v724
    %v1836 = vmul.f32 %v1810, %v727
    %v1837 = vmul.f32 %v1811, %v727
    %v1838 = vadd.f32 %v1834, %v1836
    %v1839 = vadd.f32 %v1835, %v1837
    %1842 = vrot.lane.b32.xlu0 %v1838, 126
    %v1843 = vpop.permute.xlu0 %1842
    %1844 = vrot.lane.b32.xlu0 %v1839, 126
    %v1845 = vpop.permute.xlu0 %1844
    %v1848 = vadd.f32 %v1832, %v1843
    %v1849 = vadd.f32 %v1833, %v1845
    %v1850 = vmul.f32 %v1808, %v742
    %v1851 = vmul.f32 %v1809, %v742
    %v1852 = vmul.f32 %v1810, %v745
    %v1853 = vmul.f32 %v1811, %v745
    %v1854 = vadd.f32 %v1850, %v1852
    %v1855 = vadd.f32 %v1851, %v1853
    %1858 = vrot.lane.b32.xlu0 %v1854, 125
    %v1859 = vpop.permute.xlu0 %1858
    %1860 = vrot.lane.b32.xlu0 %v1855, 125
    %v1861 = vpop.permute.xlu0 %1860
    %v1864 = vadd.f32 %v1848, %v1859
    %v1865 = vadd.f32 %v1849, %v1861
    %v1866 = vmul.f32 %v1808, %v760
    %v1867 = vmul.f32 %v1809, %v760
    %v1868 = vmul.f32 %v1810, %v763
    %v1869 = vmul.f32 %v1811, %v763
    %v1870 = vadd.f32 %v1866, %v1868
    %v1871 = vadd.f32 %v1867, %v1869
    %1874 = vrot.lane.b32.xlu0 %v1870, 124
    %v1875 = vpop.permute.xlu0 %1874
    %1876 = vrot.lane.b32.xlu0 %v1871, 124
    %v1877 = vpop.permute.xlu0 %1876
    %v1880 = vadd.f32 %v1864, %v1875
    %v1881 = vadd.f32 %v1865, %v1877
    %v1882 = vmul.f32 %v1808, %v778
    %v1883 = vmul.f32 %v1809, %v778
    %v1884 = vmul.f32 %v1810, %v781
    %v1885 = vmul.f32 %v1811, %v781
    %v1886 = vadd.f32 %v1882, %v1884
    %v1887 = vadd.f32 %v1883, %v1885
    %1890 = vrot.lane.b32.xlu0 %v1886, 123
    %v1891 = vpop.permute.xlu0 %1890
    %1892 = vrot.lane.b32.xlu0 %v1887, 123
    %v1893 = vpop.permute.xlu0 %1892
    %v1896 = vadd.f32 %v1880, %v1891
    %v1897 = vadd.f32 %v1881, %v1893
    %v1898 = vmul.f32 %v1808, %v796
    %v1899 = vmul.f32 %v1809, %v796
    %v1900 = vmul.f32 %v1810, %v799
    %v1901 = vmul.f32 %v1811, %v799
    %v1902 = vadd.f32 %v1898, %v1900
    %v1903 = vadd.f32 %v1899, %v1901
    %1906 = vrot.lane.b32.xlu0 %v1902, 122
    %v1907 = vpop.permute.xlu0 %1906
    %1908 = vrot.lane.b32.xlu0 %v1903, 122
    %v1909 = vpop.permute.xlu0 %1908
    %v1912 = vadd.f32 %v1896, %v1907
    %v1913 = vadd.f32 %v1897, %v1909
    %v1914 = vadd.f32 %v1700, %v1912
    %v1915 = vadd.f32 %v1701, %v1913
    %v1916 = vld [vmem:[#allocation2 + $0x3] sm:$0xff]
    %v1917 = vld [vmem:[#allocation2 + $0xb] sm:$0xff]
    %v1918 = vld [vmem:[#allocation3 + $0x3] sm:$0xff]
    %v1919 = vld [vmem:[#allocation3 + $0xb] sm:$0xff]
    %v1920 = vmul.f32 %v1916, %v820
    %v1921 = vmul.f32 %v1917, %v820
    %v1922 = vmul.f32 %v1918, %v823
    %v1923 = vmul.f32 %v1919, %v823
    %v1924 = vadd.f32 %v1920, %v1922
    %v1925 = vadd.f32 %v1921, %v1923
    %v1926 = vmul.f32 %v1916, %v828
    %v1927 = vmul.f32 %v1917, %v828
    %v1928 = vmul.f32 %v1918, %v831
    %v1929 = vmul.f32 %v1919, %v831
    %v1930 = vadd.f32 %v1926, %v1928
    %v1931 = vadd.f32 %v1927, %v1929
    %1934 = vrot.lane.b32.xlu0 %v1930, 127
    %v1935 = vpop.permute.xlu0 %1934
    %1936 = vrot.lane.b32.xlu0 %v1931, 127
    %v1937 = vpop.permute.xlu0 %1936
    %v1940 = vadd.f32 %v1924, %v1935
    %v1941 = vadd.f32 %v1925, %v1937
    %v1942 = vmul.f32 %v1916, %v846
    %v1943 = vmul.f32 %v1917, %v846
    %v1944 = vmul.f32 %v1918, %v849
    %v1945 = vmul.f32 %v1919, %v849
    %v1946 = vadd.f32 %v1942, %v1944
    %v1947 = vadd.f32 %v1943, %v1945
    %1950 = vrot.lane.b32.xlu0 %v1946, 126
    %v1951 = vpop.permute.xlu0 %1950
    %1952 = vrot.lane.b32.xlu0 %v1947, 126
    %v1953 = vpop.permute.xlu0 %1952
    %v1956 = vadd.f32 %v1940, %v1951
    %v1957 = vadd.f32 %v1941, %v1953
    %v1958 = vmul.f32 %v1916, %v864
    %v1959 = vmul.f32 %v1917, %v864
    %v1960 = vmul.f32 %v1918, %v867
    %v1961 = vmul.f32 %v1919, %v867
    %v1962 = vadd.f32 %v1958, %v1960
    %v1963 = vadd.f32 %v1959, %v1961
    %1966 = vrot.lane.b32.xlu0 %v1962, 125
    %v1967 = vpop.permute.xlu0 %1966
    %1968 = vrot.lane.b32.xlu0 %v1963, 125
    %v1969 = vpop.permute.xlu0 %1968
    %v1972 = vadd.f32 %v1956, %v1967
    %v1973 = vadd.f32 %v1957, %v1969
    %v1974 = vmul.f32 %v1916, %v882
    %v1975 = vmul.f32 %v1917, %v882
    %v1976 = vmul.f32 %v1918, %v885
    %v1977 = vmul.f32 %v1919, %v885
    %v1978 = vadd.f32 %v1974, %v1976
    %v1979 = vadd.f32 %v1975, %v1977
    %1982 = vrot.lane.b32.xlu0 %v1978, 124
    %v1983 = vpop.permute.xlu0 %1982
    %1984 = vrot.lane.b32.xlu0 %v1979, 124
    %v1985 = vpop.permute.xlu0 %1984
    %v1988 = vadd.f32 %v1972, %v1983
    %v1989 = vadd.f32 %v1973, %v1985
    %v1990 = vmul.f32 %v1916, %v900
    %v1991 = vmul.f32 %v1917, %v900
    %v1992 = vmul.f32 %v1918, %v903
    %v1993 = vmul.f32 %v1919, %v903
    %v1994 = vadd.f32 %v1990, %v1992
    %v1995 = vadd.f32 %v1991, %v1993
    %1998 = vrot.lane.b32.xlu0 %v1994, 123
    %v1999 = vpop.permute.xlu0 %1998
    %2000 = vrot.lane.b32.xlu0 %v1995, 123
    %v2001 = vpop.permute.xlu0 %2000
    %v2004 = vadd.f32 %v1988, %v1999
    %v2005 = vadd.f32 %v1989, %v2001
    %v2006 = vmul.f32 %v1916, %v918
    %v2007 = vmul.f32 %v1917, %v918
    %v2008 = vmul.f32 %v1918, %v921
    %v2009 = vmul.f32 %v1919, %v921
    %v2010 = vadd.f32 %v2006, %v2008
    %v2011 = vadd.f32 %v2007, %v2009
    %2014 = vrot.lane.b32.xlu0 %v2010, 122
    %v2015 = vpop.permute.xlu0 %2014
    %2016 = vrot.lane.b32.xlu0 %v2011, 122
    %v2017 = vpop.permute.xlu0 %2016
    %v2020 = vadd.f32 %v2004, %v2015
    %v2021 = vadd.f32 %v2005, %v2017
    %v2022 = vadd.f32 %v1806, %v2020
    %v2023 = vadd.f32 %v1807, %v2021
    %v2024 = vld [vmem:[#allocation2 + $0x4] sm:$0xff]
    %v2025 = vld [vmem:[#allocation2 + $0xc] sm:$0xff]
    %v2026 = vld [vmem:[#allocation3 + $0x4] sm:$0xff]
    %v2027 = vld [vmem:[#allocation3 + $0xc] sm:$0xff]
    %v2028 = vmul.f32 %v2024, %v942
    %v2029 = vmul.f32 %v2025, %v942
    %v2030 = vmul.f32 %v2026, %v945
    %v2031 = vmul.f32 %v2027, %v945
    %v2032 = vadd.f32 %v2028, %v2030
    %v2033 = vadd.f32 %v2029, %v2031
    %v2034 = vmul.f32 %v2024, %v950
    %v2035 = vmul.f32 %v2025, %v950
    %v2036 = vmul.f32 %v2026, %v953
    %v2037 = vmul.f32 %v2027, %v953
    %v2038 = vadd.f32 %v2034, %v2036
    %v2039 = vadd.f32 %v2035, %v2037
    %2042 = vrot.lane.b32.xlu0 %v2038, 127
    %v2043 = vpop.permute.xlu0 %2042
    %2044 = vrot.lane.b32.xlu0 %v2039, 127
    %v2045 = vpop.permute.xlu0 %2044
    %v2048 = vadd.f32 %v2032, %v2043
    %v2049 = vadd.f32 %v2033, %v2045
    %v2050 = vmul.f32 %v2024, %v968
    %v2051 = vmul.f32 %v2025, %v968
    %v2052 = vmul.f32 %v2026, %v971
    %v2053 = vmul.f32 %v2027, %v971
    %v2054 = vadd.f32 %v2050, %v2052
    %v2055 = vadd.f32 %v2051, %v2053
    %2058 = vrot.lane.b32.xlu0 %v2054, 126
    %v2059 = vpop.permute.xlu0 %2058
    %2060 = vrot.lane.b32.xlu0 %v2055, 126
    %v2061 = vpop.permute.xlu0 %2060
    %v2064 = vadd.f32 %v2048, %v2059
    %v2065 = vadd.f32 %v2049, %v2061
    %v2066 = vmul.f32 %v2024, %v986
    %v2067 = vmul.f32 %v2025, %v986
    %v2068 = vmul.f32 %v2026, %v989
    %v2069 = vmul.f32 %v2027, %v989
    %v2070 = vadd.f32 %v2066, %v2068
    %v2071 = vadd.f32 %v2067, %v2069
    %2074 = vrot.lane.b32.xlu0 %v2070, 125
    %v2075 = vpop.permute.xlu0 %2074
    %2076 = vrot.lane.b32.xlu0 %v2071, 125
    %v2077 = vpop.permute.xlu0 %2076
    %v2080 = vadd.f32 %v2064, %v2075
    %v2081 = vadd.f32 %v2065, %v2077
    %v2082 = vmul.f32 %v2024, %v1004
    %v2083 = vmul.f32 %v2025, %v1004
    %v2084 = vmul.f32 %v2026, %v1007
    %v2085 = vmul.f32 %v2027, %v1007
    %v2086 = vadd.f32 %v2082, %v2084
    %v2087 = vadd.f32 %v2083, %v2085
    %2090 = vrot.lane.b32.xlu0 %v2086, 124
    %v2091 = vpop.permute.xlu0 %2090
    %2092 = vrot.lane.b32.xlu0 %v2087, 124
    %v2093 = vpop.permute.xlu0 %2092
    %v2096 = vadd.f32 %v2080, %v2091
    %v2097 = vadd.f32 %v2081, %v2093
    %v2098 = vmul.f32 %v2024, %v1022
    %v2099 = vmul.f32 %v2025, %v1022
    %v2100 = vmul.f32 %v2026, %v1025
    %v2101 = vmul.f32 %v2027, %v1025
    %v2102 = vadd.f32 %v2098, %v2100
    %v2103 = vadd.f32 %v2099, %v2101
    %2106 = vrot.lane.b32.xlu0 %v2102, 123
    %v2107 = vpop.permute.xlu0 %2106
    %2108 = vrot.lane.b32.xlu0 %v2103, 123
    %v2109 = vpop.permute.xlu0 %2108
    %v2112 = vadd.f32 %v2096, %v2107
    %v2113 = vadd.f32 %v2097, %v2109
    %v2114 = vmul.f32 %v2024, %v1040
    %v2115 = vmul.f32 %v2025, %v1040
    %v2116 = vmul.f32 %v2026, %v1043
    %v2117 = vmul.f32 %v2027, %v1043
    %v2118 = vadd.f32 %v2114, %v2116
    %v2119 = vadd.f32 %v2115, %v2117
    %2122 = vrot.lane.b32.xlu0 %v2118, 122
    %v2123 = vpop.permute.xlu0 %2122
    %2124 = vrot.lane.b32.xlu0 %v2119, 122
    %v2125 = vpop.permute.xlu0 %2124
    %v2128 = vadd.f32 %v2112, %v2123
    %v2129 = vadd.f32 %v2113, %v2125
    %v2130 = vadd.f32 %v1914, %v2128
    %v2131 = vadd.f32 %v1915, %v2129
    %v2132 = vld [vmem:[#allocation2 + $0x5] sm:$0xff]
    %v2133 = vld [vmem:[#allocation2 + $0xd] sm:$0xff]
    %v2134 = vld [vmem:[#allocation3 + $0x5] sm:$0xff]
    %v2135 = vld [vmem:[#allocation3 + $0xd] sm:$0xff]
    %v2136 = vmul.f32 %v2132, %v1064
    %v2137 = vmul.f32 %v2133, %v1064
    %v2138 = vmul.f32 %v2134, %v1067
    %v2139 = vmul.f32 %v2135, %v1067
    %v2140 = vadd.f32 %v2136, %v2138
    %v2141 = vadd.f32 %v2137, %v2139
    %v2142 = vmul.f32 %v2132, %v1072
    %v2143 = vmul.f32 %v2133, %v1072
    %v2144 = vmul.f32 %v2134, %v1075
    %v2145 = vmul.f32 %v2135, %v1075
    %v2146 = vadd.f32 %v2142, %v2144
    %v2147 = vadd.f32 %v2143, %v2145
    %2150 = vrot.lane.b32.xlu0 %v2146, 127
    %v2151 = vpop.permute.xlu0 %2150
    %2152 = vrot.lane.b32.xlu0 %v2147, 127
    %v2153 = vpop.permute.xlu0 %2152
    %v2156 = vadd.f32 %v2140, %v2151
    %v2157 = vadd.f32 %v2141, %v2153
    %v2158 = vmul.f32 %v2132, %v1090
    %v2159 = vmul.f32 %v2133, %v1090
    %v2160 = vmul.f32 %v2134, %v1093
    %v2161 = vmul.f32 %v2135, %v1093
    %v2162 = vadd.f32 %v2158, %v2160
    %v2163 = vadd.f32 %v2159, %v2161
    %2166 = vrot.lane.b32.xlu0 %v2162, 126
    %v2167 = vpop.permute.xlu0 %2166
    %2168 = vrot.lane.b32.xlu0 %v2163, 126
    %v2169 = vpop.permute.xlu0 %2168
    %v2172 = vadd.f32 %v2156, %v2167
    %v2173 = vadd.f32 %v2157, %v2169
    %v2174 = vmul.f32 %v2132, %v1108
    %v2175 = vmul.f32 %v2133, %v1108
    %v2176 = vmul.f32 %v2134, %v1111
    %v2177 = vmul.f32 %v2135, %v1111
    %v2178 = vadd.f32 %v2174, %v2176
    %v2179 = vadd.f32 %v2175, %v2177
    %2182 = vrot.lane.b32.xlu0 %v2178, 125
    %v2183 = vpop.permute.xlu0 %2182
    %2184 = vrot.lane.b32.xlu0 %v2179, 125
    %v2185 = vpop.permute.xlu0 %2184
    %v2188 = vadd.f32 %v2172, %v2183
    %v2189 = vadd.f32 %v2173, %v2185
    %v2190 = vmul.f32 %v2132, %v1126
    %v2191 = vmul.f32 %v2133, %v1126
    %v2192 = vmul.f32 %v2134, %v1129
    %v2193 = vmul.f32 %v2135, %v1129
    %v2194 = vadd.f32 %v2190, %v2192
    %v2195 = vadd.f32 %v2191, %v2193
    %2198 = vrot.lane.b32.xlu0 %v2194, 124
    %v2199 = vpop.permute.xlu0 %2198
    %2200 = vrot.lane.b32.xlu0 %v2195, 124
    %v2201 = vpop.permute.xlu0 %2200
    %v2204 = vadd.f32 %v2188, %v2199
    %v2205 = vadd.f32 %v2189, %v2201
    %v2206 = vmul.f32 %v2132, %v1144
    %v2207 = vmul.f32 %v2133, %v1144
    %v2208 = vmul.f32 %v2134, %v1147
    %v2209 = vmul.f32 %v2135, %v1147
    %v2210 = vadd.f32 %v2206, %v2208
    %v2211 = vadd.f32 %v2207, %v2209
    %2214 = vrot.lane.b32.xlu0 %v2210, 123
    %v2215 = vpop.permute.xlu0 %2214
    %2216 = vrot.lane.b32.xlu0 %v2211, 123
    %v2217 = vpop.permute.xlu0 %2216
    %v2220 = vadd.f32 %v2204, %v2215
    %v2221 = vadd.f32 %v2205, %v2217
    %v2222 = vmul.f32 %v2132, %v1162
    %v2223 = vmul.f32 %v2133, %v1162
    %v2224 = vmul.f32 %v2134, %v1165
    %v2225 = vmul.f32 %v2135, %v1165
    %v2226 = vadd.f32 %v2222, %v2224
    %v2227 = vadd.f32 %v2223, %v2225
    %2230 = vrot.lane.b32.xlu0 %v2226, 122
    %v2231 = vpop.permute.xlu0 %2230
    %2232 = vrot.lane.b32.xlu0 %v2227, 122
    %v2233 = vpop.permute.xlu0 %2232
    %v2236 = vadd.f32 %v2220, %v2231
    %v2237 = vadd.f32 %v2221, %v2233
    %v2238 = vadd.f32 %v2022, %v2236
    %v2239 = vadd.f32 %v2023, %v2237
    %v2240 = vld [vmem:[#allocation2 + $0x6] sm:$0xff]
    %v2241 = vld [vmem:[#allocation2 + $0xe] sm:$0xff]
    %v2242 = vld [vmem:[#allocation3 + $0x6] sm:$0xff]
    %v2243 = vld [vmem:[#allocation3 + $0xe] sm:$0xff]
    %v2244 = vmul.f32 %v2240, %v1186
    %v2245 = vmul.f32 %v2241, %v1186
    %v2246 = vmul.f32 %v2242, %v1189
    %v2247 = vmul.f32 %v2243, %v1189
    %v2248 = vadd.f32 %v2244, %v2246
    %v2249 = vadd.f32 %v2245, %v2247
    %v2250 = vmul.f32 %v2240, %v1194
    %v2251 = vmul.f32 %v2241, %v1194
    %v2252 = vmul.f32 %v2242, %v1197
    %v2253 = vmul.f32 %v2243, %v1197
    %v2254 = vadd.f32 %v2250, %v2252
    %v2255 = vadd.f32 %v2251, %v2253
    %2258 = vrot.lane.b32.xlu0 %v2254, 127
    %v2259 = vpop.permute.xlu0 %2258
    %2260 = vrot.lane.b32.xlu0 %v2255, 127
    %v2261 = vpop.permute.xlu0 %2260
    %v2264 = vadd.f32 %v2248, %v2259
    %v2265 = vadd.f32 %v2249, %v2261
    %v2266 = vmul.f32 %v2240, %v1212
    %v2267 = vmul.f32 %v2241, %v1212
    %v2268 = vmul.f32 %v2242, %v1215
    %v2269 = vmul.f32 %v2243, %v1215
    %v2270 = vadd.f32 %v2266, %v2268
    %v2271 = vadd.f32 %v2267, %v2269
    %2274 = vrot.lane.b32.xlu0 %v2270, 126
    %v2275 = vpop.permute.xlu0 %2274
    %2276 = vrot.lane.b32.xlu0 %v2271, 126
    %v2277 = vpop.permute.xlu0 %2276
    %v2280 = vadd.f32 %v2264, %v2275
    %v2281 = vadd.f32 %v2265, %v2277
    %v2282 = vmul.f32 %v2240, %v1230
    %v2283 = vmul.f32 %v2241, %v1230
    %v2284 = vmul.f32 %v2242, %v1233
    %v2285 = vmul.f32 %v2243, %v1233
    %v2286 = vadd.f32 %v2282, %v2284
    %v2287 = vadd.f32 %v2283, %v2285
    %2290 = vrot.lane.b32.xlu0 %v2286, 125
    %v2291 = vpop.permute.xlu0 %2290
    %2292 = vrot.lane.b32.xlu0 %v2287, 125
    %v2293 = vpop.permute.xlu0 %2292
    %v2296 = vadd.f32 %v2280, %v2291
    %v2297 = vadd.f32 %v2281, %v2293
    %v2298 = vmul.f32 %v2240, %v1248
    %v2299 = vmul.f32 %v2241, %v1248
    %v2300 = vmul.f32 %v2242, %v1251
    %v2301 = vmul.f32 %v2243, %v1251
    %v2302 = vadd.f32 %v2298, %v2300
    %v2303 = vadd.f32 %v2299, %v2301
    %2306 = vrot.lane.b32.xlu0 %v2302, 124
    %v2307 = vpop.permute.xlu0 %2306
    %2308 = vrot.lane.b32.xlu0 %v2303, 124
    %v2309 = vpop.permute.xlu0 %2308
    %v2312 = vadd.f32 %v2296, %v2307
    %v2313 = vadd.f32 %v2297, %v2309
    %v2314 = vmul.f32 %v2240, %v1266
    %v2315 = vmul.f32 %v2241, %v1266
    %v2316 = vmul.f32 %v2242, %v1269
    %v2317 = vmul.f32 %v2243, %v1269
    %v2318 = vadd.f32 %v2314, %v2316
    %v2319 = vadd.f32 %v2315, %v2317
    %2322 = vrot.lane.b32.xlu0 %v2318, 123
    %v2323 = vpop.permute.xlu0 %2322
    %2324 = vrot.lane.b32.xlu0 %v2319, 123
    %v2325 = vpop.permute.xlu0 %2324
    %v2328 = vadd.f32 %v2312, %v2323
    %v2329 = vadd.f32 %v2313, %v2325
    %v2330 = vmul.f32 %v2240, %v1284
    %v2331 = vmul.f32 %v2241, %v1284
    %v2332 = vmul.f32 %v2242, %v1287
    %v2333 = vmul.f32 %v2243, %v1287
    %v2334 = vadd.f32 %v2330, %v2332
    %v2335 = vadd.f32 %v2331, %v2333
    %2338 = vrot.lane.b32.xlu0 %v2334, 122
    %v2339 = vpop.permute.xlu0 %2338
    %2340 = vrot.lane.b32.xlu0 %v2335, 122
    %v2341 = vpop.permute.xlu0 %2340
    %v2344 = vadd.f32 %v2328, %v2339
    %v2345 = vadd.f32 %v2329, %v2341
    %v2346 = vadd.f32 %v2130, %v2344
    %v2347 = vadd.f32 %v2131, %v2345
    %v2348 = vadd.f32 %v2346, %v2238
    %v2349 = vadd.f32 %v2347, %v2239
    %v2350 = vadd.f32 %v2348, %v1306
    %v2351 = vadd.f32 %v2349, %v1306
    %s2352 = scalar_lea.vmem [#allocation12], 16
    %2353 = vst.msk [vmem:[%s2352] sm:$0xff] %vm1309, %v2350
    %2354 = vst.msk [vmem:[%s2352 + $0x8] sm:$0xff] %vm1309, %v2351
    // Predicated region
    $region30: #{tpu_custom_call.1} parent=1 // pred_check
      _
    $region31: #{tpu_custom_call.1} parent=1 // pred_check_branch
      %2356 = sbr.rel (0) target = $region33
    $region32: #{tpu_custom_call.1} parent=1 // pred_region
      %s2358 = ssub.s32 512, 512
      %2359 = vsyncadd [#allocation7], %s2358
      %s2360 = sshll.u32 [#allocation12], 4
      %s2361 = int_to_ptr.vmem [resolvable:$true] %s2360
      %2366 = dma.vmem_to_hbm [thread:$0]  %s2361, 512, %s4, [#allocation7], 128, 128, 8
    $region33: #{tpu_custom_call.1} parent=1 // pred_fallthru
      _
    // Predicated region
    $region34: #{tpu_custom_call.1} parent=1 // pred_check
      _
    $region35: #{tpu_custom_call.1} parent=1 // pred_check_branch
      %2368 = sbr.rel (0) target = $region37
    $region36: #{tpu_custom_call.1} parent=1 // pred_region
      %2369 = dma.done [#allocation7], 512
    $region37: #{tpu_custom_call.1} parent=1 // pred_fallthru
      _
    %2370 = vsyncpa [#allocation6], 1
    %2371 = vsyncpa [#allocation7], 1
    %2372 = vsyncpa [#allocation8], 1
    %2373 = vsyncpa [#allocation11], 1

</llo_original>
